<compile_context>
chip_gen: v5e
topology: v5e:2x2
jax: 0.10.0
libtpu: 0.0.40
codegen_flags: <defaults>
</compile_context>

<pallas_src>
import functools

import jax
import jax.numpy as jnp
import numpy as np
from jax import lax
from jax.experimental import pallas as pl
from jax.experimental.pallas import tpu as pltpu

BN_EPS = 1e-5
_VMEM_LIMIT = 32 * 1024 * 1024  # safe scoped-VMEM budget on v5e/v6e/v7x


# ----------------------------------------------------------------------------
# In-kernel helpers
# ----------------------------------------------------------------------------
def _lane_shift(x, s):
    """result[:, p] = x[:, (p + s) % P]; wrapped lanes are zeroed by the tap mask."""
    if s == 0:
        return x
    return jnp.concatenate([x[:, s:], x[:, :s]], axis=1)


# ----------------------------------------------------------------------------
# Fused conv kernel: [optional BN+ReLU of previous stage on load]
#   -> im2col via lane shifts + edge masks (registers, no scratch)
#   -> one f32 MXU matmul (Cout, K) . (K, H*W) + bias
#   -> per-image BN partial statistics (mean, var)
# One grid step == one image.  All stores are lane-dense (last dim = H*W).
# ----------------------------------------------------------------------------
def _conv_bn_stats_kernel(*refs, shifts, fuse_bn_relu):
    if fuse_bn_relu:
        (x_ref, scale_ref, shift_ref, mask_ref, w_ref, b_ref,
         out_ref, mean_ref, var_ref) = refs
    else:
        x_ref, mask_ref, w_ref, b_ref, out_ref, mean_ref, var_ref = refs
        scale_ref = shift_ref = None

    # x_ref:    (1, Cin, P)  f32  raw (pre-BN) activation of the previous stage
    # mask_ref: (T, P)       f32  per-tap validity mask (0/1)
    # w_ref:    (Cout, T*Cin) f32 taps folded into the contraction dim
    # b_ref:    (Cout, 1)    f32  conv bias
    # out_ref:  (1, Cout, P) f32  raw (pre-BN) conv output
    # mean_ref/var_ref: (1, Cout, 1) f32 per-image biased stats over P pixels
    x = x_ref[0]                                                   # (Cin, P)
    if fuse_bn_relu:
        x = jnp.maximum(x * scale_ref[...] + shift_ref[...], 0.0)

    # im2col built in registers: one lane-shifted, edge-masked copy per tap.
    parts = []
    for t, s in enumerate(shifts):
        parts.append(_lane_shift(x, s) * mask_ref[t:t + 1, :])
    col = jnp.concatenate(parts, axis=0)                           # (T*Cin, P)

    acc = jnp.dot(w_ref[...], col, preferred_element_type=jnp.float32)
    acc = acc + b_ref[...]                                         # (Cout, P)

    # Two-pass per-image BN partials (no E[x^2]-E[x]^2 cancellation in-block).
    mean = jnp.mean(acc, axis=1, keepdims=True)                    # (Cout, 1)
    var = jnp.mean((acc - mean) ** 2, axis=1, keepdims=True)       # (Cout, 1)
    mean_ref[0] = mean
    var_ref[0] = var

    out_ref[0] = acc


def _conv_bn_stats(x, scale, shift, mask, w_mat, bias, *, shifts,
                   fuse_bn_relu, out_channels):
    """x: (N, Cin, P) f32 raw activations.  Returns (y, mean, var)."""
    N, Cin, P = x.shape
    T = len(shifts)
    K = T * Cin
    Cout = out_channels

    kernel = functools.partial(_conv_bn_stats_kernel, shifts=shifts,
                               fuse_bn_relu=fuse_bn_relu)

    in_specs = [pl.BlockSpec((1, Cin, P), lambda n: (n, 0, 0))]
    inputs = [x]
    if fuse_bn_relu:
        in_specs += [pl.BlockSpec((Cin, 1), lambda n: (0, 0)),
                     pl.BlockSpec((Cin, 1), lambda n: (0, 0))]
        inputs += [scale, shift]
    in_specs += [pl.BlockSpec((T, P), lambda n: (0, 0)),
                 pl.BlockSpec((Cout, K), lambda n: (0, 0)),
                 pl.BlockSpec((Cout, 1), lambda n: (0, 0))]
    inputs += [mask, w_mat, bias]

    return pl.pallas_call(
        kernel,
        out_shape=(
            jax.ShapeDtypeStruct((N, Cout, P), jnp.float32),
            jax.ShapeDtypeStruct((N, Cout, 1), jnp.float32),
            jax.ShapeDtypeStruct((N, Cout, 1), jnp.float32),
        ),
        grid=(N,),
        in_specs=in_specs,
        out_specs=(
            pl.BlockSpec((1, Cout, P), lambda n: (n, 0, 0)),
            pl.BlockSpec((1, Cout, 1), lambda n: (n, 0, 0)),
            pl.BlockSpec((1, Cout, 1), lambda n: (n, 0, 0)),
        ),
        compiler_params=pltpu.CompilerParams(
            dimension_semantics=("parallel",),
            vmem_limit_bytes=_VMEM_LIMIT),
    )(*inputs)


# ----------------------------------------------------------------------------
# Final standalone BN + ReLU kernel (the last BatchNorm has no following conv).
# ----------------------------------------------------------------------------
def _bn_relu_kernel(x_ref, scale_ref, shift_ref, o_ref):
    o_ref[0] = jnp.maximum(x_ref[0] * scale_ref[...] + shift_ref[...], 0.0)


def _bn_relu(x, scale, shift):
    N, C, P = x.shape
    return pl.pallas_call(
        _bn_relu_kernel,
        out_shape=jax.ShapeDtypeStruct((N, C, P), jnp.float32),
        grid=(N,),
        in_specs=[pl.BlockSpec((1, C, P), lambda n: (n, 0, 0)),
                  pl.BlockSpec((C, 1), lambda n: (0, 0)),
                  pl.BlockSpec((C, 1), lambda n: (0, 0))],
        out_specs=pl.BlockSpec((1, C, P), lambda n: (n, 0, 0)),
        compiler_params=pltpu.CompilerParams(
            dimension_semantics=("parallel",),
            vmem_limit_bytes=_VMEM_LIMIT),
    )(x, scale, shift)


# ----------------------------------------------------------------------------
# Trace-time glue: tap masks, weight relayout, stat combination.
# ----------------------------------------------------------------------------
def _make_tap_mask(H, W, taps):
    ii, jj = np.meshgrid(np.arange(H), np.arange(W), indexing="ij")
    rows = []
    for dh, dw in taps:
        valid = ((ii + dh >= 0) & (ii + dh < H) &
                 (jj + dw >= 0) & (jj + dw < W))
        rows.append(valid.reshape(-1).astype(np.float32))
    return jnp.asarray(np.stack(rows, axis=0))                     # (T, H*W)


def _conv_as_matmul_weight_t(w_oihw):
    # PyTorch Conv2d weight (O, I, kh, kw) -> (O, KH*KW*I), col index (kh*KW+kw)*I + ci.
    O, I, KH, KW = w_oihw.shape
    return jnp.transpose(w_oihw, (0, 2, 3, 1)).astype(jnp.float32).reshape(O, KH * KW * I)


def _transconv_as_matmul_weight_t(wt_raw):
    # ConvTranspose2d(k=3, s=2, p=1, op=1) decomposed by output-pixel parity:
    #   out[(2a+b)*O+co, i*W+j] = sum_{dh,dw,ci} x[ci, i+dh, j+dw] * Wm[(2a+b)*O+co, (2dh+dw)*I+ci]
    # with x read as zero beyond the bottom/right edge (handled by the tap masks).
    I, O = wt_raw.shape[0], wt_raw.shape[1]
    wm = jnp.zeros((4 * O, 4 * I), jnp.float32)
    for dh in range(2):
        for dw in range(2):
            for a in range(2):
                for b in range(2):
                    kh = 2 * dh + 1 - a   # tap of the equivalent stride-1 conv
                    kw = 2 * dw + 1 - b
                    if 0 <= kh <= 2 and 0 <= kw <= 2:
                        t, par = 2 * dh + dw, 2 * a + b
                        blk = jnp.transpose(
                            wt_raw[:, :, 2 - kh, 2 - kw]).astype(jnp.float32)  # (O, I)
                        wm = wm.at[par * O:(par + 1) * O, t * I:(t + 1) * I].set(blk)
    return wm


def _combine_stats(mean_g, var_g):
    # Combine equal-sized per-group biased (mean, var) partials (groups on axis 0).
    mean = jnp.mean(mean_g, axis=0)
    var = jnp.mean(var_g, axis=0) + jnp.mean(mean_g ** 2, axis=0) - mean ** 2
    return mean, var


# ----------------------------------------------------------------------------
# DiskUP forward (NCHW in, NCHW out).
# ----------------------------------------------------------------------------
def disk_up_forward(x_nchw, params):
    N, inc, H, W = x_nchw.shape
    outc = params["bt"].shape[0]
    foutc = params["bc2"].shape[0]
    H2, W2 = 2 * H, 2 * W
    P1, P2 = H * W, H2 * W2

    taps2 = [(dh, dw) for dh in (0, 1) for dw in (0, 1)]
    taps3 = [(dh, dw) for dh in (-1, 0, 1) for dw in (-1, 0, 1)]
    shifts2 = tuple(dh * W + dw for dh, dw in taps2)
    shifts3 = tuple(dh * W2 + dw for dh, dw in taps3)
    mask2 = _make_tap_mask(H, W, taps2)
    mask3 = _make_tap_mask(H2, W2, taps3)

    x = x_nchw.astype(jnp.float32).reshape(N, inc, P1)      # free relayout

    # ---- stage 1: ConvTranspose2d via parity decomposition (4*outc channels) ----
    wT = _transconv_as_matmul_weight_t(params["wt_raw"])
    bT = jnp.tile(params["bt"], 4).reshape(4 * outc, 1).astype(jnp.float32)
    y1, m1, v1 = _conv_bn_stats(x, None, None, mask2, wT, bT,
                                shifts=shifts2, fuse_bn_relu=False,
                                out_channels=4 * outc)
    # BN1 statistics: combine over images AND the 4 parity groups of each channel.
    mean1, var1 = _combine_stats(m1.reshape(N * 4, outc), v1.reshape(N * 4, outc))
    scale1 = params["g1"] * lax.rsqrt(var1 + BN_EPS)
    shift1 = params["b1"] - mean1 * scale1

    # pixel shuffle (tiny XLA relayout; commutes with the per-channel BN)
    y1 = y1.reshape(N, 2, 2, outc, H, W)
    y1 = jnp.transpose(y1, (0, 3, 4, 1, 5, 2)).reshape(N, outc, P2)

    # ---- stage 2: conv1 3x3 (BN1 + ReLU fused onto its input load) ----
    w1 = _conv_as_matmul_weight_t(params["w1_raw"])
    b1 = params["bc1"].reshape(outc, 1).astype(jnp.float32)
    y2, m2, v2 = _conv_bn_stats(y1, scale1.reshape(outc, 1), shift1.reshape(outc, 1),
                                mask3, w1, b1, shifts=shifts3, fuse_bn_relu=True,
                                out_channels=outc)
    mean2, var2 = _combine_stats(m2.reshape(N, outc), v2.reshape(N, outc))
    # NOTE: the PyTorch forward reuses self.batch_norm1 here (shared gamma/beta),
    # but training-mode batch statistics are recomputed from this stage's output.
    scale2 = params["g1"] * lax.rsqrt(var2 + BN_EPS)
    shift2 = params["b1"] - mean2 * scale2

    # ---- stage 3: conv2 3x3 (BN1 + ReLU fused onto its input load) ----
    w2 = _conv_as_matmul_weight_t(params["w2_raw"])
    b2 = params["bc2"].reshape(foutc, 1).astype(jnp.float32)
    y3, m3, v3 = _conv_bn_stats(y2, scale2.reshape(outc, 1), shift2.reshape(outc, 1),
                                mask3, w2, b2, shifts=shifts3, fuse_bn_relu=True,
                                out_channels=foutc)
    mean3, var3 = _combine_stats(m3.reshape(N, foutc), v3.reshape(N, foutc))
    scale3 = params["g2"] * lax.rsqrt(var3 + BN_EPS)
    shift3 = params["b2"] - mean3 * scale3

    # ---- final BN2 + ReLU ----
    out = _bn_relu(y3, scale3.reshape(foutc, 1), shift3.reshape(foutc, 1))
    return out.reshape(N, foutc, H2, W2)                    # free relayout back to NCHW


# ----------------------------------------------------------------------------
# Pure-JAX f32 reference (lax convs + training-mode BatchNorm).
# ----------------------------------------------------------------------------
def disk_up_reference(x_nchw, p):
    f32 = jnp.float32

    def conv(x, w_hwio, padding, lhs_dilation=(1, 1)):
        return lax.conv_general_dilated(
            x, w_hwio.astype(f32), (1, 1), padding, lhs_dilation=lhs_dilation,
            dimension_numbers=("NHWC", "HWIO", "NHWC"),
            preferred_element_type=f32)

    def bn_relu(y, gamma, beta):
        mean = jnp.mean(y, axis=(0, 1, 2))
        var = jnp.mean((y - mean) ** 2, axis=(0, 1, 2))
        scale = gamma * lax.rsqrt(var + BN_EPS)
        shift = beta - mean * scale
        return jnp.maximum(y * scale + shift, 0.0)

    x = jnp.transpose(x_nchw, (0, 2, 3, 1)).astype(f32)
    wt = jnp.transpose(jnp.flip(p["wt_raw"], axis=(2, 3)), (2, 3, 0, 1))  # HWIO
    y = conv(x, wt, ((1, 2), (1, 2)), lhs_dilation=(2, 2)) + p["bt"]
    y = bn_relu(y, p["g1"], p["b1"])
    w1 = jnp.transpose(p["w1_raw"], (2, 3, 1, 0))
    y = conv(y, w1, ((1, 1), (1, 1))) + p["bc1"]
    y = bn_relu(y, p["g1"], p["b1"])
    w2 = jnp.transpose(p["w2_raw"], (2, 3, 1, 0))
    y = conv(y, w2, ((1, 1), (1, 1))) + p["bc2"]
    y = bn_relu(y, p["g2"], p["b2"])
    return jnp.transpose(y, (0, 3, 1, 2))


# ----------------------------------------------------------------------------
# Deterministic parameter init (shapes from the PyTorch __init__).
# ----------------------------------------------------------------------------
def init_params(key, inc, outc, final_outc):
    ks = jax.random.split(key, 6)
    s = 0.1
    return dict(
        wt_raw=s * jax.random.normal(ks[0], (inc, outc, 3, 3), jnp.float32),
        bt=s * jax.random.normal(ks[1], (outc,), jnp.float32),
        w1_raw=s * jax.random.normal(ks[2], (outc, outc, 3, 3), jnp.float32),
        bc1=s * jax.random.normal(ks[3], (outc,), jnp.float32),
        w2_raw=s * jax.random.normal(ks[4], (final_outc, outc, 3, 3), jnp.float32),
        bc2=s * jax.random.normal(ks[5], (final_outc,), jnp.float32),
        g1=1.0 + 0.1 * jnp.arange(outc, dtype=jnp.float32),
        b1=0.05 * jnp.arange(outc, dtype=jnp.float32),
        g2=1.0 + 0.1 * jnp.arange(final_outc, dtype=jnp.float32),
        b2=-0.05 * jnp.arange(final_outc, dtype=jnp.float32),
    )


if __name__ == "__main__":
    inc, outc, final_outc = 4, 8, 4
    N, H, W = 2, 16, 16

    key = jax.random.PRNGKey(0)
    kx, kp = jax.random.split(key)
    x = jax.random.normal(kx, (N, inc, H, W), jnp.float32)
    params = init_params(kp, inc, outc, final_outc)

    fwd = jax.jit(disk_up_forward)
    out = jax.block_until_ready(fwd(x, params))

    assert out.shape == (N, final_outc, 2 * H, 2 * W), out.shape
    ref = disk_up_reference(x, params)
    np.testing.assert_allclose(np.asarray(out, dtype=np.float32),
                               np.asarray(ref, dtype=np.float32),
                               rtol=2e-3, atol=2e-3)
    print("KERNEL_OK")
</pallas_src>

<mosaic_0001>
module attributes {stable_mosaic.version = 11 : i64} {
  func.func @_conv_bn_stats_kernel(%arg0: i32, %arg1: memref<1x4x256xf32, #tpu.memory_space<vmem>>, %arg2: memref<4x256xf32, #tpu.memory_space<vmem>>, %arg3: memref<32x16xf32, #tpu.memory_space<vmem>>, %arg4: memref<32x1xf32, #tpu.memory_space<vmem>>, %arg5: memref<1x32x256xf32, #tpu.memory_space<vmem>>, %arg6: memref<1x32x1xf32, #tpu.memory_space<vmem>>, %arg7: memref<1x32x1xf32, #tpu.memory_space<vmem>>) attributes {dimension_semantics = [#tpu.dimension_semantics<parallel>], iteration_bounds = array<i64: 2>, scalar_prefetch = 0 : i64, scratch_operands = 0 : i64, tpu.core_type = #tpu.core_type<tc>, window_params = [{transform_indices = @transform_0, window_bounds = array<i64: 1, 4, 256>}, {pipeline_mode = #tpu.pipeline_mode<synchronous>, transform_indices = @transform_1, window_bounds = array<i64: 4, 256>}, {pipeline_mode = #tpu.pipeline_mode<synchronous>, transform_indices = @transform_2, window_bounds = array<i64: 32, 16>}, {pipeline_mode = #tpu.pipeline_mode<synchronous>, transform_indices = @transform_3, window_bounds = array<i64: 32, 1>}, {transform_indices = @transform_4, window_bounds = array<i64: 1, 32, 256>}, {transform_indices = @transform_5, window_bounds = array<i64: 1, 32, 1>}, {transform_indices = @transform_6, window_bounds = array<i64: 1, 32, 1>}]} {
    %c0 = arith.constant 0 : index
    %c0_0 = arith.constant 0 : index
    %c0_1 = arith.constant 0 : index
    %0 = vector.load %arg1[%c0, %c0_0, %c0_1] : memref<1x4x256xf32, #tpu.memory_space<vmem>>, vector<1x4x256xf32>
    %1 = vector.shape_cast %0 : vector<1x4x256xf32> to vector<4x256xf32>
    %c0_2 = arith.constant 0 : index
    %c0_3 = arith.constant 0 : index
    %2 = vector.load %arg2[%c0_2, %c0_3] : memref<4x256xf32, #tpu.memory_space<vmem>>, vector<1x256xf32>
    %3 = vector.broadcast %2 : vector<1x256xf32> to vector<4x256xf32>
    %4 = arith.mulf %1, %3 : vector<4x256xf32>
    %5 = vector.extract_strided_slice %1 {offsets = [0, 1], sizes = [4, 255], strides = [1, 1]} : vector<4x256xf32> to vector<4x255xf32>
    %6 = vector.extract_strided_slice %1 {offsets = [0, 0], sizes = [4, 1], strides = [1, 1]} : vector<4x256xf32> to vector<4x1xf32>
    %7 = tpu.concatenate %5, %6 in 1 : vector<4x255xf32>, vector<4x1xf32> -> vector<4x256xf32>
    %c1 = arith.constant 1 : index
    %c0_4 = arith.constant 0 : index
    %8 = vector.load %arg2[%c1, %c0_4] : memref<4x256xf32, #tpu.memory_space<vmem>>, vector<1x256xf32>
    %9 = vector.broadcast %8 : vector<1x256xf32> to vector<4x256xf32>
    %10 = arith.mulf %7, %9 : vector<4x256xf32>
    %11 = vector.extract_strided_slice %1 {offsets = [0, 16], sizes = [4, 240], strides = [1, 1]} : vector<4x256xf32> to vector<4x240xf32>
    %12 = vector.extract_strided_slice %1 {offsets = [0, 0], sizes = [4, 16], strides = [1, 1]} : vector<4x256xf32> to vector<4x16xf32>
    %13 = tpu.concatenate %11, %12 in 1 : vector<4x240xf32>, vector<4x16xf32> -> vector<4x256xf32>
    %c2 = arith.constant 2 : index
    %c0_5 = arith.constant 0 : index
    %14 = vector.load %arg2[%c2, %c0_5] : memref<4x256xf32, #tpu.memory_space<vmem>>, vector<1x256xf32>
    %15 = vector.broadcast %14 : vector<1x256xf32> to vector<4x256xf32>
    %16 = arith.mulf %13, %15 : vector<4x256xf32>
    %17 = vector.extract_strided_slice %1 {offsets = [0, 17], sizes = [4, 239], strides = [1, 1]} : vector<4x256xf32> to vector<4x239xf32>
    %18 = vector.extract_strided_slice %1 {offsets = [0, 0], sizes = [4, 17], strides = [1, 1]} : vector<4x256xf32> to vector<4x17xf32>
    %19 = tpu.concatenate %17, %18 in 1 : vector<4x239xf32>, vector<4x17xf32> -> vector<4x256xf32>
    %c3 = arith.constant 3 : index
    %c0_6 = arith.constant 0 : index
    %20 = vector.load %arg2[%c3, %c0_6] : memref<4x256xf32, #tpu.memory_space<vmem>>, vector<1x256xf32>
    %21 = vector.broadcast %20 : vector<1x256xf32> to vector<4x256xf32>
    %22 = arith.mulf %19, %21 : vector<4x256xf32>
    %23 = tpu.concatenate %4, %10, %16, %22 in 0 : vector<4x256xf32>, vector<4x256xf32>, vector<4x256xf32>, vector<4x256xf32> -> vector<16x256xf32>
    %c0_7 = arith.constant 0 : index
    %c0_8 = arith.constant 0 : index
    %24 = vector.load %arg3[%c0_7, %c0_8] : memref<32x16xf32, #tpu.memory_space<vmem>>, vector<32x16xf32>
    %cst = arith.constant dense<0.000000e+00> : vector<32x256xf32>
    %25 = tpu.matmul %24, %23, %cst {dimension_numbers = #tpu.dot_dimension_numbers<[1], [0], [0], [1], [0, 0, 1, 1], [], []>} : vector<32x16xf32>, vector<16x256xf32>, vector<32x256xf32> -> vector<32x256xf32>
    %c0_9 = arith.constant 0 : index
    %c0_10 = arith.constant 0 : index
    %26 = vector.load %arg4[%c0_9, %c0_10] : memref<32x1xf32, #tpu.memory_space<vmem>>, vector<32x1xf32>
    %27 = vector.broadcast %26 : vector<32x1xf32> to vector<32x256xf32>
    %28 = arith.addf %25, %27 : vector<32x256xf32>
    %cst_11 = arith.constant dense<0.000000e+00> : vector<32xf32>
    %29 = vector.multi_reduction <add>, %28, %cst_11 [1] : vector<32x256xf32> to vector<32xf32>
    %30 = vector.shape_cast %29 : vector<32xf32> to vector<32x1xf32>
    %cst_12 = arith.constant 2.560000e+02 : f32
    %31 = vector.broadcast %cst_12 : f32 to vector<32x1xf32>
    %32 = arith.divf %30, %31 : vector<32x1xf32>
    %33 = vector.broadcast %32 : vector<32x1xf32> to vector<32x256xf32>
    %34 = arith.subf %28, %33 : vector<32x256xf32>
    %35 = arith.mulf %34, %34 : vector<32x256xf32>
    %cst_13 = arith.constant dense<0.000000e+00> : vector<32xf32>
    %36 = vector.multi_reduction <add>, %35, %cst_13 [1] : vector<32x256xf32> to vector<32xf32>
    %37 = vector.shape_cast %36 : vector<32xf32> to vector<32x1xf32>
    %cst_14 = arith.constant 2.560000e+02 : f32
    %38 = vector.broadcast %cst_14 : f32 to vector<32x1xf32>
    %39 = arith.divf %37, %38 : vector<32x1xf32>
    %c0_15 = arith.constant 0 : index
    %c0_16 = arith.constant 0 : index
    %c0_17 = arith.constant 0 : index
    %40 = vector.load %arg6[%c0_15, %c0_16, %c0_17] : memref<1x32x1xf32, #tpu.memory_space<vmem>>, vector<1x32x1xf32>
    %41 = vector.shape_cast %40 : vector<1x32x1xf32> to vector<32x1xf32>
    %42 = vector.shape_cast %32 : vector<32x1xf32> to vector<1x32x1xf32>
    tpu.vector_store %arg6[%c0_15, %c0_16, %c0_17], %42 {strides = array<i32>} : memref<1x32x1xf32, #tpu.memory_space<vmem>>, vector<1x32x1xf32>,
    %c0_18 = arith.constant 0 : index
    %c0_19 = arith.constant 0 : index
    %c0_20 = arith.constant 0 : index
    %43 = vector.load %arg7[%c0_18, %c0_19, %c0_20] : memref<1x32x1xf32, #tpu.memory_space<vmem>>, vector<1x32x1xf32>
    %44 = vector.shape_cast %43 : vector<1x32x1xf32> to vector<32x1xf32>
    %45 = vector.shape_cast %39 : vector<32x1xf32> to vector<1x32x1xf32>
    tpu.vector_store %arg7[%c0_18, %c0_19, %c0_20], %45 {strides = array<i32>} : memref<1x32x1xf32, #tpu.memory_space<vmem>>, vector<1x32x1xf32>,
    %c0_21 = arith.constant 0 : index
    %c0_22 = arith.constant 0 : index
    %c0_23 = arith.constant 0 : index
    %46 = vector.load %arg5[%c0_21, %c0_22, %c0_23] : memref<1x32x256xf32, #tpu.memory_space<vmem>>, vector<1x32x256xf32>
    %47 = vector.shape_cast %46 : vector<1x32x256xf32> to vector<32x256xf32>
    %48 = vector.shape_cast %28 : vector<32x256xf32> to vector<1x32x256xf32>
    tpu.vector_store %arg5[%c0_21, %c0_22, %c0_23], %48 {strides = array<i32>} : memref<1x32x256xf32, #tpu.memory_space<vmem>>, vector<1x32x256xf32>,
    return
  }
  func.func @transform_0(%arg0: i32) -> (i32, i32, i32) {
    %c0_i32 = arith.constant 0 : i32
    %c0_i32_0 = arith.constant 0 : i32
    %c0_i32_1 = arith.constant 0 : i32
    return %arg0, %c0_i32, %c0_i32_0 : i32, i32, i32
  }
  func.func @transform_1(%arg0: i32) -> (i32, i32) {
    %c0_i32 = arith.constant 0 : i32
    %c0_i32_0 = arith.constant 0 : i32
    %c0_i32_1 = arith.constant 0 : i32
    return %c0_i32, %c0_i32_0 : i32, i32
  }
  func.func @transform_2(%arg0: i32) -> (i32, i32) {
    %c0_i32 = arith.constant 0 : i32
    %c0_i32_0 = arith.constant 0 : i32
    %c0_i32_1 = arith.constant 0 : i32
    return %c0_i32, %c0_i32_0 : i32, i32
  }
  func.func @transform_3(%arg0: i32) -> (i32, i32) {
    %c0_i32 = arith.constant 0 : i32
    %c0_i32_0 = arith.constant 0 : i32
    %c0_i32_1 = arith.constant 0 : i32
    return %c0_i32, %c0_i32_0 : i32, i32
  }
  func.func @transform_4(%arg0: i32) -> (i32, i32, i32) {
    %c0_i32 = arith.constant 0 : i32
    %c0_i32_0 = arith.constant 0 : i32
    %c0_i32_1 = arith.constant 0 : i32
    return %arg0, %c0_i32, %c0_i32_0 : i32, i32, i32
  }
  func.func @transform_5(%arg0: i32) -> (i32, i32, i32) {
    %c0_i32 = arith.constant 0 : i32
    %c0_i32_0 = arith.constant 0 : i32
    %c0_i32_1 = arith.constant 0 : i32
    return %arg0, %c0_i32, %c0_i32_0 : i32, i32, i32
  }
  func.func @transform_6(%arg0: i32) -> (i32, i32, i32) {
    %c0_i32 = arith.constant 0 : i32
    %c0_i32_0 = arith.constant 0 : i32
    %c0_i32_1 = arith.constant 0 : i32
    return %arg0, %c0_i32, %c0_i32_0 : i32, i32, i32
  }
}

module attributes {stable_mosaic.version = 11 : i64} {
  func.func @_conv_bn_stats_kernel(%arg0: i32, %arg1: memref<1x8x1024xf32, #tpu.memory_space<vmem>>, %arg2: memref<8x1xf32, #tpu.memory_space<vmem>>, %arg3: memref<8x1xf32, #tpu.memory_space<vmem>>, %arg4: memref<9x1024xf32, #tpu.memory_space<vmem>>, %arg5: memref<8x72xf32, #tpu.memory_space<vmem>>, %arg6: memref<8x1xf32, #tpu.memory_space<vmem>>, %arg7: memref<1x8x1024xf32, #tpu.memory_space<vmem>>, %arg8: memref<1x8x1xf32, #tpu.memory_space<vmem>>, %arg9: memref<1x8x1xf32, #tpu.memory_space<vmem>>) attributes {dimension_semantics = [#tpu.dimension_semantics<parallel>], iteration_bounds = array<i64: 2>, scalar_prefetch = 0 : i64, scratch_operands = 0 : i64, tpu.core_type = #tpu.core_type<tc>, window_params = [{transform_indices = @transform_0, window_bounds = array<i64: 1, 8, 1024>}, {pipeline_mode = #tpu.pipeline_mode<synchronous>, transform_indices = @transform_1, window_bounds = array<i64: 8, 1>}, {pipeline_mode = #tpu.pipeline_mode<synchronous>, transform_indices = @transform_2, window_bounds = array<i64: 8, 1>}, {pipeline_mode = #tpu.pipeline_mode<synchronous>, transform_indices = @transform_3, window_bounds = array<i64: 9, 1024>}, {pipeline_mode = #tpu.pipeline_mode<synchronous>, transform_indices = @transform_4, window_bounds = array<i64: 8, 72>}, {pipeline_mode = #tpu.pipeline_mode<synchronous>, transform_indices = @transform_5, window_bounds = array<i64: 8, 1>}, {transform_indices = @transform_6, window_bounds = array<i64: 1, 8, 1024>}, {transform_indices = @transform_7, window_bounds = array<i64: 1, 8, 1>}, {transform_indices = @transform_8, window_bounds = array<i64: 1, 8, 1>}]} {
    %c0 = arith.constant 0 : index
    %c0_0 = arith.constant 0 : index
    %c0_1 = arith.constant 0 : index
    %0 = vector.load %arg1[%c0, %c0_0, %c0_1] : memref<1x8x1024xf32, #tpu.memory_space<vmem>>, vector<1x8x1024xf32>
    %1 = vector.shape_cast %0 : vector<1x8x1024xf32> to vector<8x1024xf32>
    %c0_2 = arith.constant 0 : index
    %c0_3 = arith.constant 0 : index
    %2 = vector.load %arg2[%c0_2, %c0_3] : memref<8x1xf32, #tpu.memory_space<vmem>>, vector<8x1xf32>
    %3 = vector.broadcast %2 : vector<8x1xf32> to vector<8x1024xf32>
    %4 = arith.mulf %1, %3 : vector<8x1024xf32>
    %c0_4 = arith.constant 0 : index
    %c0_5 = arith.constant 0 : index
    %5 = vector.load %arg3[%c0_4, %c0_5] : memref<8x1xf32, #tpu.memory_space<vmem>>, vector<8x1xf32>
    %6 = vector.broadcast %5 : vector<8x1xf32> to vector<8x1024xf32>
    %7 = arith.addf %4, %6 : vector<8x1024xf32>
    %cst = arith.constant 0.000000e+00 : f32
    %8 = vector.broadcast %cst : f32 to vector<8x1024xf32>
    %9 = arith.maximumf %7, %8 : vector<8x1024xf32>
    %10 = vector.extract_strided_slice %9 {offsets = [0, 991], sizes = [8, 33], strides = [1, 1]} : vector<8x1024xf32> to vector<8x33xf32>
    %11 = vector.extract_strided_slice %9 {offsets = [0, 0], sizes = [8, 991], strides = [1, 1]} : vector<8x1024xf32> to vector<8x991xf32>
    %12 = tpu.concatenate %10, %11 in 1 : vector<8x33xf32>, vector<8x991xf32> -> vector<8x1024xf32>
    %c0_6 = arith.constant 0 : index
    %c0_7 = arith.constant 0 : index
    %13 = vector.load %arg4[%c0_6, %c0_7] : memref<9x1024xf32, #tpu.memory_space<vmem>>, vector<1x1024xf32>
    %14 = vector.broadcast %13 : vector<1x1024xf32> to vector<8x1024xf32>
    %15 = arith.mulf %12, %14 : vector<8x1024xf32>
    %16 = vector.extract_strided_slice %9 {offsets = [0, 992], sizes = [8, 32], strides = [1, 1]} : vector<8x1024xf32> to vector<8x32xf32>
    %17 = vector.extract_strided_slice %9 {offsets = [0, 0], sizes = [8, 992], strides = [1, 1]} : vector<8x1024xf32> to vector<8x992xf32>
    %18 = tpu.concatenate %16, %17 in 1 : vector<8x32xf32>, vector<8x992xf32> -> vector<8x1024xf32>
    %c1 = arith.constant 1 : index
    %c0_8 = arith.constant 0 : index
    %19 = vector.load %arg4[%c1, %c0_8] : memref<9x1024xf32, #tpu.memory_space<vmem>>, vector<1x1024xf32>
    %20 = vector.broadcast %19 : vector<1x1024xf32> to vector<8x1024xf32>
    %21 = arith.mulf %18, %20 : vector<8x1024xf32>
    %22 = vector.extract_strided_slice %9 {offsets = [0, 993], sizes = [8, 31], strides = [1, 1]} : vector<8x1024xf32> to vector<8x31xf32>
    %23 = vector.extract_strided_slice %9 {offsets = [0, 0], sizes = [8, 993], strides = [1, 1]} : vector<8x1024xf32> to vector<8x993xf32>
    %24 = tpu.concatenate %22, %23 in 1 : vector<8x31xf32>, vector<8x993xf32> -> vector<8x1024xf32>
    %c2 = arith.constant 2 : index
    %c0_9 = arith.constant 0 : index
    %25 = vector.load %arg4[%c2, %c0_9] : memref<9x1024xf32, #tpu.memory_space<vmem>>, vector<1x1024xf32>
    %26 = vector.broadcast %25 : vector<1x1024xf32> to vector<8x1024xf32>
    %27 = arith.mulf %24, %26 : vector<8x1024xf32>
    %28 = vector.extract_strided_slice %9 {offsets = [0, 1023], sizes = [8, 1], strides = [1, 1]} : vector<8x1024xf32> to vector<8x1xf32>
    %29 = vector.extract_strided_slice %9 {offsets = [0, 0], sizes = [8, 1023], strides = [1, 1]} : vector<8x1024xf32> to vector<8x1023xf32>
    %30 = tpu.concatenate %28, %29 in 1 : vector<8x1xf32>, vector<8x1023xf32> -> vector<8x1024xf32>
    %c3 = arith.constant 3 : index
    %c0_10 = arith.constant 0 : index
    %31 = vector.load %arg4[%c3, %c0_10] : memref<9x1024xf32, #tpu.memory_space<vmem>>, vector<1x1024xf32>
    %32 = vector.broadcast %31 : vector<1x1024xf32> to vector<8x1024xf32>
    %33 = arith.mulf %30, %32 : vector<8x1024xf32>
    %c4 = arith.constant 4 : index
    %c0_11 = arith.constant 0 : index
    %34 = vector.load %arg4[%c4, %c0_11] : memref<9x1024xf32, #tpu.memory_space<vmem>>, vector<1x1024xf32>
    %35 = vector.broadcast %34 : vector<1x1024xf32> to vector<8x1024xf32>
    %36 = arith.mulf %9, %35 : vector<8x1024xf32>
    %37 = vector.extract_strided_slice %9 {offsets = [0, 1], sizes = [8, 1023], strides = [1, 1]} : vector<8x1024xf32> to vector<8x1023xf32>
    %38 = vector.extract_strided_slice %9 {offsets = [0, 0], sizes = [8, 1], strides = [1, 1]} : vector<8x1024xf32> to vector<8x1xf32>
    %39 = tpu.concatenate %37, %38 in 1 : vector<8x1023xf32>, vector<8x1xf32> -> vector<8x1024xf32>
    %c5 = arith.constant 5 : index
    %c0_12 = arith.constant 0 : index
    %40 = vector.load %arg4[%c5, %c0_12] : memref<9x1024xf32, #tpu.memory_space<vmem>>, vector<1x1024xf32>
    %41 = vector.broadcast %40 : vector<1x1024xf32> to vector<8x1024xf32>
    %42 = arith.mulf %39, %41 : vector<8x1024xf32>
    %43 = vector.extract_strided_slice %9 {offsets = [0, 31], sizes = [8, 993], strides = [1, 1]} : vector<8x1024xf32> to vector<8x993xf32>
    %44 = vector.extract_strided_slice %9 {offsets = [0, 0], sizes = [8, 31], strides = [1, 1]} : vector<8x1024xf32> to vector<8x31xf32>
    %45 = tpu.concatenate %43, %44 in 1 : vector<8x993xf32>, vector<8x31xf32> -> vector<8x1024xf32>
    %c6 = arith.constant 6 : index
    %c0_13 = arith.constant 0 : index
    %46 = vector.load %arg4[%c6, %c0_13] : memref<9x1024xf32, #tpu.memory_space<vmem>>, vector<1x1024xf32>
    %47 = vector.broadcast %46 : vector<1x1024xf32> to vector<8x1024xf32>
    %48 = arith.mulf %45, %47 : vector<8x1024xf32>
    %49 = vector.extract_strided_slice %9 {offsets = [0, 32], sizes = [8, 992], strides = [1, 1]} : vector<8x1024xf32> to vector<8x992xf32>
    %50 = vector.extract_strided_slice %9 {offsets = [0, 0], sizes = [8, 32], strides = [1, 1]} : vector<8x1024xf32> to vector<8x32xf32>
    %51 = tpu.concatenate %49, %50 in 1 : vector<8x992xf32>, vector<8x32xf32> -> vector<8x1024xf32>
    %c7 = arith.constant 7 : index
    %c0_14 = arith.constant 0 : index
    %52 = vector.load %arg4[%c7, %c0_14] : memref<9x1024xf32, #tpu.memory_space<vmem>>, vector<1x1024xf32>
    %53 = vector.broadcast %52 : vector<1x1024xf32> to vector<8x1024xf32>
    %54 = arith.mulf %51, %53 : vector<8x1024xf32>
    %55 = vector.extract_strided_slice %9 {offsets = [0, 33], sizes = [8, 991], strides = [1, 1]} : vector<8x1024xf32> to vector<8x991xf32>
    %56 = vector.extract_strided_slice %9 {offsets = [0, 0], sizes = [8, 33], strides = [1, 1]} : vector<8x1024xf32> to vector<8x33xf32>
    %57 = tpu.concatenate %55, %56 in 1 : vector<8x991xf32>, vector<8x33xf32> -> vector<8x1024xf32>
    %c8 = arith.constant 8 : index
    %c0_15 = arith.constant 0 : index
    %58 = vector.load %arg4[%c8, %c0_15] : memref<9x1024xf32, #tpu.memory_space<vmem>>, vector<1x1024xf32>
    %59 = vector.broadcast %58 : vector<1x1024xf32> to vector<8x1024xf32>
    %60 = arith.mulf %57, %59 : vector<8x1024xf32>
    %61 = tpu.concatenate %15, %21, %27, %33, %36, %42, %48, %54, %60 in 0 : vector<8x1024xf32>, vector<8x1024xf32>, vector<8x1024xf32>, vector<8x1024xf32>, vector<8x1024xf32>, vector<8x1024xf32>, vector<8x1024xf32>, vector<8x1024xf32>, vector<8x1024xf32> -> vector<72x1024xf32>
    %c0_16 = arith.constant 0 : index
    %c0_17 = arith.constant 0 : index
    %62 = vector.load %arg5[%c0_16, %c0_17] : memref<8x72xf32, #tpu.memory_space<vmem>>, vector<8x72xf32>
    %cst_18 = arith.constant dense<0.000000e+00> : vector<8x1024xf32>
    %63 = tpu.matmul %62, %61, %cst_18 {dimension_numbers = #tpu.dot_dimension_numbers<[1], [0], [0], [1], [0, 0, 1, 1], [], []>} : vector<8x72xf32>, vector<72x1024xf32>, vector<8x1024xf32> -> vector<8x1024xf32>
    %c0_19 = arith.constant 0 : index
    %c0_20 = arith.constant 0 : index
    %64 = vector.load %arg6[%c0_19, %c0_20] : memref<8x1xf32, #tpu.memory_space<vmem>>, vector<8x1xf32>
    %65 = vector.broadcast %64 : vector<8x1xf32> to vector<8x1024xf32>
    %66 = arith.addf %63, %65 : vector<8x1024xf32>
    %cst_21 = arith.constant dense<0.000000e+00> : vector<8xf32>
    %67 = vector.multi_reduction <add>, %66, %cst_21 [1] : vector<8x1024xf32> to vector<8xf32>
    %68 = vector.shape_cast %67 : vector<8xf32> to vector<8x1xf32>
    %cst_22 = arith.constant 1.024000e+03 : f32
    %69 = vector.broadcast %cst_22 : f32 to vector<8x1xf32>
    %70 = arith.divf %68, %69 : vector<8x1xf32>
    %71 = vector.broadcast %70 : vector<8x1xf32> to vector<8x1024xf32>
    %72 = arith.subf %66, %71 : vector<8x1024xf32>
    %73 = arith.mulf %72, %72 : vector<8x1024xf32>
    %cst_23 = arith.constant dense<0.000000e+00> : vector<8xf32>
    %74 = vector.multi_reduction <add>, %73, %cst_23 [1] : vector<8x1024xf32> to vector<8xf32>
    %75 = vector.shape_cast %74 : vector<8xf32> to vector<8x1xf32>
    %cst_24 = arith.constant 1.024000e+03 : f32
    %76 = vector.broadcast %cst_24 : f32 to vector<8x1xf32>
    %77 = arith.divf %75, %76 : vector<8x1xf32>
    %c0_25 = arith.constant 0 : index
    %c0_26 = arith.constant 0 : index
    %c0_27 = arith.constant 0 : index
    %78 = vector.load %arg8[%c0_25, %c0_26, %c0_27] : memref<1x8x1xf32, #tpu.memory_space<vmem>>, vector<1x8x1xf32>
    %79 = vector.shape_cast %78 : vector<1x8x1xf32> to vector<8x1xf32>
    %80 = vector.shape_cast %70 : vector<8x1xf32> to vector<1x8x1xf32>
    tpu.vector_store %arg8[%c0_25, %c0_26, %c0_27], %80 {strides = array<i32>} : memref<1x8x1xf32, #tpu.memory_space<vmem>>, vector<1x8x1xf32>,
    %c0_28 = arith.constant 0 : index
    %c0_29 = arith.constant 0 : index
    %c0_30 = arith.constant 0 : index
    %81 = vector.load %arg9[%c0_28, %c0_29, %c0_30] : memref<1x8x1xf32, #tpu.memory_space<vmem>>, vector<1x8x1xf32>
    %82 = vector.shape_cast %81 : vector<1x8x1xf32> to vector<8x1xf32>
    %83 = vector.shape_cast %77 : vector<8x1xf32> to vector<1x8x1xf32>
    tpu.vector_store %arg9[%c0_28, %c0_29, %c0_30], %83 {strides = array<i32>} : memref<1x8x1xf32, #tpu.memory_space<vmem>>, vector<1x8x1xf32>,
    %c0_31 = arith.constant 0 : index
    %c0_32 = arith.constant 0 : index
    %c0_33 = arith.constant 0 : index
    %84 = vector.load %arg7[%c0_31, %c0_32, %c0_33] : memref<1x8x1024xf32, #tpu.memory_space<vmem>>, vector<1x8x1024xf32>
    %85 = vector.shape_cast %84 : vector<1x8x1024xf32> to vector<8x1024xf32>
    %86 = vector.shape_cast %66 : vector<8x1024xf32> to vector<1x8x1024xf32>
    tpu.vector_store %arg7[%c0_31, %c0_32, %c0_33], %86 {strides = array<i32>} : memref<1x8x1024xf32, #tpu.memory_space<vmem>>, vector<1x8x1024xf32>,
    return
  }
  func.func @transform_0(%arg0: i32) -> (i32, i32, i32) {
    %c0_i32 = arith.constant 0 : i32
    %c0_i32_0 = arith.constant 0 : i32
    %c0_i32_1 = arith.constant 0 : i32
    return %arg0, %c0_i32, %c0_i32_0 : i32, i32, i32
  }
  func.func @transform_1(%arg0: i32) -> (i32, i32) {
    %c0_i32 = arith.constant 0 : i32
    %c0_i32_0 = arith.constant 0 : i32
    %c0_i32_1 = arith.constant 0 : i32
    return %c0_i32, %c0_i32_0 : i32, i32
  }
  func.func @transform_2(%arg0: i32) -> (i32, i32) {
    %c0_i32 = arith.constant 0 : i32
    %c0_i32_0 = arith.constant 0 : i32
    %c0_i32_1 = arith.constant 0 : i32
    return %c0_i32, %c0_i32_0 : i32, i32
  }
  func.func @transform_3(%arg0: i32) -> (i32, i32) {
    %c0_i32 = arith.constant 0 : i32
    %c0_i32_0 = arith.constant 0 : i32
    %c0_i32_1 = arith.constant 0 : i32
    return %c0_i32, %c0_i32_0 : i32, i32
  }
  func.func @transform_4(%arg0: i32) -> (i32, i32) {
    %c0_i32 = arith.constant 0 : i32
    %c0_i32_0 = arith.constant 0 : i32
    %c0_i32_1 = arith.constant 0 : i32
    return %c0_i32, %c0_i32_0 : i32, i32
  }
  func.func @transform_5(%arg0: i32) -> (i32, i32) {
    %c0_i32 = arith.constant 0 : i32
    %c0_i32_0 = arith.constant 0 : i32
    %c0_i32_1 = arith.constant 0 : i32
    return %c0_i32, %c0_i32_0 : i32, i32
  }
  func.func @transform_6(%arg0: i32) -> (i32, i32, i32) {
    %c0_i32 = arith.constant 0 : i32
    %c0_i32_0 = arith.constant 0 : i32
    %c0_i32_1 = arith.constant 0 : i32
    return %arg0, %c0_i32, %c0_i32_0 : i32, i32, i32
  }
  func.func @transform_7(%arg0: i32) -> (i32, i32, i32) {
    %c0_i32 = arith.constant 0 : i32
    %c0_i32_0 = arith.constant 0 : i32
    %c0_i32_1 = arith.constant 0 : i32
    return %arg0, %c0_i32, %c0_i32_0 : i32, i32, i32
  }
  func.func @transform_8(%arg0: i32) -> (i32, i32, i32) {
    %c0_i32 = arith.constant 0 : i32
    %c0_i32_0 = arith.constant 0 : i32
    %c0_i32_1 = arith.constant 0 : i32
    return %arg0, %c0_i32, %c0_i32_0 : i32, i32, i32
  }
}

module attributes {stable_mosaic.version = 11 : i64} {
  func.func @_conv_bn_stats_kernel(%arg0: i32, %arg1: memref<1x8x1024xf32, #tpu.memory_space<vmem>>, %arg2: memref<8x1xf32, #tpu.memory_space<vmem>>, %arg3: memref<8x1xf32, #tpu.memory_space<vmem>>, %arg4: memref<9x1024xf32, #tpu.memory_space<vmem>>, %arg5: memref<4x72xf32, #tpu.memory_space<vmem>>, %arg6: memref<4x1xf32, #tpu.memory_space<vmem>>, %arg7: memref<1x4x1024xf32, #tpu.memory_space<vmem>>, %arg8: memref<1x4x1xf32, #tpu.memory_space<vmem>>, %arg9: memref<1x4x1xf32, #tpu.memory_space<vmem>>) attributes {dimension_semantics = [#tpu.dimension_semantics<parallel>], iteration_bounds = array<i64: 2>, scalar_prefetch = 0 : i64, scratch_operands = 0 : i64, tpu.core_type = #tpu.core_type<tc>, window_params = [{transform_indices = @transform_0, window_bounds = array<i64: 1, 8, 1024>}, {pipeline_mode = #tpu.pipeline_mode<synchronous>, transform_indices = @transform_1, window_bounds = array<i64: 8, 1>}, {pipeline_mode = #tpu.pipeline_mode<synchronous>, transform_indices = @transform_2, window_bounds = array<i64: 8, 1>}, {pipeline_mode = #tpu.pipeline_mode<synchronous>, transform_indices = @transform_3, window_bounds = array<i64: 9, 1024>}, {pipeline_mode = #tpu.pipeline_mode<synchronous>, transform_indices = @transform_4, window_bounds = array<i64: 4, 72>}, {pipeline_mode = #tpu.pipeline_mode<synchronous>, transform_indices = @transform_5, window_bounds = array<i64: 4, 1>}, {transform_indices = @transform_6, window_bounds = array<i64: 1, 4, 1024>}, {transform_indices = @transform_7, window_bounds = array<i64: 1, 4, 1>}, {transform_indices = @transform_8, window_bounds = array<i64: 1, 4, 1>}]} {
    %c0 = arith.constant 0 : index
    %c0_0 = arith.constant 0 : index
    %c0_1 = arith.constant 0 : index
    %0 = vector.load %arg1[%c0, %c0_0, %c0_1] : memref<1x8x1024xf32, #tpu.memory_space<vmem>>, vector<1x8x1024xf32>
    %1 = vector.shape_cast %0 : vector<1x8x1024xf32> to vector<8x1024xf32>
    %c0_2 = arith.constant 0 : index
    %c0_3 = arith.constant 0 : index
    %2 = vector.load %arg2[%c0_2, %c0_3] : memref<8x1xf32, #tpu.memory_space<vmem>>, vector<8x1xf32>
    %3 = vector.broadcast %2 : vector<8x1xf32> to vector<8x1024xf32>
    %4 = arith.mulf %1, %3 : vector<8x1024xf32>
    %c0_4 = arith.constant 0 : index
    %c0_5 = arith.constant 0 : index
    %5 = vector.load %arg3[%c0_4, %c0_5] : memref<8x1xf32, #tpu.memory_space<vmem>>, vector<8x1xf32>
    %6 = vector.broadcast %5 : vector<8x1xf32> to vector<8x1024xf32>
    %7 = arith.addf %4, %6 : vector<8x1024xf32>
    %cst = arith.constant 0.000000e+00 : f32
    %8 = vector.broadcast %cst : f32 to vector<8x1024xf32>
    %9 = arith.maximumf %7, %8 : vector<8x1024xf32>
    %10 = vector.extract_strided_slice %9 {offsets = [0, 991], sizes = [8, 33], strides = [1, 1]} : vector<8x1024xf32> to vector<8x33xf32>
    %11 = vector.extract_strided_slice %9 {offsets = [0, 0], sizes = [8, 991], strides = [1, 1]} : vector<8x1024xf32> to vector<8x991xf32>
    %12 = tpu.concatenate %10, %11 in 1 : vector<8x33xf32>, vector<8x991xf32> -> vector<8x1024xf32>
    %c0_6 = arith.constant 0 : index
    %c0_7 = arith.constant 0 : index
    %13 = vector.load %arg4[%c0_6, %c0_7] : memref<9x1024xf32, #tpu.memory_space<vmem>>, vector<1x1024xf32>
    %14 = vector.broadcast %13 : vector<1x1024xf32> to vector<8x1024xf32>
    %15 = arith.mulf %12, %14 : vector<8x1024xf32>
    %16 = vector.extract_strided_slice %9 {offsets = [0, 992], sizes = [8, 32], strides = [1, 1]} : vector<8x1024xf32> to vector<8x32xf32>
    %17 = vector.extract_strided_slice %9 {offsets = [0, 0], sizes = [8, 992], strides = [1, 1]} : vector<8x1024xf32> to vector<8x992xf32>
    %18 = tpu.concatenate %16, %17 in 1 : vector<8x32xf32>, vector<8x992xf32> -> vector<8x1024xf32>
    %c1 = arith.constant 1 : index
    %c0_8 = arith.constant 0 : index
    %19 = vector.load %arg4[%c1, %c0_8] : memref<9x1024xf32, #tpu.memory_space<vmem>>, vector<1x1024xf32>
    %20 = vector.broadcast %19 : vector<1x1024xf32> to vector<8x1024xf32>
    %21 = arith.mulf %18, %20 : vector<8x1024xf32>
    %22 = vector.extract_strided_slice %9 {offsets = [0, 993], sizes = [8, 31], strides = [1, 1]} : vector<8x1024xf32> to vector<8x31xf32>
    %23 = vector.extract_strided_slice %9 {offsets = [0, 0], sizes = [8, 993], strides = [1, 1]} : vector<8x1024xf32> to vector<8x993xf32>
    %24 = tpu.concatenate %22, %23 in 1 : vector<8x31xf32>, vector<8x993xf32> -> vector<8x1024xf32>
    %c2 = arith.constant 2 : index
    %c0_9 = arith.constant 0 : index
    %25 = vector.load %arg4[%c2, %c0_9] : memref<9x1024xf32, #tpu.memory_space<vmem>>, vector<1x1024xf32>
    %26 = vector.broadcast %25 : vector<1x1024xf32> to vector<8x1024xf32>
    %27 = arith.mulf %24, %26 : vector<8x1024xf32>
    %28 = vector.extract_strided_slice %9 {offsets = [0, 1023], sizes = [8, 1], strides = [1, 1]} : vector<8x1024xf32> to vector<8x1xf32>
    %29 = vector.extract_strided_slice %9 {offsets = [0, 0], sizes = [8, 1023], strides = [1, 1]} : vector<8x1024xf32> to vector<8x1023xf32>
    %30 = tpu.concatenate %28, %29 in 1 : vector<8x1xf32>, vector<8x1023xf32> -> vector<8x1024xf32>
    %c3 = arith.constant 3 : index
    %c0_10 = arith.constant 0 : index
    %31 = vector.load %arg4[%c3, %c0_10] : memref<9x1024xf32, #tpu.memory_space<vmem>>, vector<1x1024xf32>
    %32 = vector.broadcast %31 : vector<1x1024xf32> to vector<8x1024xf32>
    %33 = arith.mulf %30, %32 : vector<8x1024xf32>
    %c4 = arith.constant 4 : index
    %c0_11 = arith.constant 0 : index
    %34 = vector.load %arg4[%c4, %c0_11] : memref<9x1024xf32, #tpu.memory_space<vmem>>, vector<1x1024xf32>
    %35 = vector.broadcast %34 : vector<1x1024xf32> to vector<8x1024xf32>
    %36 = arith.mulf %9, %35 : vector<8x1024xf32>
    %37 = vector.extract_strided_slice %9 {offsets = [0, 1], sizes = [8, 1023], strides = [1, 1]} : vector<8x1024xf32> to vector<8x1023xf32>
    %38 = vector.extract_strided_slice %9 {offsets = [0, 0], sizes = [8, 1], strides = [1, 1]} : vector<8x1024xf32> to vector<8x1xf32>
    %39 = tpu.concatenate %37, %38 in 1 : vector<8x1023xf32>, vector<8x1xf32> -> vector<8x1024xf32>
    %c5 = arith.constant 5 : index
    %c0_12 = arith.constant 0 : index
    %40 = vector.load %arg4[%c5, %c0_12] : memref<9x1024xf32, #tpu.memory_space<vmem>>, vector<1x1024xf32>
    %41 = vector.broadcast %40 : vector<1x1024xf32> to vector<8x1024xf32>
    %42 = arith.mulf %39, %41 : vector<8x1024xf32>
    %43 = vector.extract_strided_slice %9 {offsets = [0, 31], sizes = [8, 993], strides = [1, 1]} : vector<8x1024xf32> to vector<8x993xf32>
    %44 = vector.extract_strided_slice %9 {offsets = [0, 0], sizes = [8, 31], strides = [1, 1]} : vector<8x1024xf32> to vector<8x31xf32>
    %45 = tpu.concatenate %43, %44 in 1 : vector<8x993xf32>, vector<8x31xf32> -> vector<8x1024xf32>
    %c6 = arith.constant 6 : index
    %c0_13 = arith.constant 0 : index
    %46 = vector.load %arg4[%c6, %c0_13] : memref<9x1024xf32, #tpu.memory_space<vmem>>, vector<1x1024xf32>
    %47 = vector.broadcast %46 : vector<1x1024xf32> to vector<8x1024xf32>
    %48 = arith.mulf %45, %47 : vector<8x1024xf32>
    %49 = vector.extract_strided_slice %9 {offsets = [0, 32], sizes = [8, 992], strides = [1, 1]} : vector<8x1024xf32> to vector<8x992xf32>
    %50 = vector.extract_strided_slice %9 {offsets = [0, 0], sizes = [8, 32], strides = [1, 1]} : vector<8x1024xf32> to vector<8x32xf32>
    %51 = tpu.concatenate %49, %50 in 1 : vector<8x992xf32>, vector<8x32xf32> -> vector<8x1024xf32>
    %c7 = arith.constant 7 : index
    %c0_14 = arith.constant 0 : index
    %52 = vector.load %arg4[%c7, %c0_14] : memref<9x1024xf32, #tpu.memory_space<vmem>>, vector<1x1024xf32>
    %53 = vector.broadcast %52 : vector<1x1024xf32> to vector<8x1024xf32>
    %54 = arith.mulf %51, %53 : vector<8x1024xf32>
    %55 = vector.extract_strided_slice %9 {offsets = [0, 33], sizes = [8, 991], strides = [1, 1]} : vector<8x1024xf32> to vector<8x991xf32>
    %56 = vector.extract_strided_slice %9 {offsets = [0, 0], sizes = [8, 33], strides = [1, 1]} : vector<8x1024xf32> to vector<8x33xf32>
    %57 = tpu.concatenate %55, %56 in 1 : vector<8x991xf32>, vector<8x33xf32> -> vector<8x1024xf32>
    %c8 = arith.constant 8 : index
    %c0_15 = arith.constant 0 : index
    %58 = vector.load %arg4[%c8, %c0_15] : memref<9x1024xf32, #tpu.memory_space<vmem>>, vector<1x1024xf32>
    %59 = vector.broadcast %58 : vector<1x1024xf32> to vector<8x1024xf32>
    %60 = arith.mulf %57, %59 : vector<8x1024xf32>
    %61 = tpu.concatenate %15, %21, %27, %33, %36, %42, %48, %54, %60 in 0 : vector<8x1024xf32>, vector<8x1024xf32>, vector<8x1024xf32>, vector<8x1024xf32>, vector<8x1024xf32>, vector<8x1024xf32>, vector<8x1024xf32>, vector<8x1024xf32>, vector<8x1024xf32> -> vector<72x1024xf32>
    %c0_16 = arith.constant 0 : index
    %c0_17 = arith.constant 0 : index
    %62 = vector.load %arg5[%c0_16, %c0_17] : memref<4x72xf32, #tpu.memory_space<vmem>>, vector<4x72xf32>
    %cst_18 = arith.constant dense<0.000000e+00> : vector<4x1024xf32>
    %63 = tpu.matmul %62, %61, %cst_18 {dimension_numbers = #tpu.dot_dimension_numbers<[1], [0], [0], [1], [0, 0, 1, 1], [], []>} : vector<4x72xf32>, vector<72x1024xf32>, vector<4x1024xf32> -> vector<4x1024xf32>
    %c0_19 = arith.constant 0 : index
    %c0_20 = arith.constant 0 : index
    %64 = vector.load %arg6[%c0_19, %c0_20] : memref<4x1xf32, #tpu.memory_space<vmem>>, vector<4x1xf32>
    %65 = vector.broadcast %64 : vector<4x1xf32> to vector<4x1024xf32>
    %66 = arith.addf %63, %65 : vector<4x1024xf32>
    %cst_21 = arith.constant dense<0.000000e+00> : vector<4xf32>
    %67 = vector.multi_reduction <add>, %66, %cst_21 [1] : vector<4x1024xf32> to vector<4xf32>
    %68 = vector.shape_cast %67 : vector<4xf32> to vector<4x1xf32>
    %cst_22 = arith.constant 1.024000e+03 : f32
    %69 = vector.broadcast %cst_22 : f32 to vector<4x1xf32>
    %70 = arith.divf %68, %69 : vector<4x1xf32>
    %71 = vector.broadcast %70 : vector<4x1xf32> to vector<4x1024xf32>
    %72 = arith.subf %66, %71 : vector<4x1024xf32>
    %73 = arith.mulf %72, %72 : vector<4x1024xf32>
    %cst_23 = arith.constant dense<0.000000e+00> : vector<4xf32>
    %74 = vector.multi_reduction <add>, %73, %cst_23 [1] : vector<4x1024xf32> to vector<4xf32>
    %75 = vector.shape_cast %74 : vector<4xf32> to vector<4x1xf32>
    %cst_24 = arith.constant 1.024000e+03 : f32
    %76 = vector.broadcast %cst_24 : f32 to vector<4x1xf32>
    %77 = arith.divf %75, %76 : vector<4x1xf32>
    %c0_25 = arith.constant 0 : index
    %c0_26 = arith.constant 0 : index
    %c0_27 = arith.constant 0 : index
    %78 = vector.load %arg8[%c0_25, %c0_26, %c0_27] : memref<1x4x1xf32, #tpu.memory_space<vmem>>, vector<1x4x1xf32>
    %79 = vector.shape_cast %78 : vector<1x4x1xf32> to vector<4x1xf32>
    %80 = vector.shape_cast %70 : vector<4x1xf32> to vector<1x4x1xf32>
    tpu.vector_store %arg8[%c0_25, %c0_26, %c0_27], %80 {strides = array<i32>} : memref<1x4x1xf32, #tpu.memory_space<vmem>>, vector<1x4x1xf32>,
    %c0_28 = arith.constant 0 : index
    %c0_29 = arith.constant 0 : index
    %c0_30 = arith.constant 0 : index
    %81 = vector.load %arg9[%c0_28, %c0_29, %c0_30] : memref<1x4x1xf32, #tpu.memory_space<vmem>>, vector<1x4x1xf32>
    %82 = vector.shape_cast %81 : vector<1x4x1xf32> to vector<4x1xf32>
    %83 = vector.shape_cast %77 : vector<4x1xf32> to vector<1x4x1xf32>
    tpu.vector_store %arg9[%c0_28, %c0_29, %c0_30], %83 {strides = array<i32>} : memref<1x4x1xf32, #tpu.memory_space<vmem>>, vector<1x4x1xf32>,
    %c0_31 = arith.constant 0 : index
    %c0_32 = arith.constant 0 : index
    %c0_33 = arith.constant 0 : index
    %84 = vector.load %arg7[%c0_31, %c0_32, %c0_33] : memref<1x4x1024xf32, #tpu.memory_space<vmem>>, vector<1x4x1024xf32>
    %85 = vector.shape_cast %84 : vector<1x4x1024xf32> to vector<4x1024xf32>
    %86 = vector.shape_cast %66 : vector<4x1024xf32> to vector<1x4x1024xf32>
    tpu.vector_store %arg7[%c0_31, %c0_32, %c0_33], %86 {strides = array<i32>} : memref<1x4x1024xf32, #tpu.memory_space<vmem>>, vector<1x4x1024xf32>,
    return
  }
  func.func @transform_0(%arg0: i32) -> (i32, i32, i32) {
    %c0_i32 = arith.constant 0 : i32
    %c0_i32_0 = arith.constant 0 : i32
    %c0_i32_1 = arith.constant 0 : i32
    return %arg0, %c0_i32, %c0_i32_0 : i32, i32, i32
  }
  func.func @transform_1(%arg0: i32) -> (i32, i32) {
    %c0_i32 = arith.constant 0 : i32
    %c0_i32_0 = arith.constant 0 : i32
    %c0_i32_1 = arith.constant 0 : i32
    return %c0_i32, %c0_i32_0 : i32, i32
  }
  func.func @transform_2(%arg0: i32) -> (i32, i32) {
    %c0_i32 = arith.constant 0 : i32
    %c0_i32_0 = arith.constant 0 : i32
    %c0_i32_1 = arith.constant 0 : i32
    return %c0_i32, %c0_i32_0 : i32, i32
  }
  func.func @transform_3(%arg0: i32) -> (i32, i32) {
    %c0_i32 = arith.constant 0 : i32
    %c0_i32_0 = arith.constant 0 : i32
    %c0_i32_1 = arith.constant 0 : i32
    return %c0_i32, %c0_i32_0 : i32, i32
  }
  func.func @transform_4(%arg0: i32) -> (i32, i32) {
    %c0_i32 = arith.constant 0 : i32
    %c0_i32_0 = arith.constant 0 : i32
    %c0_i32_1 = arith.constant 0 : i32
    return %c0_i32, %c0_i32_0 : i32, i32
  }
  func.func @transform_5(%arg0: i32) -> (i32, i32) {
    %c0_i32 = arith.constant 0 : i32
    %c0_i32_0 = arith.constant 0 : i32
    %c0_i32_1 = arith.constant 0 : i32
    return %c0_i32, %c0_i32_0 : i32, i32
  }
  func.func @transform_6(%arg0: i32) -> (i32, i32, i32) {
    %c0_i32 = arith.constant 0 : i32
    %c0_i32_0 = arith.constant 0 : i32
    %c0_i32_1 = arith.constant 0 : i32
    return %arg0, %c0_i32, %c0_i32_0 : i32, i32, i32
  }
  func.func @transform_7(%arg0: i32) -> (i32, i32, i32) {
    %c0_i32 = arith.constant 0 : i32
    %c0_i32_0 = arith.constant 0 : i32
    %c0_i32_1 = arith.constant 0 : i32
    return %arg0, %c0_i32, %c0_i32_0 : i32, i32, i32
  }
  func.func @transform_8(%arg0: i32) -> (i32, i32, i32) {
    %c0_i32 = arith.constant 0 : i32
    %c0_i32_0 = arith.constant 0 : i32
    %c0_i32_1 = arith.constant 0 : i32
    return %arg0, %c0_i32, %c0_i32_0 : i32, i32, i32
  }
}

module attributes {stable_mosaic.version = 11 : i64} {
  func.func @_bn_relu_kernel(%arg0: i32, %arg1: memref<1x4x1024xf32, #tpu.memory_space<vmem>>, %arg2: memref<4x1xf32, #tpu.memory_space<vmem>>, %arg3: memref<4x1xf32, #tpu.memory_space<vmem>>, %arg4: memref<1x4x1024xf32, #tpu.memory_space<vmem>>) attributes {dimension_semantics = [#tpu.dimension_semantics<parallel>], iteration_bounds = array<i64: 2>, scalar_prefetch = 0 : i64, scratch_operands = 0 : i64, tpu.core_type = #tpu.core_type<tc>, window_params = [{transform_indices = @transform_0, window_bounds = array<i64: 1, 4, 1024>}, {pipeline_mode = #tpu.pipeline_mode<synchronous>, transform_indices = @transform_1, window_bounds = array<i64: 4, 1>}, {pipeline_mode = #tpu.pipeline_mode<synchronous>, transform_indices = @transform_2, window_bounds = array<i64: 4, 1>}, {transform_indices = @transform_3, window_bounds = array<i64: 1, 4, 1024>}]} {
    %c0 = arith.constant 0 : index
    %c0_0 = arith.constant 0 : index
    %c0_1 = arith.constant 0 : index
    %0 = vector.load %arg1[%c0, %c0_0, %c0_1] : memref<1x4x1024xf32, #tpu.memory_space<vmem>>, vector<1x4x1024xf32>
    %1 = vector.shape_cast %0 : vector<1x4x1024xf32> to vector<4x1024xf32>
    %c0_2 = arith.constant 0 : index
    %c0_3 = arith.constant 0 : index
    %2 = vector.load %arg2[%c0_2, %c0_3] : memref<4x1xf32, #tpu.memory_space<vmem>>, vector<4x1xf32>
    %3 = vector.broadcast %2 : vector<4x1xf32> to vector<4x1024xf32>
    %4 = arith.mulf %1, %3 : vector<4x1024xf32>
    %c0_4 = arith.constant 0 : index
    %c0_5 = arith.constant 0 : index
    %5 = vector.load %arg3[%c0_4, %c0_5] : memref<4x1xf32, #tpu.memory_space<vmem>>, vector<4x1xf32>
    %6 = vector.broadcast %5 : vector<4x1xf32> to vector<4x1024xf32>
    %7 = arith.addf %4, %6 : vector<4x1024xf32>
    %cst = arith.constant 0.000000e+00 : f32
    %8 = vector.broadcast %cst : f32 to vector<4x1024xf32>
    %9 = arith.maximumf %7, %8 : vector<4x1024xf32>
    %c0_6 = arith.constant 0 : index
    %c0_7 = arith.constant 0 : index
    %c0_8 = arith.constant 0 : index
    %10 = vector.load %arg4[%c0_6, %c0_7, %c0_8] : memref<1x4x1024xf32, #tpu.memory_space<vmem>>, vector<1x4x1024xf32>
    %11 = vector.shape_cast %10 : vector<1x4x1024xf32> to vector<4x1024xf32>
    %12 = vector.shape_cast %9 : vector<4x1024xf32> to vector<1x4x1024xf32>
    tpu.vector_store %arg4[%c0_6, %c0_7, %c0_8], %12 {strides = array<i32>} : memref<1x4x1024xf32, #tpu.memory_space<vmem>>, vector<1x4x1024xf32>,
    return
  }
  func.func @transform_0(%arg0: i32) -> (i32, i32, i32) {
    %c0_i32 = arith.constant 0 : i32
    %c0_i32_0 = arith.constant 0 : i32
    %c0_i32_1 = arith.constant 0 : i32
    return %arg0, %c0_i32, %c0_i32_0 : i32, i32, i32
  }
  func.func @transform_1(%arg0: i32) -> (i32, i32) {
    %c0_i32 = arith.constant 0 : i32
    %c0_i32_0 = arith.constant 0 : i32
    %c0_i32_1 = arith.constant 0 : i32
    return %c0_i32, %c0_i32_0 : i32, i32
  }
  func.func @transform_2(%arg0: i32) -> (i32, i32) {
    %c0_i32 = arith.constant 0 : i32
    %c0_i32_0 = arith.constant 0 : i32
    %c0_i32_1 = arith.constant 0 : i32
    return %c0_i32, %c0_i32_0 : i32, i32
  }
  func.func @transform_3(%arg0: i32) -> (i32, i32, i32) {
    %c0_i32 = arith.constant 0 : i32
    %c0_i32_0 = arith.constant 0 : i32
    %c0_i32_1 = arith.constant 0 : i32
    return %arg0, %c0_i32, %c0_i32_0 : i32, i32, i32
  }
}

</mosaic_0001>

<llo_original>
// kernel: tile.8
$region0: #{tile.8}
  #allocation0 [shape = 's32[1]{0}', space=sflag, size = 0x4, scoped, tag = 'scoped memory for tile.8']
  %s0 = inlined_call_operand.vmem [shape: f32[8], index: 0, kind: input, shape index: {}]
  %s1 = inlined_call_operand.vmem [shape: f32[4,8], index: 1, kind: output, shape index: {}]
  // Predicated region
  $region2: #{tile.8} parent=0 // pred_check
    _
  $region3: #{tile.8} parent=0 // pred_check_branch
    %3 = sbr.rel (0) target = $region5
  $region4: #{tile.8} parent=0 // pred_region
    _
  $region5: #{tile.8} parent=0 // pred_fallthru
    _
  %v4 = vld [vmem:[%s0] ss:$0 sm:$0xff]
  %5 = vst [vmem:[%s1] sm:$0xf] %v4

// kernel: tile.0
$region0: #{tile.0}
  %s0 = inlined_call_operand.vmem [shape: f32[4,8], index: 0, kind: input, shape index: {}]
  %s1 = inlined_call_operand.vmem [shape: f32[32,1], index: 1, kind: output, shape index: {}]
  $region1: #{tile.0} parent=0
    #allocation0 [shape = 'u8[4096]{0}', space=vmem, size = 0x1000, scoped, tag = 'scoped mem for input reshape']
    %s3 = ssub.s32 16, 1
    %v4 = vld [vmem:[%s0] sm:%s3]
    %5 = vst [vmem:[#allocation0] sm:%s3] %v4
    %v6 = vld [vmem:[#allocation0] sm:$0xf]
    %vm7 = vcmask 7168
    %8 = vst.msk [vmem:[%s1] ss:$8 sm:$0xf] %vm7, %v6
    %v9 = vld [vmem:[#allocation0] sm:$0xf]
    %10 = vrot.lane.b32.xlu0 %v9, 127
    %v11 = vpop.permute.xlu0 %10
    %vm12 = vcmask 7168
    %s13 = scalar_lea.vmem %s1, 1
    %14 = vst.msk [vmem:[%s13] ss:$8 sm:$0xf] %vm12, %v11
    %v15 = vld [vmem:[#allocation0] sm:$0xf]
    %16 = vrot.lane.b32.xlu0 %v15, 126
    %v17 = vpop.permute.xlu0 %16
    %vm18 = vcmask 7168
    %s19 = scalar_lea.vmem %s1, 2
    %20 = vst.msk [vmem:[%s19] ss:$8 sm:$0xf] %vm18, %v17
    %v21 = vld [vmem:[#allocation0] sm:$0xf]
    %22 = vrot.lane.b32.xlu0 %v21, 125
    %v23 = vpop.permute.xlu0 %22
    %vm24 = vcmask 7168
    %s25 = scalar_lea.vmem %s1, 3
    %26 = vst.msk [vmem:[%s25] ss:$8 sm:$0xf] %vm24, %v23
    %v27 = vld [vmem:[#allocation0] sm:$0xf]
    %28 = vrot.lane.b32.xlu0 %v27, 124
    %v29 = vpop.permute.xlu0 %28
    %vm30 = vcmask 7168
    %s31 = scalar_lea.vmem %s1, 4
    %32 = vst.msk [vmem:[%s31] ss:$8 sm:$0xf] %vm30, %v29
    %v33 = vld [vmem:[#allocation0] sm:$0xf]
    %34 = vrot.lane.b32.xlu0 %v33, 123
    %v35 = vpop.permute.xlu0 %34
    %vm36 = vcmask 7168
    %s37 = scalar_lea.vmem %s1, 5
    %38 = vst.msk [vmem:[%s37] ss:$8 sm:$0xf] %vm36, %v35
    %v39 = vld [vmem:[#allocation0] sm:$0xf]
    %40 = vrot.lane.b32.xlu0 %v39, 122
    %v41 = vpop.permute.xlu0 %40
    %vm42 = vcmask 7168
    %s43 = scalar_lea.vmem %s1, 6
    %44 = vst.msk [vmem:[%s43] ss:$8 sm:$0xf] %vm42, %v41
    %v45 = vld [vmem:[#allocation0] sm:$0xf]
    %46 = vrot.lane.b32.xlu0 %v45, 121
    %v47 = vpop.permute.xlu0 %46
    %vm48 = vcmask 7168
    %s49 = scalar_lea.vmem %s1, 7
    %50 = vst.msk [vmem:[%s49] ss:$8 sm:$0xf] %vm48, %v47

// kernel: disk_up_forward.4
$region0: #{disk_up_forward.4}
  #allocation0 [shape = 'u32[]', space=smem, size = 0x4, offset = 0x4, fixed_abs, tag = 'smem constant byte address 0x4 - core index']
  #allocation1 [shape = 'u32[72,128]{1,0:T(1,128)}', space=vmem, size = 0x9000, scoped, tag = 'internal scratch']
  %s0 = inlined_call_operand.vmem [shape: f32[2,4,256], index: 0, kind: input, shape index: {}]
  %s1 = inlined_call_operand.vmem [shape: f32[4,256], index: 1, kind: input, shape index: {}]
  %s2 = inlined_call_operand.vmem [shape: f32[32,16], index: 2, kind: input, shape index: {}]
  %s3 = inlined_call_operand.vmem [shape: f32[32,1], index: 3, kind: input, shape index: {}]
  %s4 = inlined_call_operand.vmem [shape: f32[2,32,256], index: 4, kind: output, shape index: {0}]
  %s5 = inlined_call_operand.vmem [shape: f32[2,32,1], index: 5, kind: output, shape index: {1}]
  %s6 = inlined_call_operand.vmem [shape: f32[2,32,1], index: 6, kind: output, shape index: {2}]
  %7 = xla_tuple %s4, %s5, %s6
  %s8 = sld [smem:[#allocation0]]
  $region65: #{disk_up_forward.4} parent=0
    _
  %s10 = ssub.s32 1, %s8
  %s11 = scalar_select 0, %s10, %s8
  loop: start=0, step=1, limit=4
  $region2: #{disk_up_forward.4} parent=0 // loop_pre_header
    _
  $region3: #{disk_up_forward.4} parent=0 // loop_header
    %s13 = sphi 0, %s17
    %p14 = scmp.ge.s32.totalorder %s13, 4
    %s23 = sphi 0, %s25
    %s26 = sphi 0, %s23
    %s27 = sphi 0, %s26
    %s43 = sphi 0, %s27
    %s47 = sphi 0, %s47
    %s49 = sphi 0, %s47
    %s50 = sphi 0, %s49
    %s64 = sphi 0, %s50
    %s68 = sphi 0, %s68
    %s70 = sphi 0, %s68
    %s71 = sphi 0, %s70
    %s85 = sphi 0, %s71
    %s89 = sphi 0, %s89
    %s91 = sphi 0, %s89
    %s92 = sphi 0, %s91
    %s106 = sphi 0, %s92
    %s112 = sphi 0, %s114
    %s115 = sphi 0, %s112
    %s116 = sphi 0, %s115
    %s132 = sphi 0, %s116
    %s138 = sphi 0, %s140
    %s141 = sphi 0, %s138
    %s142 = sphi 0, %s141
    %s158 = sphi 0, %s142
    %s164 = sphi 0, %s166
    %s167 = sphi 0, %s164
    %s168 = sphi 0, %s167
    %s184 = sphi 0, %s168
  $region4: #{disk_up_forward.4} parent=0 // loop_header_branch
    %16 = sbr.rel (%p14) target = $region8
  $region5: #{disk_up_forward.4} parent=0 // loop_body
    %s18 = ssub.s32 %s13, 1
    %s19 = ssub.s32 %s13, 2
    %s20 = sadd.s32 %s13, 1
    %s21 = ssub.s32 %s13, %s20
    %p22 = scmp.eq.s32.totalorder %s21, 0
    %s24 = sadd.s32 %s23, 1
    %s25 = scalar_select %p22, %s23, %s24
    %p28 = pneg %p22
    %p29 = scmp.eq.s32.totalorder %s13, 1
    %p30 = por %p28, %p29
    %p31 = scmp.ne.s32.totalorder %s23, %s26
    %p32 = scmp.eq.s32.totalorder %s13, 0
    %p33 = por %p31, %p32
    %p34 = scmp.ne.s32.totalorder %s23, %s26
    %p35 = scmp.eq.s32.totalorder %s18, 1
    %p36 = por %p34, %p35
    %p37 = scmp.ne.s32.totalorder %s26, %s27
    %p38 = scmp.eq.s32.totalorder %s18, 0
    %p39 = por %p37, %p38
    %p40 = scmp.ne.s32.totalorder %s26, %s27
    %p41 = scmp.eq.s32.totalorder %s19, 1
    %p42 = por %p40, %p41
    %p44 = scmp.ne.s32.totalorder %s27, %s43
    %p45 = scmp.eq.s32.totalorder %s19, 0
    %p46 = por %p44, %p45
    %s48 = sadd.s32 %s47, 1
    %p51 = scmp.eq.s32.totalorder %s13, 1
    %p52 = scmp.ne.s32.totalorder %s47, %s49
    %p53 = scmp.eq.s32.totalorder %s13, 0
    %p54 = por %p52, %p53
    %p55 = scmp.ne.s32.totalorder %s47, %s49
    %p56 = scmp.eq.s32.totalorder %s18, 1
    %p57 = por %p55, %p56
    %p58 = scmp.ne.s32.totalorder %s49, %s50
    %p59 = scmp.eq.s32.totalorder %s18, 0
    %p60 = por %p58, %p59
    %p61 = scmp.ne.s32.totalorder %s49, %s50
    %p62 = scmp.eq.s32.totalorder %s19, 1
    %p63 = por %p61, %p62
    %p65 = scmp.ne.s32.totalorder %s50, %s64
    %p66 = scmp.eq.s32.totalorder %s19, 0
    %p67 = por %p65, %p66
    %s69 = sadd.s32 %s68, 1
    %p72 = scmp.eq.s32.totalorder %s13, 1
    %p73 = scmp.ne.s32.totalorder %s68, %s70
    %p74 = scmp.eq.s32.totalorder %s13, 0
    %p75 = por %p73, %p74
    %p76 = scmp.ne.s32.totalorder %s68, %s70
    %p77 = scmp.eq.s32.totalorder %s18, 1
    %p78 = por %p76, %p77
    %p79 = scmp.ne.s32.totalorder %s70, %s71
    %p80 = scmp.eq.s32.totalorder %s18, 0
    %p81 = por %p79, %p80
    %p82 = scmp.ne.s32.totalorder %s70, %s71
    %p83 = scmp.eq.s32.totalorder %s19, 1
    %p84 = por %p82, %p83
    %p86 = scmp.ne.s32.totalorder %s71, %s85
    %p87 = scmp.eq.s32.totalorder %s19, 0
    %p88 = por %p86, %p87
    %s90 = sadd.s32 %s89, 1
    %p93 = scmp.eq.s32.totalorder %s13, 1
    %p94 = scmp.ne.s32.totalorder %s89, %s91
    %p95 = scmp.eq.s32.totalorder %s13, 0
    %p96 = por %p94, %p95
    %p97 = scmp.ne.s32.totalorder %s89, %s91
    %p98 = scmp.eq.s32.totalorder %s18, 1
    %p99 = por %p97, %p98
    %p100 = scmp.ne.s32.totalorder %s91, %s92
    %p101 = scmp.eq.s32.totalorder %s18, 0
    %p102 = por %p100, %p101
    %p103 = scmp.ne.s32.totalorder %s91, %s92
    %p104 = scmp.eq.s32.totalorder %s19, 1
    %p105 = por %p103, %p104
    %p107 = scmp.ne.s32.totalorder %s92, %s106
    %p108 = scmp.eq.s32.totalorder %s19, 0
    %p109 = por %p107, %p108
    %s110 = ssub.s32 %s13, %s20
    %p111 = scmp.eq.s32.totalorder %s110, 0
    %s113 = sadd.s32 %s112, 1
    %s114 = scalar_select %p111, %s112, %s113
    %p117 = pneg %p111
    %p118 = scmp.eq.s32.totalorder %s13, 1
    %p119 = por %p117, %p118
    %p120 = scmp.ne.s32.totalorder %s112, %s115
    %p121 = scmp.eq.s32.totalorder %s13, 0
    %p122 = por %p120, %p121
    %p123 = scmp.ne.s32.totalorder %s112, %s115
    %p124 = scmp.eq.s32.totalorder %s18, 1
    %p125 = por %p123, %p124
    %p126 = scmp.ne.s32.totalorder %s115, %s116
    %p127 = scmp.eq.s32.totalorder %s18, 0
    %p128 = por %p126, %p127
    %p129 = scmp.ne.s32.totalorder %s115, %s116
    %p130 = scmp.eq.s32.totalorder %s19, 1
    %p131 = por %p129, %p130
    %p133 = scmp.ne.s32.totalorder %s116, %s132
    %p134 = scmp.eq.s32.totalorder %s19, 0
    %p135 = por %p133, %p134
    %s136 = ssub.s32 %s13, %s20
    %p137 = scmp.eq.s32.totalorder %s136, 0
    %s139 = sadd.s32 %s138, 1
    %s140 = scalar_select %p137, %s138, %s139
    %p143 = pneg %p137
    %p144 = scmp.eq.s32.totalorder %s13, 1
    %p145 = por %p143, %p144
    %p146 = scmp.ne.s32.totalorder %s138, %s141
    %p147 = scmp.eq.s32.totalorder %s13, 0
    %p148 = por %p146, %p147
    %p149 = scmp.ne.s32.totalorder %s138, %s141
    %p150 = scmp.eq.s32.totalorder %s18, 1
    %p151 = por %p149, %p150
    %p152 = scmp.ne.s32.totalorder %s141, %s142
    %p153 = scmp.eq.s32.totalorder %s18, 0
    %p154 = por %p152, %p153
    %p155 = scmp.ne.s32.totalorder %s141, %s142
    %p156 = scmp.eq.s32.totalorder %s19, 1
    %p157 = por %p155, %p156
    %p159 = scmp.ne.s32.totalorder %s142, %s158
    %p160 = scmp.eq.s32.totalorder %s19, 0
    %p161 = por %p159, %p160
    %s162 = ssub.s32 %s13, %s20
    %p163 = scmp.eq.s32.totalorder %s162, 0
    %s165 = sadd.s32 %s164, 1
    %s166 = scalar_select %p163, %s164, %s165
    %p169 = pneg %p163
    %p170 = scmp.eq.s32.totalorder %s13, 1
    %p171 = por %p169, %p170
    %p172 = scmp.ne.s32.totalorder %s164, %s167
    %p173 = scmp.eq.s32.totalorder %s13, 0
    %p174 = por %p172, %p173
    %p175 = scmp.ne.s32.totalorder %s164, %s167
    %p176 = scmp.eq.s32.totalorder %s18, 1
    %p177 = por %p175, %p176
    %p178 = scmp.ne.s32.totalorder %s167, %s168
    %p179 = scmp.eq.s32.totalorder %s18, 0
    %p180 = por %p178, %p179
    %p181 = scmp.ne.s32.totalorder %s167, %s168
    %p182 = scmp.eq.s32.totalorder %s19, 1
    %p183 = por %p181, %p182
    %p185 = scmp.ne.s32.totalorder %s168, %s184
    %p186 = scmp.eq.s32.totalorder %s19, 0
    %p187 = por %p185, %p186
    %p188 = scmp.le.s32.totalorder 1, %s13
    %p189 = scmp.lt.s32.totalorder %s13, 3
    %p190 = pnand %p188, %p189
    %p191 = pneg %p190
    // Predicated region
    $region9: #{disk_up_forward.4} parent=5 // pred_check
      _
    $region10: #{disk_up_forward.4} parent=5 // pred_check_branch
      %193 = sbr.rel (%p190) target = $region12
    $region11: #{disk_up_forward.4} parent=5 // pred_region
      %s194 = ssub.s32 %s13, 1
      // Predicated region
      $region13: #{disk_up_forward.4} parent=11 // pred_check
        %p195 = pneg %p60
      $region14: #{disk_up_forward.4} parent=11 // pred_check_branch
        %197 = sbr.rel (%p195) target = $region16
      $region15: #{disk_up_forward.4} parent=11 // pred_region
        _
      $region16: #{disk_up_forward.4} parent=11 // pred_fallthru
        _
      // Predicated region
      $region17: #{disk_up_forward.4} parent=11 // pred_check
        %p198 = pneg %p81
      $region18: #{disk_up_forward.4} parent=11 // pred_check_branch
        %200 = sbr.rel (%p198) target = $region20
      $region19: #{disk_up_forward.4} parent=11 // pred_region
        _
      $region20: #{disk_up_forward.4} parent=11 // pred_fallthru
        _
      // Predicated region
      $region21: #{disk_up_forward.4} parent=11 // pred_check
        %p201 = pneg %p102
      $region22: #{disk_up_forward.4} parent=11 // pred_check_branch
        %203 = sbr.rel (%p201) target = $region24
      $region23: #{disk_up_forward.4} parent=11 // pred_region
        _
      $region24: #{disk_up_forward.4} parent=11 // pred_fallthru
        _
    $region12: #{disk_up_forward.4} parent=5 // pred_fallthru
      _
    %p204 = scmp.lt.s32.totalorder %s13, 2
    // Predicated region
    $region25: #{disk_up_forward.4} parent=5 // pred_check
      %p205 = pneg %p204
    $region26: #{disk_up_forward.4} parent=5 // pred_check_branch
      %207 = sbr.rel (%p205) target = $region28
    $region27: #{disk_up_forward.4} parent=5 // pred_region
      // Predicated region
      $region29: #{disk_up_forward.4} parent=27 // pred_check
        %p208 = pneg %p33
      $region30: #{disk_up_forward.4} parent=27 // pred_check_branch
        %210 = sbr.rel (%p208) target = $region32
      $region31: #{disk_up_forward.4} parent=27 // pred_region
        %p211 = scmp.lt.s32.totalorder %s13, 1
        %s212 = scalar_select %p211, %s13, 1
        %s213 = smul.addr %s212, 2
        %s214 = smul.addr %s213, 4
        %s215 = scalar_lea.vmem %s0, %s214
      $region32: #{disk_up_forward.4} parent=27 // pred_fallthru
        _
    $region28: #{disk_up_forward.4} parent=5 // pred_fallthru
      _
    %p216 = scmp.le.s32.totalorder 1, %s13
    %p217 = scmp.lt.s32.totalorder %s13, 3
    %p218 = pnand %p216, %p217
    %p219 = pneg %p218
    // Predicated region
    $region33: #{disk_up_forward.4} parent=5 // pred_check
      _
    $region34: #{disk_up_forward.4} parent=5 // pred_check_branch
      %221 = sbr.rel (%p218) target = $region36
    $region35: #{disk_up_forward.4} parent=5 // pred_region
      %s222 = ssub.s32 %s13, 1
      %p223 = scmp.lt.s32.totalorder %s18, 1
      %s224 = scalar_select %p223, %s18, 1
      %s225 = smul.addr %s224, 2
      %s226 = smul.addr %s225, 4
      %s227 = scalar_lea.vmem %s0, %s226
      %p228 = pneg %p39
      %p229 = pneg %p36
      %p230 = pneg %p60
      %p231 = pneg %p57
      %p232 = pneg %p81
      %p233 = pneg %p78
      %p234 = pneg %p102
      %p235 = pneg %p99
      %p236 = pneg %p128
      %p237 = pneg %p125
      %p238 = scmp.lt.s32.totalorder %s18, 1
      %s239 = scalar_select %p238, %s18, 1
      %s240 = smul.addr %s239, 8
      %s241 = smul.addr %s240, 8
      %s242 = scalar_lea.vmem %s4, %s241
      %p243 = pneg %p154
      %p244 = pneg %p151
      %p245 = scmp.lt.s32.totalorder %s18, 1
      %s246 = scalar_select %p245, %s18, 1
      %s247 = smul.addr %s246, 4
      %s248 = smul.addr %s247, 8
      %s249 = scalar_lea.vmem %s5, %s248
      %p250 = pneg %p180
      %p251 = pneg %p177
      %p252 = scmp.lt.s32.totalorder %s18, 1
      %s253 = scalar_select %p252, %s18, 1
      %s254 = smul.addr %s253, 4
      %s255 = smul.addr %s254, 8
      %s256 = scalar_lea.vmem %s6, %s255
      %p257 = scmp.lt.s32.totalorder %s18, 1
      %s258 = scalar_select %p257, %s18, 1
      %s259 = smul.addr %s258, 2
      %s260 = smul.addr %s259, 4
      %s261 = scalar_lea.vmem %s0, %s260
      %p262 = scmp.lt.s32.totalorder %s18, 1
      %s263 = scalar_select %p262, %s18, 1
      %s264 = smul.addr %s263, 8
      %s265 = smul.addr %s264, 8
      %s266 = scalar_lea.vmem %s4, %s265
      %p267 = scmp.lt.s32.totalorder %s18, 1
      %s268 = scalar_select %p267, %s18, 1
      %s269 = smul.addr %s268, 4
      %s270 = smul.addr %s269, 8
      %s271 = scalar_lea.vmem %s5, %s270
      %p272 = scmp.lt.s32.totalorder %s18, 1
      %s273 = scalar_select %p272, %s18, 1
      %s274 = smul.addr %s273, 4
      %s275 = smul.addr %s274, 8
      %s276 = scalar_lea.vmem %s6, %s275
      %v277 = vld [vmem:[%s261] sm:$0xff]
      %v278 = vld [vmem:[%s1] ss:$4 sm:$0x3]
      %v280 = vperm.slane %v278, 0
      %v281 = vperm.slane %v278, 1
      %v282 = vrot.slane %v281, 4
      %vm283 = vcmask 1043456
      %v284 = vsel %vm283, %v280, %v282
      %v286 = vmul.f32 %v277, %v284
      %288 = vst [vmem:[#allocation1] ss:$2 sm:$0xff] %v277
      %v289 = vld.sshfl [vmem:[#allocation1] sm:$0xff pattern:$0x75316420]
      %v290 = vld.sshfl [vmem:[#allocation1 + $0x8] sm:$0xff pattern:$0x75316420]
      %291 = vrot.lane.b32.xlu0 %v289, 127
      %v292 = vpop.permute.xlu0 %291
      %293 = vrot.lane.b32.xlu0 %v290, 127
      %v294 = vpop.permute.xlu0 %293
      %vm295 = vcmask 1039360
      %v296 = vsel %vm295, %v292, %v294
      %299 = vst [vmem:[#allocation1] ss:$2 sm:$0xff] %v277
      %v300 = vld.sshfl [vmem:[#allocation1] sm:$0xff pattern:$0x75316420]
      %301 = vrot.lane.b32.xlu0 %v300, 127
      %v302 = vpop.permute.xlu0 %301
      %v304 = vsel %vm295, %v294, %v302
      %s305 = scalar_lea.vmem %s1, 1
      %v306 = vld [vmem:[%s305] ss:$4 sm:$0x3]
      %v308 = vperm.slane %v306, 0
      %v309 = vperm.slane %v306, 1
      %v312 = vmul.f32 %v296, %v308
      %v313 = vmul.f32 %v304, %v309
      %314 = vst [vmem:[#allocation1] ss:$2 sm:$0xff] %v277
      %v315 = vld.sshfl [vmem:[#allocation1] sm:$0xff pattern:$0x75316420]
      %v316 = vld.sshfl [vmem:[#allocation1 + $0x8] sm:$0xff pattern:$0x75316420]
      %317 = vrot.lane.b32.xlu0 %v315, 112
      %v318 = vpop.permute.xlu0 %317
      %319 = vrot.lane.b32.xlu0 %v316, 112
      %v320 = vpop.permute.xlu0 %319
      %vm321 = vcmask 916480
      %v322 = vsel %vm321, %v318, %v320
      %325 = vst [vmem:[#allocation1] ss:$2 sm:$0xff] %v277
      %v326 = vld.sshfl [vmem:[#allocation1] sm:$0xff pattern:$0x75316420]
      %327 = vrot.lane.b32.xlu0 %v326, 112
      %v328 = vpop.permute.xlu0 %327
      %v330 = vsel %vm321, %v320, %v328
      %s331 = scalar_lea.vmem %s1, 2
      %v332 = vld [vmem:[%s331] ss:$4 sm:$0x3]
      %v334 = vperm.slane %v332, 0
      %v335 = vperm.slane %v332, 1
      %v338 = vmul.f32 %v322, %v334
      %v339 = vmul.f32 %v330, %v335
      %340 = vst [vmem:[#allocation1] ss:$2 sm:$0xff] %v277
      %v341 = vld.sshfl [vmem:[#allocation1] sm:$0xff pattern:$0x75316420]
      %v342 = vld.sshfl [vmem:[#allocation1 + $0x8] sm:$0xff pattern:$0x75316420]
      %343 = vrot.lane.b32.xlu0 %v341, 111
      %v344 = vpop.permute.xlu0 %343
      %345 = vrot.lane.b32.xlu0 %v342, 111
      %v346 = vpop.permute.xlu0 %345
      %vm347 = vcmask 908288
      %v348 = vsel %vm347, %v344, %v346
      %351 = vst [vmem:[#allocation1] ss:$2 sm:$0xff] %v277
      %v352 = vld.sshfl [vmem:[#allocation1] sm:$0xff pattern:$0x75316420]
      %353 = vrot.lane.b32.xlu0 %v352, 111
      %v354 = vpop.permute.xlu0 %353
      %v356 = vsel %vm347, %v346, %v354
      %s357 = scalar_lea.vmem %s1, 3
      %v358 = vld [vmem:[%s357] ss:$4 sm:$0x3]
      %v360 = vperm.slane %v358, 0
      %v361 = vperm.slane %v358, 1
      %v364 = vmul.f32 %v348, %v360
      %v365 = vmul.f32 %v356, %v361
      %367 = vst [vmem:[#allocation1] ss:$2 sm:$0xff] %v286
      %v368 = vld.sshfl [vmem:[#allocation1] sm:$0xff pattern:$0x75316420]
      %v369 = vld.sshfl [vmem:[#allocation1 + $0x8] sm:$0xff pattern:$0x75316420]
      %v374 = vrot.slane %v312, 4
      %v375 = vrot.slane %v313, 4
      %v380 = vrot.slane %v364, 4
      %v381 = vrot.slane %v365, 4
      %v384 = vsel %vm283, %v368, %v374
      %v385 = vsel %vm283, %v369, %v375
      %v386 = vsel %vm283, %v338, %v380
      %v387 = vsel %vm283, %v339, %v381
      %v388 = vld [vmem:[%s2] sm:$0xff]
      %v389 = vld [vmem:[%s2 + $0x8] sm:$0xff]
      %v390 = vld [vmem:[%s2 + $0x10] sm:$0xff]
      %v391 = vld [vmem:[%s2 + $0x18] sm:$0xff]
      %v392 = vld [vmem:[%s3] sm:$0xff]
      %v393 = vld [vmem:[%s3 + $0x8] sm:$0xff]
      %v394 = vld [vmem:[%s3 + $0x10] sm:$0xff]
      %v395 = vld [vmem:[%s3 + $0x18] sm:$0xff]
      %397 = vset.pattern.permute.xlu0 0
      %398 = vperm.xlu0 %397, %v392
      %v399 = vpop.permute.xlu0 %398
      %402 = vset.pattern.permute.xlu0 0
      %403 = vperm.xlu0 %402, %v393
      %v404 = vpop.permute.xlu0 %403
      %407 = vset.pattern.permute.xlu0 0
      %408 = vperm.xlu0 %407, %v394
      %v409 = vpop.permute.xlu0 %408
      %412 = vset.pattern.permute.xlu0 0
      %413 = vperm.xlu0 %412, %v395
      %v414 = vpop.permute.xlu0 %413
      %vm416 = vcmask 130048
      %v418 = vsel %vm416, %v388, 0
      %v421 = vsel %vm416, %v389, 0
      %v424 = vsel %vm416, %v390, 0
      %v427 = vsel %vm416, %v391, 0
      %429 = vmatpush.msra.mxu0 0.0
      %430 = vmatpush.msra.mxu0 0.0
      %431 = vmatpush.msra.mxu0 0.0
      %432 = vmatpush.msra.mxu0 0.0
      %433 = vmatpush.msra.mxu0 0.0
      %434 = vmatpush.msra.mxu0 0.0
      %435 = vmatpush.msra.mxu0 0.0
      %436 = vmatpush.msra.mxu0 0.0
      %437 = vmatpush.msra.mxu0 0.0
      %438 = vmatpush.msra.mxu0 0.0
      %439 = vmatpush.msra.mxu0 0.0
      %440 = vmatpush.msra.mxu0 0.0
      %441 = vmatpush.msra.mxu0 0.0
      %442 = vmatpush.msra.mxu0 0.0
      %443 = vmatpush.msra.mxu0 %v386
      %444 = vmatpush.msra.mxu0 %v384
      %445 = vmatmul.f32.gmra.mxu0 %v418
      %v446 = vpop.f32.mrf.mxu0
      %v447 = vadd.f32 %v399, %v446
      %448 = vmatmul.f32.gmra.mxu0 %v421
      %v449 = vpop.f32.mrf.mxu0
      %v450 = vadd.f32 %v404, %v449
      %451 = vmatmul.f32.gmra.mxu0 %v424
      %v452 = vpop.f32.mrf.mxu0
      %v453 = vadd.f32 %v409, %v452
      %454 = vmatmul.f32.gmra.mxu0 %v427
      %v455 = vpop.f32.mrf.mxu0
      %v456 = vadd.f32 %v414, %v455
      %457 = vdwg.mxu0
      %458 = vmatpush.msra.mxu0 0.0
      %459 = vmatpush.msra.mxu0 0.0
      %460 = vmatpush.msra.mxu0 0.0
      %461 = vmatpush.msra.mxu0 0.0
      %462 = vmatpush.msra.mxu0 0.0
      %463 = vmatpush.msra.mxu0 0.0
      %464 = vmatpush.msra.mxu0 0.0
      %465 = vmatpush.msra.mxu0 0.0
      %466 = vmatpush.msra.mxu0 0.0
      %467 = vmatpush.msra.mxu0 0.0
      %468 = vmatpush.msra.mxu0 0.0
      %469 = vmatpush.msra.mxu0 0.0
      %470 = vmatpush.msra.mxu0 0.0
      %471 = vmatpush.msra.mxu0 0.0
      %472 = vmatpush.msra.mxu0 %v387
      %473 = vmatpush.msra.mxu0 %v385
      %474 = vmatmul.f32.gmra.mxu0 %v418
      %v475 = vpop.f32.mrf.mxu0
      %v476 = vadd.f32 %v399, %v475
      %477 = vmatmul.f32.gmra.mxu0 %v421
      %v478 = vpop.f32.mrf.mxu0
      %v479 = vadd.f32 %v404, %v478
      %480 = vmatmul.f32.gmra.mxu0 %v424
      %v481 = vpop.f32.mrf.mxu0
      %v482 = vadd.f32 %v409, %v481
      %483 = vmatmul.f32.gmra.mxu0 %v427
      %v484 = vpop.f32.mrf.mxu0
      %v485 = vadd.f32 %v414, %v484
      %486 = vdwg.mxu0
      %v487 = vadd.f32 %v447, %v476
      %488 = vadd.xlane.f32.xlu0 %v487
      %v489 = vpop.xlane.xlu0 %488
      %v490 = vadd.f32 %v450, %v479
      %491 = vadd.xlane.f32.xlu0 %v490
      %v492 = vpop.xlane.xlu0 %491
      %v493 = vadd.f32 %v453, %v482
      %494 = vadd.xlane.f32.xlu0 %v493
      %v495 = vpop.xlane.xlu0 %494
      %v496 = vadd.f32 %v456, %v485
      %497 = vadd.xlane.f32.xlu0 %v496
      %v498 = vpop.xlane.xlu0 %497
      %v499 = vrcp.pop 256.0
      %v500 = vmul.f32 256.0, %v499
      %v501 = vsub.f32 1.0, %v500
      %v502 = vmul.f32 %v499, %v501
      %v503 = vadd.f32 %v499, %v502
      %vm504 = vweird.f32 %v499
      %v505 = vsel %vm504, %v499, %v503
      %v506 = vmul.f32 %v489, %v505
      %v507 = vmul.f32 %v492, %v505
      %v508 = vmul.f32 %v495, %v505
      %v509 = vmul.f32 %v498, %v505
      %v510 = vsub.f32 %v447, %v506
      %v511 = vsub.f32 %v476, %v506
      %v512 = vsub.f32 %v450, %v507
      %v513 = vsub.f32 %v479, %v507
      %v514 = vsub.f32 %v453, %v508
      %v515 = vsub.f32 %v482, %v508
      %v516 = vsub.f32 %v456, %v509
      %v517 = vsub.f32 %v485, %v509
      %v518 = vmul.f32 %v510, %v510
      %v519 = vmul.f32 %v511, %v511
      %v520 = vmul.f32 %v512, %v512
      %v521 = vmul.f32 %v513, %v513
      %v522 = vmul.f32 %v514, %v514
      %v523 = vmul.f32 %v515, %v515
      %v524 = vmul.f32 %v516, %v516
      %v525 = vmul.f32 %v517, %v517
      %v526 = vadd.f32 %v518, %v519
      %527 = vadd.xlane.f32.xlu0 %v526
      %v528 = vpop.xlane.xlu0 %527
      %v529 = vadd.f32 %v520, %v521
      %530 = vadd.xlane.f32.xlu0 %v529
      %v531 = vpop.xlane.xlu0 %530
      %v532 = vadd.f32 %v522, %v523
      %533 = vadd.xlane.f32.xlu0 %v532
      %v534 = vpop.xlane.xlu0 %533
      %v535 = vadd.f32 %v524, %v525
      %536 = vadd.xlane.f32.xlu0 %v535
      %v537 = vpop.xlane.xlu0 %536
      %v538 = vmul.f32 %v528, %v505
      %v539 = vmul.f32 %v531, %v505
      %v540 = vmul.f32 %v534, %v505
      %v541 = vmul.f32 %v537, %v505
      %vm542 = vcmask 7168
      %543 = vst.msk [vmem:[%s271] sm:$0xff] %vm542, %v506
      %544 = vst.msk [vmem:[%s271 + $0x8] sm:$0xff] %vm542, %v507
      %545 = vst.msk [vmem:[%s271 + $0x10] sm:$0xff] %vm542, %v508
      %546 = vst.msk [vmem:[%s271 + $0x18] sm:$0xff] %vm542, %v509
      %547 = vst.msk [vmem:[%s276] sm:$0xff] %vm542, %v538
      %548 = vst.msk [vmem:[%s276 + $0x8] sm:$0xff] %vm542, %v539
      %549 = vst.msk [vmem:[%s276 + $0x10] sm:$0xff] %vm542, %v540
      %550 = vst.msk [vmem:[%s276 + $0x18] sm:$0xff] %vm542, %v541
      %551 = vst [vmem:[%s266] sm:$0xff] %v447
      %552 = vst [vmem:[%s266 + $0x8] sm:$0xff] %v476
      %553 = vst [vmem:[%s266 + $0x10] sm:$0xff] %v450
      %554 = vst [vmem:[%s266 + $0x18] sm:$0xff] %v479
      %555 = vst [vmem:[%s266 + $0x20] sm:$0xff] %v453
      %556 = vst [vmem:[%s266 + $0x28] sm:$0xff] %v482
      %557 = vst [vmem:[%s266 + $0x30] sm:$0xff] %v456
      %558 = vst [vmem:[%s266 + $0x38] sm:$0xff] %v485
      %p559 = scmp.lt.s32.totalorder %s18, 1
      %s560 = scalar_select %p559, %s18, 1
      %s561 = smul.addr %s560, 8
      %s562 = smul.addr %s561, 8
      %s563 = scalar_lea.vmem %s4, %s562
      %p564 = scmp.lt.s32.totalorder %s18, 1
      %s565 = scalar_select %p564, %s18, 1
      %s566 = smul.addr %s565, 4
      %s567 = smul.addr %s566, 8
      %s568 = scalar_lea.vmem %s5, %s567
      %p569 = scmp.lt.s32.totalorder %s18, 1
      %s570 = scalar_select %p569, %s18, 1
      %s571 = smul.addr %s570, 4
      %s572 = smul.addr %s571, 8
      %s573 = scalar_lea.vmem %s6, %s572
      // Predicated region
      $region37: #{disk_up_forward.4} parent=35 // pred_check
        %p574 = pneg %p125
      $region38: #{disk_up_forward.4} parent=35 // pred_check_branch
        %576 = sbr.rel (%p574) target = $region40
      $region39: #{disk_up_forward.4} parent=35 // pred_region
        _
      $region40: #{disk_up_forward.4} parent=35 // pred_fallthru
        _
      // Predicated region
      $region41: #{disk_up_forward.4} parent=35 // pred_check
        %p577 = pneg %p151
      $region42: #{disk_up_forward.4} parent=35 // pred_check_branch
        %579 = sbr.rel (%p577) target = $region44
      $region43: #{disk_up_forward.4} parent=35 // pred_region
        _
      $region44: #{disk_up_forward.4} parent=35 // pred_fallthru
        _
      // Predicated region
      $region45: #{disk_up_forward.4} parent=35 // pred_check
        %p580 = pneg %p177
      $region46: #{disk_up_forward.4} parent=35 // pred_check_branch
        %582 = sbr.rel (%p580) target = $region48
      $region47: #{disk_up_forward.4} parent=35 // pred_region
        _
      $region48: #{disk_up_forward.4} parent=35 // pred_fallthru
        _
    $region36: #{disk_up_forward.4} parent=5 // pred_fallthru
      _
    %p583 = scmp.le.s32.totalorder 2, %s13
    // Predicated region
    $region49: #{disk_up_forward.4} parent=5 // pred_check
      %p584 = pneg %p583
    $region50: #{disk_up_forward.4} parent=5 // pred_check_branch
      %586 = sbr.rel (%p584) target = $region52
    $region51: #{disk_up_forward.4} parent=5 // pred_region
      %s587 = ssub.s32 %s13, 2
      // Predicated region
      $region53: #{disk_up_forward.4} parent=51 // pred_check
        %p588 = pneg %p131
      $region54: #{disk_up_forward.4} parent=51 // pred_check_branch
        %590 = sbr.rel (%p588) target = $region56
      $region55: #{disk_up_forward.4} parent=51 // pred_region
        %p591 = scmp.lt.s32.totalorder %s19, 1
        %s592 = scalar_select %p591, %s19, 1
        %s593 = smul.addr %s592, 8
        %s594 = smul.addr %s593, 8
        %s595 = scalar_lea.vmem %s4, %s594
      $region56: #{disk_up_forward.4} parent=51 // pred_fallthru
        _
      // Predicated region
      $region57: #{disk_up_forward.4} parent=51 // pred_check
        %p596 = pneg %p157
      $region58: #{disk_up_forward.4} parent=51 // pred_check_branch
        %598 = sbr.rel (%p596) target = $region60
      $region59: #{disk_up_forward.4} parent=51 // pred_region
        %p599 = scmp.lt.s32.totalorder %s19, 1
        %s600 = scalar_select %p599, %s19, 1
        %s601 = smul.addr %s600, 4
        %s602 = smul.addr %s601, 8
        %s603 = scalar_lea.vmem %s5, %s602
      $region60: #{disk_up_forward.4} parent=51 // pred_fallthru
        _
      // Predicated region
      $region61: #{disk_up_forward.4} parent=51 // pred_check
        %p604 = pneg %p183
      $region62: #{disk_up_forward.4} parent=51 // pred_check_branch
        %606 = sbr.rel (%p604) target = $region64
      $region63: #{disk_up_forward.4} parent=51 // pred_region
        %p607 = scmp.lt.s32.totalorder %s19, 1
        %s608 = scalar_select %p607, %s19, 1
        %s609 = smul.addr %s608, 4
        %s610 = smul.addr %s609, 8
        %s611 = scalar_lea.vmem %s6, %s610
      $region64: #{disk_up_forward.4} parent=51 // pred_fallthru
        _
    $region52: #{disk_up_forward.4} parent=5 // pred_fallthru
      _
  $region6: #{disk_up_forward.4} parent=0 // loop_footer
    %s17 = sadd.s32 1, %s13
  $region7: #{disk_up_forward.4} parent=0 // loop_footer_branch
    %12 = sbr.rel target = $region3
  $region8: #{disk_up_forward.4} parent=0 // loop_exit
    _

// kernel: disk_up_forward.5
$region0: #{disk_up_forward.5}
  #allocation0 [shape = 'u32[]', space=smem, size = 0x4, offset = 0x4, fixed_abs, tag = 'smem constant byte address 0x4 - core index']
  #allocation1 [shape = 'u32[72,128]{1,0:T(1,128)}', space=vmem, size = 0x9000, scoped, tag = 'internal scratch']
  %s0 = inlined_call_operand.vmem [shape: f32[2,8,1024], index: 0, kind: input, shape index: {}]
  %s1 = inlined_call_operand.vmem [shape: f32[8,1], index: 1, kind: input, shape index: {}]
  %s2 = inlined_call_operand.vmem [shape: f32[8,1], index: 2, kind: input, shape index: {}]
  %s3 = inlined_call_operand.vmem [shape: f32[9,1024], index: 3, kind: input, shape index: {}]
  %s4 = inlined_call_operand.vmem [shape: f32[8,72], index: 4, kind: input, shape index: {}]
  %s5 = inlined_call_operand.vmem [shape: f32[8,1], index: 5, kind: input, shape index: {}]
  %s6 = inlined_call_operand.vmem [shape: f32[2,8,1024], index: 6, kind: output, shape index: {0}]
  %s7 = inlined_call_operand.vmem [shape: f32[2,8,1], index: 7, kind: output, shape index: {1}]
  %s8 = inlined_call_operand.vmem [shape: f32[2,8,1], index: 8, kind: output, shape index: {2}]
  %9 = xla_tuple %s6, %s7, %s8
  %s10 = sld [smem:[#allocation0]]
  $region73: #{disk_up_forward.5} parent=0
    _
  %s12 = ssub.s32 1, %s10
  %s13 = scalar_select 0, %s12, %s10
  loop: start=0, step=1, limit=4
  $region2: #{disk_up_forward.5} parent=0 // loop_pre_header
    _
  $region3: #{disk_up_forward.5} parent=0 // loop_header
    %s15 = sphi 0, %s19
    %p16 = scmp.ge.s32.totalorder %s15, 4
    %s25 = sphi 0, %s27
    %s28 = sphi 0, %s25
    %s29 = sphi 0, %s28
    %s45 = sphi 0, %s29
    %s49 = sphi 0, %s49
    %s51 = sphi 0, %s49
    %s52 = sphi 0, %s51
    %s66 = sphi 0, %s52
    %s70 = sphi 0, %s70
    %s72 = sphi 0, %s70
    %s73 = sphi 0, %s72
    %s87 = sphi 0, %s73
    %s91 = sphi 0, %s91
    %s93 = sphi 0, %s91
    %s94 = sphi 0, %s93
    %s108 = sphi 0, %s94
    %s112 = sphi 0, %s112
    %s114 = sphi 0, %s112
    %s115 = sphi 0, %s114
    %s129 = sphi 0, %s115
    %s133 = sphi 0, %s133
    %s135 = sphi 0, %s133
    %s136 = sphi 0, %s135
    %s150 = sphi 0, %s136
    %s156 = sphi 0, %s158
    %s159 = sphi 0, %s156
    %s160 = sphi 0, %s159
    %s176 = sphi 0, %s160
    %s182 = sphi 0, %s184
    %s185 = sphi 0, %s182
    %s186 = sphi 0, %s185
    %s202 = sphi 0, %s186
    %s208 = sphi 0, %s210
    %s211 = sphi 0, %s208
    %s212 = sphi 0, %s211
    %s228 = sphi 0, %s212
  $region4: #{disk_up_forward.5} parent=0 // loop_header_branch
    %18 = sbr.rel (%p16) target = $region8
  $region5: #{disk_up_forward.5} parent=0 // loop_body
    %s20 = ssub.s32 %s15, 1
    %s21 = ssub.s32 %s15, 2
    %s22 = sadd.s32 %s15, 1
    %s23 = ssub.s32 %s15, %s22
    %p24 = scmp.eq.s32.totalorder %s23, 0
    %s26 = sadd.s32 %s25, 1
    %s27 = scalar_select %p24, %s25, %s26
    %p30 = pneg %p24
    %p31 = scmp.eq.s32.totalorder %s15, 1
    %p32 = por %p30, %p31
    %p33 = scmp.ne.s32.totalorder %s25, %s28
    %p34 = scmp.eq.s32.totalorder %s15, 0
    %p35 = por %p33, %p34
    %p36 = scmp.ne.s32.totalorder %s25, %s28
    %p37 = scmp.eq.s32.totalorder %s20, 1
    %p38 = por %p36, %p37
    %p39 = scmp.ne.s32.totalorder %s28, %s29
    %p40 = scmp.eq.s32.totalorder %s20, 0
    %p41 = por %p39, %p40
    %p42 = scmp.ne.s32.totalorder %s28, %s29
    %p43 = scmp.eq.s32.totalorder %s21, 1
    %p44 = por %p42, %p43
    %p46 = scmp.ne.s32.totalorder %s29, %s45
    %p47 = scmp.eq.s32.totalorder %s21, 0
    %p48 = por %p46, %p47
    %s50 = sadd.s32 %s49, 1
    %p53 = scmp.eq.s32.totalorder %s15, 1
    %p54 = scmp.ne.s32.totalorder %s49, %s51
    %p55 = scmp.eq.s32.totalorder %s15, 0
    %p56 = por %p54, %p55
    %p57 = scmp.ne.s32.totalorder %s49, %s51
    %p58 = scmp.eq.s32.totalorder %s20, 1
    %p59 = por %p57, %p58
    %p60 = scmp.ne.s32.totalorder %s51, %s52
    %p61 = scmp.eq.s32.totalorder %s20, 0
    %p62 = por %p60, %p61
    %p63 = scmp.ne.s32.totalorder %s51, %s52
    %p64 = scmp.eq.s32.totalorder %s21, 1
    %p65 = por %p63, %p64
    %p67 = scmp.ne.s32.totalorder %s52, %s66
    %p68 = scmp.eq.s32.totalorder %s21, 0
    %p69 = por %p67, %p68
    %s71 = sadd.s32 %s70, 1
    %p74 = scmp.eq.s32.totalorder %s15, 1
    %p75 = scmp.ne.s32.totalorder %s70, %s72
    %p76 = scmp.eq.s32.totalorder %s15, 0
    %p77 = por %p75, %p76
    %p78 = scmp.ne.s32.totalorder %s70, %s72
    %p79 = scmp.eq.s32.totalorder %s20, 1
    %p80 = por %p78, %p79
    %p81 = scmp.ne.s32.totalorder %s72, %s73
    %p82 = scmp.eq.s32.totalorder %s20, 0
    %p83 = por %p81, %p82
    %p84 = scmp.ne.s32.totalorder %s72, %s73
    %p85 = scmp.eq.s32.totalorder %s21, 1
    %p86 = por %p84, %p85
    %p88 = scmp.ne.s32.totalorder %s73, %s87
    %p89 = scmp.eq.s32.totalorder %s21, 0
    %p90 = por %p88, %p89
    %s92 = sadd.s32 %s91, 1
    %p95 = scmp.eq.s32.totalorder %s15, 1
    %p96 = scmp.ne.s32.totalorder %s91, %s93
    %p97 = scmp.eq.s32.totalorder %s15, 0
    %p98 = por %p96, %p97
    %p99 = scmp.ne.s32.totalorder %s91, %s93
    %p100 = scmp.eq.s32.totalorder %s20, 1
    %p101 = por %p99, %p100
    %p102 = scmp.ne.s32.totalorder %s93, %s94
    %p103 = scmp.eq.s32.totalorder %s20, 0
    %p104 = por %p102, %p103
    %p105 = scmp.ne.s32.totalorder %s93, %s94
    %p106 = scmp.eq.s32.totalorder %s21, 1
    %p107 = por %p105, %p106
    %p109 = scmp.ne.s32.totalorder %s94, %s108
    %p110 = scmp.eq.s32.totalorder %s21, 0
    %p111 = por %p109, %p110
    %s113 = sadd.s32 %s112, 1
    %p116 = scmp.eq.s32.totalorder %s15, 1
    %p117 = scmp.ne.s32.totalorder %s112, %s114
    %p118 = scmp.eq.s32.totalorder %s15, 0
    %p119 = por %p117, %p118
    %p120 = scmp.ne.s32.totalorder %s112, %s114
    %p121 = scmp.eq.s32.totalorder %s20, 1
    %p122 = por %p120, %p121
    %p123 = scmp.ne.s32.totalorder %s114, %s115
    %p124 = scmp.eq.s32.totalorder %s20, 0
    %p125 = por %p123, %p124
    %p126 = scmp.ne.s32.totalorder %s114, %s115
    %p127 = scmp.eq.s32.totalorder %s21, 1
    %p128 = por %p126, %p127
    %p130 = scmp.ne.s32.totalorder %s115, %s129
    %p131 = scmp.eq.s32.totalorder %s21, 0
    %p132 = por %p130, %p131
    %s134 = sadd.s32 %s133, 1
    %p137 = scmp.eq.s32.totalorder %s15, 1
    %p138 = scmp.ne.s32.totalorder %s133, %s135
    %p139 = scmp.eq.s32.totalorder %s15, 0
    %p140 = por %p138, %p139
    %p141 = scmp.ne.s32.totalorder %s133, %s135
    %p142 = scmp.eq.s32.totalorder %s20, 1
    %p143 = por %p141, %p142
    %p144 = scmp.ne.s32.totalorder %s135, %s136
    %p145 = scmp.eq.s32.totalorder %s20, 0
    %p146 = por %p144, %p145
    %p147 = scmp.ne.s32.totalorder %s135, %s136
    %p148 = scmp.eq.s32.totalorder %s21, 1
    %p149 = por %p147, %p148
    %p151 = scmp.ne.s32.totalorder %s136, %s150
    %p152 = scmp.eq.s32.totalorder %s21, 0
    %p153 = por %p151, %p152
    %s154 = ssub.s32 %s15, %s22
    %p155 = scmp.eq.s32.totalorder %s154, 0
    %s157 = sadd.s32 %s156, 1
    %s158 = scalar_select %p155, %s156, %s157
    %p161 = pneg %p155
    %p162 = scmp.eq.s32.totalorder %s15, 1
    %p163 = por %p161, %p162
    %p164 = scmp.ne.s32.totalorder %s156, %s159
    %p165 = scmp.eq.s32.totalorder %s15, 0
    %p166 = por %p164, %p165
    %p167 = scmp.ne.s32.totalorder %s156, %s159
    %p168 = scmp.eq.s32.totalorder %s20, 1
    %p169 = por %p167, %p168
    %p170 = scmp.ne.s32.totalorder %s159, %s160
    %p171 = scmp.eq.s32.totalorder %s20, 0
    %p172 = por %p170, %p171
    %p173 = scmp.ne.s32.totalorder %s159, %s160
    %p174 = scmp.eq.s32.totalorder %s21, 1
    %p175 = por %p173, %p174
    %p177 = scmp.ne.s32.totalorder %s160, %s176
    %p178 = scmp.eq.s32.totalorder %s21, 0
    %p179 = por %p177, %p178
    %s180 = ssub.s32 %s15, %s22
    %p181 = scmp.eq.s32.totalorder %s180, 0
    %s183 = sadd.s32 %s182, 1
    %s184 = scalar_select %p181, %s182, %s183
    %p187 = pneg %p181
    %p188 = scmp.eq.s32.totalorder %s15, 1
    %p189 = por %p187, %p188
    %p190 = scmp.ne.s32.totalorder %s182, %s185
    %p191 = scmp.eq.s32.totalorder %s15, 0
    %p192 = por %p190, %p191
    %p193 = scmp.ne.s32.totalorder %s182, %s185
    %p194 = scmp.eq.s32.totalorder %s20, 1
    %p195 = por %p193, %p194
    %p196 = scmp.ne.s32.totalorder %s185, %s186
    %p197 = scmp.eq.s32.totalorder %s20, 0
    %p198 = por %p196, %p197
    %p199 = scmp.ne.s32.totalorder %s185, %s186
    %p200 = scmp.eq.s32.totalorder %s21, 1
    %p201 = por %p199, %p200
    %p203 = scmp.ne.s32.totalorder %s186, %s202
    %p204 = scmp.eq.s32.totalorder %s21, 0
    %p205 = por %p203, %p204
    %s206 = ssub.s32 %s15, %s22
    %p207 = scmp.eq.s32.totalorder %s206, 0
    %s209 = sadd.s32 %s208, 1
    %s210 = scalar_select %p207, %s208, %s209
    %p213 = pneg %p207
    %p214 = scmp.eq.s32.totalorder %s15, 1
    %p215 = por %p213, %p214
    %p216 = scmp.ne.s32.totalorder %s208, %s211
    %p217 = scmp.eq.s32.totalorder %s15, 0
    %p218 = por %p216, %p217
    %p219 = scmp.ne.s32.totalorder %s208, %s211
    %p220 = scmp.eq.s32.totalorder %s20, 1
    %p221 = por %p219, %p220
    %p222 = scmp.ne.s32.totalorder %s211, %s212
    %p223 = scmp.eq.s32.totalorder %s20, 0
    %p224 = por %p222, %p223
    %p225 = scmp.ne.s32.totalorder %s211, %s212
    %p226 = scmp.eq.s32.totalorder %s21, 1
    %p227 = por %p225, %p226
    %p229 = scmp.ne.s32.totalorder %s212, %s228
    %p230 = scmp.eq.s32.totalorder %s21, 0
    %p231 = por %p229, %p230
    %p232 = scmp.le.s32.totalorder 1, %s15
    %p233 = scmp.lt.s32.totalorder %s15, 3
    %p234 = pnand %p232, %p233
    %p235 = pneg %p234
    // Predicated region
    $region9: #{disk_up_forward.5} parent=5 // pred_check
      _
    $region10: #{disk_up_forward.5} parent=5 // pred_check_branch
      %237 = sbr.rel (%p234) target = $region12
    $region11: #{disk_up_forward.5} parent=5 // pred_region
      %s238 = ssub.s32 %s15, 1
      // Predicated region
      $region13: #{disk_up_forward.5} parent=11 // pred_check
        %p239 = pneg %p62
      $region14: #{disk_up_forward.5} parent=11 // pred_check_branch
        %241 = sbr.rel (%p239) target = $region16
      $region15: #{disk_up_forward.5} parent=11 // pred_region
        _
      $region16: #{disk_up_forward.5} parent=11 // pred_fallthru
        _
      // Predicated region
      $region17: #{disk_up_forward.5} parent=11 // pred_check
        %p242 = pneg %p83
      $region18: #{disk_up_forward.5} parent=11 // pred_check_branch
        %244 = sbr.rel (%p242) target = $region20
      $region19: #{disk_up_forward.5} parent=11 // pred_region
        _
      $region20: #{disk_up_forward.5} parent=11 // pred_fallthru
        _
      // Predicated region
      $region21: #{disk_up_forward.5} parent=11 // pred_check
        %p245 = pneg %p104
      $region22: #{disk_up_forward.5} parent=11 // pred_check_branch
        %247 = sbr.rel (%p245) target = $region24
      $region23: #{disk_up_forward.5} parent=11 // pred_region
        _
      $region24: #{disk_up_forward.5} parent=11 // pred_fallthru
        _
      // Predicated region
      $region25: #{disk_up_forward.5} parent=11 // pred_check
        %p248 = pneg %p125
      $region26: #{disk_up_forward.5} parent=11 // pred_check_branch
        %250 = sbr.rel (%p248) target = $region28
      $region27: #{disk_up_forward.5} parent=11 // pred_region
        _
      $region28: #{disk_up_forward.5} parent=11 // pred_fallthru
        _
      // Predicated region
      $region29: #{disk_up_forward.5} parent=11 // pred_check
        %p251 = pneg %p146
      $region30: #{disk_up_forward.5} parent=11 // pred_check_branch
        %253 = sbr.rel (%p251) target = $region32
      $region31: #{disk_up_forward.5} parent=11 // pred_region
        _
      $region32: #{disk_up_forward.5} parent=11 // pred_fallthru
        _
    $region12: #{disk_up_forward.5} parent=5 // pred_fallthru
      _
    %p254 = scmp.lt.s32.totalorder %s15, 2
    // Predicated region
    $region33: #{disk_up_forward.5} parent=5 // pred_check
      %p255 = pneg %p254
    $region34: #{disk_up_forward.5} parent=5 // pred_check_branch
      %257 = sbr.rel (%p255) target = $region36
    $region35: #{disk_up_forward.5} parent=5 // pred_region
      // Predicated region
      $region37: #{disk_up_forward.5} parent=35 // pred_check
        %p258 = pneg %p35
      $region38: #{disk_up_forward.5} parent=35 // pred_check_branch
        %260 = sbr.rel (%p258) target = $region40
      $region39: #{disk_up_forward.5} parent=35 // pred_region
        %p261 = scmp.lt.s32.totalorder %s15, 1
        %s262 = scalar_select %p261, %s15, 1
        %s263 = smul.addr %s262, 8
        %s264 = smul.addr %s263, 8
        %s265 = scalar_lea.vmem %s0, %s264
      $region40: #{disk_up_forward.5} parent=35 // pred_fallthru
        _
    $region36: #{disk_up_forward.5} parent=5 // pred_fallthru
      _
    %p266 = scmp.le.s32.totalorder 1, %s15
    %p267 = scmp.lt.s32.totalorder %s15, 3
    %p268 = pnand %p266, %p267
    %p269 = pneg %p268
    // Predicated region
    $region41: #{disk_up_forward.5} parent=5 // pred_check
      _
    $region42: #{disk_up_forward.5} parent=5 // pred_check_branch
      %271 = sbr.rel (%p268) target = $region44
    $region43: #{disk_up_forward.5} parent=5 // pred_region
      %s272 = ssub.s32 %s15, 1
      %p273 = scmp.lt.s32.totalorder %s20, 1
      %s274 = scalar_select %p273, %s20, 1
      %s275 = smul.addr %s274, 8
      %s276 = smul.addr %s275, 8
      %s277 = scalar_lea.vmem %s0, %s276
      %p278 = pneg %p41
      %p279 = pneg %p38
      %p280 = pneg %p62
      %p281 = pneg %p59
      %p282 = pneg %p83
      %p283 = pneg %p80
      %p284 = pneg %p104
      %p285 = pneg %p101
      %p286 = pneg %p125
      %p287 = pneg %p122
      %p288 = pneg %p146
      %p289 = pneg %p143
      %p290 = pneg %p172
      %p291 = pneg %p169
      %p292 = scmp.lt.s32.totalorder %s20, 1
      %s293 = scalar_select %p292, %s20, 1
      %s294 = smul.addr %s293, 8
      %s295 = smul.addr %s294, 8
      %s296 = scalar_lea.vmem %s6, %s295
      %p297 = pneg %p198
      %p298 = pneg %p195
      %p299 = scmp.lt.s32.totalorder %s20, 1
      %s300 = scalar_select %p299, %s20, 1
      %s301 = smul.addr %s300, 8
      %s302 = scalar_lea.vmem %s7, %s301
      %p303 = pneg %p224
      %p304 = pneg %p221
      %p305 = scmp.lt.s32.totalorder %s20, 1
      %s306 = scalar_select %p305, %s20, 1
      %s307 = smul.addr %s306, 8
      %s308 = scalar_lea.vmem %s8, %s307
      %p309 = scmp.lt.s32.totalorder %s20, 1
      %s310 = scalar_select %p309, %s20, 1
      %s311 = smul.addr %s310, 8
      %s312 = smul.addr %s311, 8
      %s313 = scalar_lea.vmem %s0, %s312
      %p314 = scmp.lt.s32.totalorder %s20, 1
      %s315 = scalar_select %p314, %s20, 1
      %s316 = smul.addr %s315, 8
      %s317 = smul.addr %s316, 8
      %s318 = scalar_lea.vmem %s6, %s317
      %p319 = scmp.lt.s32.totalorder %s20, 1
      %s320 = scalar_select %p319, %s20, 1
      %s321 = smul.addr %s320, 8
      %s322 = scalar_lea.vmem %s7, %s321
      %p323 = scmp.lt.s32.totalorder %s20, 1
      %s324 = scalar_select %p323, %s20, 1
      %s325 = smul.addr %s324, 8
      %s326 = scalar_lea.vmem %s8, %s325
      %v327 = vld [vmem:[%s313] sm:$0xff]
      %v328 = vld [vmem:[%s313 + $0x8] sm:$0xff]
      %v329 = vld [vmem:[%s313 + $0x10] sm:$0xff]
      %v330 = vld [vmem:[%s313 + $0x18] sm:$0xff]
      %v331 = vld [vmem:[%s313 + $0x20] sm:$0xff]
      %v332 = vld [vmem:[%s313 + $0x28] sm:$0xff]
      %v333 = vld [vmem:[%s313 + $0x30] sm:$0xff]
      %v334 = vld [vmem:[%s313 + $0x38] sm:$0xff]
      %v335 = vld [vmem:[%s1] sm:$0xff]
      %337 = vset.pattern.permute.xlu0 0
      %338 = vperm.xlu0 %337, %v335
      %v339 = vpop.permute.xlu0 %338
      %v341 = vmul.f32 %v327, %v339
      %v342 = vmul.f32 %v328, %v339
      %v343 = vmul.f32 %v329, %v339
      %v344 = vmul.f32 %v330, %v339
      %v345 = vmul.f32 %v331, %v339
      %v346 = vmul.f32 %v332, %v339
      %v347 = vmul.f32 %v333, %v339
      %v348 = vmul.f32 %v334, %v339
      %v349 = vld [vmem:[%s2] sm:$0xff]
      %351 = vset.pattern.permute.xlu0 0
      %352 = vperm.xlu0 %351, %v349
      %v353 = vpop.permute.xlu0 %352
      %v355 = vadd.f32 %v341, %v353
      %v356 = vadd.f32 %v342, %v353
      %v357 = vadd.f32 %v343, %v353
      %v358 = vadd.f32 %v344, %v353
      %v359 = vadd.f32 %v345, %v353
      %v360 = vadd.f32 %v346, %v353
      %v361 = vadd.f32 %v347, %v353
      %v362 = vadd.f32 %v348, %v353
      %v363 = vmax.f32 %v355, 0.0
      %v364 = vmax.f32 %v356, 0.0
      %v365 = vmax.f32 %v357, 0.0
      %v366 = vmax.f32 %v358, 0.0
      %v367 = vmax.f32 %v359, 0.0
      %v368 = vmax.f32 %v360, 0.0
      %v369 = vmax.f32 %v361, 0.0
      %v370 = vmax.f32 %v362, 0.0
      %372 = vrot.lane.b32.xlu0 %v370, 33
      %v373 = vpop.permute.xlu0 %372
      %382 = vrot.lane.b32.xlu0 %v363, 33
      %v383 = vpop.permute.xlu0 %382
      %384 = vrot.lane.b32.xlu0 %v364, 33
      %v385 = vpop.permute.xlu0 %384
      %386 = vrot.lane.b32.xlu0 %v365, 33
      %v387 = vpop.permute.xlu0 %386
      %388 = vrot.lane.b32.xlu0 %v366, 33
      %v389 = vpop.permute.xlu0 %388
      %390 = vrot.lane.b32.xlu0 %v367, 33
      %v391 = vpop.permute.xlu0 %390
      %392 = vrot.lane.b32.xlu0 %v368, 33
      %v393 = vpop.permute.xlu0 %392
      %394 = vrot.lane.b32.xlu0 %v369, 33
      %v395 = vpop.permute.xlu0 %394
      %vm396 = vcmask 269312
      %v397 = vsel %vm396, %v383, %v385
      %v398 = vsel %vm396, %v385, %v387
      %v399 = vsel %vm396, %v387, %v389
      %v400 = vsel %vm396, %v389, %v391
      %v401 = vsel %vm396, %v391, %v393
      %v402 = vsel %vm396, %v393, %v395
      %v403 = vsel %vm396, %v395, %v373
      %v412 = vsel %vm396, %v373, %v383
      %v413 = vld [vmem:[%s3] ss:$8 sm:$0xf]
      %v414 = vld [vmem:[%s3] ss:$8 sm:$0xf0]
      %v415 = vor.u32 %v413, %v414
      %v417 = vperm.slane %v415, 0
      %v418 = vperm.slane %v415, 1
      %v419 = vperm.slane %v415, 2
      %v420 = vperm.slane %v415, 3
      %v421 = vperm.slane %v415, 4
      %v422 = vperm.slane %v415, 5
      %v423 = vperm.slane %v415, 6
      %v424 = vperm.slane %v415, 7
      %v433 = vmul.f32 %v412, %v417
      %v434 = vmul.f32 %v397, %v418
      %v435 = vmul.f32 %v398, %v419
      %v436 = vmul.f32 %v399, %v420
      %v437 = vmul.f32 %v400, %v421
      %v438 = vmul.f32 %v401, %v422
      %v439 = vmul.f32 %v402, %v423
      %v440 = vmul.f32 %v403, %v424
      %441 = vrot.lane.b32.xlu0 %v370, 32
      %v442 = vpop.permute.xlu0 %441
      %444 = vrot.lane.b32.xlu0 %v363, 32
      %v445 = vpop.permute.xlu0 %444
      %446 = vrot.lane.b32.xlu0 %v364, 32
      %v447 = vpop.permute.xlu0 %446
      %448 = vrot.lane.b32.xlu0 %v365, 32
      %v449 = vpop.permute.xlu0 %448
      %450 = vrot.lane.b32.xlu0 %v366, 32
      %v451 = vpop.permute.xlu0 %450
      %452 = vrot.lane.b32.xlu0 %v367, 32
      %v453 = vpop.permute.xlu0 %452
      %454 = vrot.lane.b32.xlu0 %v368, 32
      %v455 = vpop.permute.xlu0 %454
      %456 = vrot.lane.b32.xlu0 %v369, 32
      %v457 = vpop.permute.xlu0 %456
      %vm458 = vcmask 261120
      %v459 = vsel %vm458, %v445, %v447
      %v460 = vsel %vm458, %v447, %v449
      %v461 = vsel %vm458, %v449, %v451
      %v462 = vsel %vm458, %v451, %v453
      %v463 = vsel %vm458, %v453, %v455
      %v464 = vsel %vm458, %v455, %v457
      %v465 = vsel %vm458, %v457, %v442
      %v474 = vsel %vm458, %v442, %v445
      %s475 = scalar_lea.vmem %s3, 1
      %v476 = vld [vmem:[%s475] ss:$8 sm:$0xf]
      %v477 = vld [vmem:[%s475] ss:$8 sm:$0xf0]
      %v478 = vor.u32 %v476, %v477
      %v480 = vperm.slane %v478, 0
      %v481 = vperm.slane %v478, 1
      %v482 = vperm.slane %v478, 2
      %v483 = vperm.slane %v478, 3
      %v484 = vperm.slane %v478, 4
      %v485 = vperm.slane %v478, 5
      %v486 = vperm.slane %v478, 6
      %v487 = vperm.slane %v478, 7
      %v496 = vmul.f32 %v474, %v480
      %v497 = vmul.f32 %v459, %v481
      %v498 = vmul.f32 %v460, %v482
      %v499 = vmul.f32 %v461, %v483
      %v500 = vmul.f32 %v462, %v484
      %v501 = vmul.f32 %v463, %v485
      %v502 = vmul.f32 %v464, %v486
      %v503 = vmul.f32 %v465, %v487
      %504 = vrot.lane.b32.xlu0 %v370, 31
      %v505 = vpop.permute.xlu0 %504
      %507 = vrot.lane.b32.xlu0 %v363, 31
      %v508 = vpop.permute.xlu0 %507
      %509 = vrot.lane.b32.xlu0 %v364, 31
      %v510 = vpop.permute.xlu0 %509
      %511 = vrot.lane.b32.xlu0 %v365, 31
      %v512 = vpop.permute.xlu0 %511
      %513 = vrot.lane.b32.xlu0 %v366, 31
      %v514 = vpop.permute.xlu0 %513
      %515 = vrot.lane.b32.xlu0 %v367, 31
      %v516 = vpop.permute.xlu0 %515
      %517 = vrot.lane.b32.xlu0 %v368, 31
      %v518 = vpop.permute.xlu0 %517
      %519 = vrot.lane.b32.xlu0 %v369, 31
      %v520 = vpop.permute.xlu0 %519
      %vm521 = vcmask 252928
      %v522 = vsel %vm521, %v508, %v510
      %v523 = vsel %vm521, %v510, %v512
      %v524 = vsel %vm521, %v512, %v514
      %v525 = vsel %vm521, %v514, %v516
      %v526 = vsel %vm521, %v516, %v518
      %v527 = vsel %vm521, %v518, %v520
      %v528 = vsel %vm521, %v520, %v505
      %v537 = vsel %vm521, %v505, %v508
      %s538 = scalar_lea.vmem %s3, 2
      %v539 = vld [vmem:[%s538] ss:$8 sm:$0xf]
      %v540 = vld [vmem:[%s538] ss:$8 sm:$0xf0]
      %v541 = vor.u32 %v539, %v540
      %v543 = vperm.slane %v541, 0
      %v544 = vperm.slane %v541, 1
      %v545 = vperm.slane %v541, 2
      %v546 = vperm.slane %v541, 3
      %v547 = vperm.slane %v541, 4
      %v548 = vperm.slane %v541, 5
      %v549 = vperm.slane %v541, 6
      %v550 = vperm.slane %v541, 7
      %v559 = vmul.f32 %v537, %v543
      %v560 = vmul.f32 %v522, %v544
      %v561 = vmul.f32 %v523, %v545
      %v562 = vmul.f32 %v524, %v546
      %v563 = vmul.f32 %v525, %v547
      %v564 = vmul.f32 %v526, %v548
      %v565 = vmul.f32 %v527, %v549
      %v566 = vmul.f32 %v528, %v550
      %567 = vrot.lane.b32.xlu0 %v370, 1
      %v568 = vpop.permute.xlu0 %567
      %570 = vrot.lane.b32.xlu0 %v363, 1
      %v571 = vpop.permute.xlu0 %570
      %572 = vrot.lane.b32.xlu0 %v364, 1
      %v573 = vpop.permute.xlu0 %572
      %574 = vrot.lane.b32.xlu0 %v365, 1
      %v575 = vpop.permute.xlu0 %574
      %576 = vrot.lane.b32.xlu0 %v366, 1
      %v577 = vpop.permute.xlu0 %576
      %578 = vrot.lane.b32.xlu0 %v367, 1
      %v579 = vpop.permute.xlu0 %578
      %580 = vrot.lane.b32.xlu0 %v368, 1
      %v581 = vpop.permute.xlu0 %580
      %582 = vrot.lane.b32.xlu0 %v369, 1
      %v583 = vpop.permute.xlu0 %582
      %vm584 = vcmask 7168
      %v585 = vsel %vm584, %v571, %v573
      %v586 = vsel %vm584, %v573, %v575
      %v587 = vsel %vm584, %v575, %v577
      %v588 = vsel %vm584, %v577, %v579
      %v589 = vsel %vm584, %v579, %v581
      %v590 = vsel %vm584, %v581, %v583
      %v591 = vsel %vm584, %v583, %v568
      %v600 = vsel %vm584, %v568, %v571
      %s601 = scalar_lea.vmem %s3, 3
      %v602 = vld [vmem:[%s601] ss:$8 sm:$0xf]
      %v603 = vld [vmem:[%s601] ss:$8 sm:$0xf0]
      %v604 = vor.u32 %v602, %v603
      %v606 = vperm.slane %v604, 0
      %v607 = vperm.slane %v604, 1
      %v608 = vperm.slane %v604, 2
      %v609 = vperm.slane %v604, 3
      %v610 = vperm.slane %v604, 4
      %v611 = vperm.slane %v604, 5
      %v612 = vperm.slane %v604, 6
      %v613 = vperm.slane %v604, 7
      %v622 = vmul.f32 %v600, %v606
      %v623 = vmul.f32 %v585, %v607
      %v624 = vmul.f32 %v586, %v608
      %v625 = vmul.f32 %v587, %v609
      %v626 = vmul.f32 %v588, %v610
      %v627 = vmul.f32 %v589, %v611
      %v628 = vmul.f32 %v590, %v612
      %v629 = vmul.f32 %v591, %v613
      %s630 = scalar_lea.vmem %s3, 4
      %v631 = vld [vmem:[%s630] ss:$8 sm:$0xf]
      %v632 = vld [vmem:[%s630] ss:$8 sm:$0xf0]
      %v633 = vor.u32 %v631, %v632
      %v635 = vperm.slane %v633, 0
      %v636 = vperm.slane %v633, 1
      %v637 = vperm.slane %v633, 2
      %v638 = vperm.slane %v633, 3
      %v639 = vperm.slane %v633, 4
      %v640 = vperm.slane %v633, 5
      %v641 = vperm.slane %v633, 6
      %v642 = vperm.slane %v633, 7
      %v651 = vmul.f32 %v363, %v635
      %v652 = vmul.f32 %v364, %v636
      %v653 = vmul.f32 %v365, %v637
      %v654 = vmul.f32 %v366, %v638
      %v655 = vmul.f32 %v367, %v639
      %v656 = vmul.f32 %v368, %v640
      %v657 = vmul.f32 %v369, %v641
      %v658 = vmul.f32 %v370, %v642
      %659 = vrot.lane.b32.xlu0 %v363, 127
      %v660 = vpop.permute.xlu0 %659
      %661 = vrot.lane.b32.xlu0 %v364, 127
      %v662 = vpop.permute.xlu0 %661
      %663 = vrot.lane.b32.xlu0 %v365, 127
      %v664 = vpop.permute.xlu0 %663
      %665 = vrot.lane.b32.xlu0 %v366, 127
      %v666 = vpop.permute.xlu0 %665
      %667 = vrot.lane.b32.xlu0 %v367, 127
      %v668 = vpop.permute.xlu0 %667
      %669 = vrot.lane.b32.xlu0 %v368, 127
      %v670 = vpop.permute.xlu0 %669
      %671 = vrot.lane.b32.xlu0 %v369, 127
      %v672 = vpop.permute.xlu0 %671
      %673 = vrot.lane.b32.xlu0 %v370, 127
      %v674 = vpop.permute.xlu0 %673
      %vm675 = vcmask 1039360
      %v676 = vsel %vm675, %v660, %v662
      %v677 = vsel %vm675, %v662, %v664
      %v678 = vsel %vm675, %v664, %v666
      %v679 = vsel %vm675, %v666, %v668
      %v680 = vsel %vm675, %v668, %v670
      %v681 = vsel %vm675, %v670, %v672
      %v682 = vsel %vm675, %v672, %v674
      %v692 = vsel %vm675, %v674, %v660
      %s693 = scalar_lea.vmem %s3, 5
      %v694 = vld [vmem:[%s693] ss:$8 sm:$0xf]
      %v695 = vld [vmem:[%s693] ss:$8 sm:$0xf0]
      %v696 = vor.u32 %v694, %v695
      %v698 = vperm.slane %v696, 0
      %v699 = vperm.slane %v696, 1
      %v700 = vperm.slane %v696, 2
      %v701 = vperm.slane %v696, 3
      %v702 = vperm.slane %v696, 4
      %v703 = vperm.slane %v696, 5
      %v704 = vperm.slane %v696, 6
      %v705 = vperm.slane %v696, 7
      %v714 = vmul.f32 %v676, %v698
      %v715 = vmul.f32 %v677, %v699
      %v716 = vmul.f32 %v678, %v700
      %v717 = vmul.f32 %v679, %v701
      %v718 = vmul.f32 %v680, %v702
      %v719 = vmul.f32 %v681, %v703
      %v720 = vmul.f32 %v682, %v704
      %v721 = vmul.f32 %v692, %v705
      %722 = vrot.lane.b32.xlu0 %v363, 97
      %v723 = vpop.permute.xlu0 %722
      %724 = vrot.lane.b32.xlu0 %v364, 97
      %v725 = vpop.permute.xlu0 %724
      %726 = vrot.lane.b32.xlu0 %v365, 97
      %v727 = vpop.permute.xlu0 %726
      %728 = vrot.lane.b32.xlu0 %v366, 97
      %v729 = vpop.permute.xlu0 %728
      %730 = vrot.lane.b32.xlu0 %v367, 97
      %v731 = vpop.permute.xlu0 %730
      %732 = vrot.lane.b32.xlu0 %v368, 97
      %v733 = vpop.permute.xlu0 %732
      %734 = vrot.lane.b32.xlu0 %v369, 97
      %v735 = vpop.permute.xlu0 %734
      %736 = vrot.lane.b32.xlu0 %v370, 97
      %v737 = vpop.permute.xlu0 %736
      %vm738 = vcmask 793600
      %v739 = vsel %vm738, %v723, %v725
      %v740 = vsel %vm738, %v725, %v727
      %v741 = vsel %vm738, %v727, %v729
      %v742 = vsel %vm738, %v729, %v731
      %v743 = vsel %vm738, %v731, %v733
      %v744 = vsel %vm738, %v733, %v735
      %v745 = vsel %vm738, %v735, %v737
      %v755 = vsel %vm738, %v737, %v723
      %s756 = scalar_lea.vmem %s3, 6
      %v757 = vld [vmem:[%s756] ss:$8 sm:$0xf]
      %v758 = vld [vmem:[%s756] ss:$8 sm:$0xf0]
      %v759 = vor.u32 %v757, %v758
      %v761 = vperm.slane %v759, 0
      %v762 = vperm.slane %v759, 1
      %v763 = vperm.slane %v759, 2
      %v764 = vperm.slane %v759, 3
      %v765 = vperm.slane %v759, 4
      %v766 = vperm.slane %v759, 5
      %v767 = vperm.slane %v759, 6
      %v768 = vperm.slane %v759, 7
      %v777 = vmul.f32 %v739, %v761
      %v778 = vmul.f32 %v740, %v762
      %v779 = vmul.f32 %v741, %v763
      %v780 = vmul.f32 %v742, %v764
      %v781 = vmul.f32 %v743, %v765
      %v782 = vmul.f32 %v744, %v766
      %v783 = vmul.f32 %v745, %v767
      %v784 = vmul.f32 %v755, %v768
      %785 = vrot.lane.b32.xlu0 %v363, 96
      %v786 = vpop.permute.xlu0 %785
      %787 = vrot.lane.b32.xlu0 %v364, 96
      %v788 = vpop.permute.xlu0 %787
      %789 = vrot.lane.b32.xlu0 %v365, 96
      %v790 = vpop.permute.xlu0 %789
      %791 = vrot.lane.b32.xlu0 %v366, 96
      %v792 = vpop.permute.xlu0 %791
      %793 = vrot.lane.b32.xlu0 %v367, 96
      %v794 = vpop.permute.xlu0 %793
      %795 = vrot.lane.b32.xlu0 %v368, 96
      %v796 = vpop.permute.xlu0 %795
      %797 = vrot.lane.b32.xlu0 %v369, 96
      %v798 = vpop.permute.xlu0 %797
      %799 = vrot.lane.b32.xlu0 %v370, 96
      %v800 = vpop.permute.xlu0 %799
      %vm801 = vcmask 785408
      %v802 = vsel %vm801, %v786, %v788
      %v803 = vsel %vm801, %v788, %v790
      %v804 = vsel %vm801, %v790, %v792
      %v805 = vsel %vm801, %v792, %v794
      %v806 = vsel %vm801, %v794, %v796
      %v807 = vsel %vm801, %v796, %v798
      %v808 = vsel %vm801, %v798, %v800
      %v818 = vsel %vm801, %v800, %v786
      %s819 = scalar_lea.vmem %s3, 7
      %v820 = vld [vmem:[%s819] ss:$8 sm:$0xf]
      %v821 = vld [vmem:[%s819] ss:$8 sm:$0xf0]
      %v822 = vor.u32 %v820, %v821
      %v824 = vperm.slane %v822, 0
      %v825 = vperm.slane %v822, 1
      %v826 = vperm.slane %v822, 2
      %v827 = vperm.slane %v822, 3
      %v828 = vperm.slane %v822, 4
      %v829 = vperm.slane %v822, 5
      %v830 = vperm.slane %v822, 6
      %v831 = vperm.slane %v822, 7
      %v840 = vmul.f32 %v802, %v824
      %v841 = vmul.f32 %v803, %v825
      %v842 = vmul.f32 %v804, %v826
      %v843 = vmul.f32 %v805, %v827
      %v844 = vmul.f32 %v806, %v828
      %v845 = vmul.f32 %v807, %v829
      %v846 = vmul.f32 %v808, %v830
      %v847 = vmul.f32 %v818, %v831
      %848 = vrot.lane.b32.xlu0 %v363, 95
      %v849 = vpop.permute.xlu0 %848
      %850 = vrot.lane.b32.xlu0 %v364, 95
      %v851 = vpop.permute.xlu0 %850
      %852 = vrot.lane.b32.xlu0 %v365, 95
      %v853 = vpop.permute.xlu0 %852
      %854 = vrot.lane.b32.xlu0 %v366, 95
      %v855 = vpop.permute.xlu0 %854
      %856 = vrot.lane.b32.xlu0 %v367, 95
      %v857 = vpop.permute.xlu0 %856
      %858 = vrot.lane.b32.xlu0 %v368, 95
      %v859 = vpop.permute.xlu0 %858
      %860 = vrot.lane.b32.xlu0 %v369, 95
      %v861 = vpop.permute.xlu0 %860
      %862 = vrot.lane.b32.xlu0 %v370, 95
      %v863 = vpop.permute.xlu0 %862
      %vm864 = vcmask 777216
      %v865 = vsel %vm864, %v849, %v851
      %v866 = vsel %vm864, %v851, %v853
      %v867 = vsel %vm864, %v853, %v855
      %v868 = vsel %vm864, %v855, %v857
      %v869 = vsel %vm864, %v857, %v859
      %v870 = vsel %vm864, %v859, %v861
      %v871 = vsel %vm864, %v861, %v863
      %v881 = vsel %vm864, %v863, %v849
      %s882 = scalar_lea.vmem %s3, 64
      %v883 = vld [vmem:[%s882] ss:$8 sm:$0xf]
      %v884 = vld [vmem:[%s882] ss:$8 sm:$0xf0]
      %v885 = vor.u32 %v883, %v884
      %v887 = vperm.slane %v885, 0
      %v888 = vperm.slane %v885, 1
      %v889 = vperm.slane %v885, 2
      %v890 = vperm.slane %v885, 3
      %v891 = vperm.slane %v885, 4
      %v892 = vperm.slane %v885, 5
      %v893 = vperm.slane %v885, 6
      %v894 = vperm.slane %v885, 7
      %v903 = vmul.f32 %v865, %v887
      %v904 = vmul.f32 %v866, %v888
      %v905 = vmul.f32 %v867, %v889
      %v906 = vmul.f32 %v868, %v890
      %v907 = vmul.f32 %v869, %v891
      %v908 = vmul.f32 %v870, %v892
      %v909 = vmul.f32 %v871, %v893
      %v910 = vmul.f32 %v881, %v894
      %v911 = vld [vmem:[%s4] sm:$0xff]
      %v912 = vld [vmem:[%s5] sm:$0xff]
      %914 = vset.pattern.permute.xlu0 0
      %915 = vperm.xlu0 %914, %v912
      %v916 = vpop.permute.xlu0 %915
      %vm918 = vcmask 588800
      %v920 = vsel %vm918, %v911, 0
      %922 = vmatpush.msra.mxu0 0.0
      %923 = vmatpush.msra.mxu0 0.0
      %924 = vmatpush.msra.mxu0 0.0
      %925 = vmatpush.msra.mxu0 0.0
      %926 = vmatpush.msra.mxu0 0.0
      %927 = vmatpush.msra.mxu0 0.0
      %928 = vmatpush.msra.mxu0 0.0
      %929 = vmatpush.msra.mxu0 %v903
      %930 = vmatpush.msra.mxu0 %v840
      %931 = vmatpush.msra.mxu0 %v777
      %932 = vmatpush.msra.mxu0 %v714
      %933 = vmatpush.msra.mxu0 %v651
      %934 = vmatpush.msra.mxu0 %v622
      %935 = vmatpush.msra.mxu0 %v559
      %936 = vmatpush.msra.mxu0 %v496
      %937 = vmatpush.msra.mxu0 %v433
      %938 = vmatmul.f32.gmra.mxu0 %v920
      %v939 = vpop.f32.mrf.mxu0
      %v940 = vadd.f32 %v916, %v939
      %941 = vdwg.mxu0
      %942 = vmatpush.msra.mxu0 0.0
      %943 = vmatpush.msra.mxu0 0.0
      %944 = vmatpush.msra.mxu0 0.0
      %945 = vmatpush.msra.mxu0 0.0
      %946 = vmatpush.msra.mxu0 0.0
      %947 = vmatpush.msra.mxu0 0.0
      %948 = vmatpush.msra.mxu0 0.0
      %949 = vmatpush.msra.mxu0 %v904
      %950 = vmatpush.msra.mxu0 %v841
      %951 = vmatpush.msra.mxu0 %v778
      %952 = vmatpush.msra.mxu0 %v715
      %953 = vmatpush.msra.mxu0 %v652
      %954 = vmatpush.msra.mxu0 %v623
      %955 = vmatpush.msra.mxu0 %v560
      %956 = vmatpush.msra.mxu0 %v497
      %957 = vmatpush.msra.mxu0 %v434
      %958 = vmatmul.f32.gmra.mxu0 %v920
      %v959 = vpop.f32.mrf.mxu0
      %v960 = vadd.f32 %v916, %v959
      %961 = vdwg.mxu0
      %962 = vmatpush.msra.mxu0 0.0
      %963 = vmatpush.msra.mxu0 0.0
      %964 = vmatpush.msra.mxu0 0.0
      %965 = vmatpush.msra.mxu0 0.0
      %966 = vmatpush.msra.mxu0 0.0
      %967 = vmatpush.msra.mxu0 0.0
      %968 = vmatpush.msra.mxu0 0.0
      %969 = vmatpush.msra.mxu0 %v905
      %970 = vmatpush.msra.mxu0 %v842
      %971 = vmatpush.msra.mxu0 %v779
      %972 = vmatpush.msra.mxu0 %v716
      %973 = vmatpush.msra.mxu0 %v653
      %974 = vmatpush.msra.mxu0 %v624
      %975 = vmatpush.msra.mxu0 %v561
      %976 = vmatpush.msra.mxu0 %v498
      %977 = vmatpush.msra.mxu0 %v435
      %978 = vmatmul.f32.gmra.mxu0 %v920
      %v979 = vpop.f32.mrf.mxu0
      %v980 = vadd.f32 %v916, %v979
      %981 = vdwg.mxu0
      %982 = vmatpush.msra.mxu0 0.0
      %983 = vmatpush.msra.mxu0 0.0
      %984 = vmatpush.msra.mxu0 0.0
      %985 = vmatpush.msra.mxu0 0.0
      %986 = vmatpush.msra.mxu0 0.0
      %987 = vmatpush.msra.mxu0 0.0
      %988 = vmatpush.msra.mxu0 0.0
      %989 = vmatpush.msra.mxu0 %v906
      %990 = vmatpush.msra.mxu0 %v843
      %991 = vmatpush.msra.mxu0 %v780
      %992 = vmatpush.msra.mxu0 %v717
      %993 = vmatpush.msra.mxu0 %v654
      %994 = vmatpush.msra.mxu0 %v625
      %995 = vmatpush.msra.mxu0 %v562
      %996 = vmatpush.msra.mxu0 %v499
      %997 = vmatpush.msra.mxu0 %v436
      %998 = vmatmul.f32.gmra.mxu0 %v920
      %v999 = vpop.f32.mrf.mxu0
      %v1000 = vadd.f32 %v916, %v999
      %1001 = vdwg.mxu0
      %1002 = vmatpush.msra.mxu0 0.0
      %1003 = vmatpush.msra.mxu0 0.0
      %1004 = vmatpush.msra.mxu0 0.0
      %1005 = vmatpush.msra.mxu0 0.0
      %1006 = vmatpush.msra.mxu0 0.0
      %1007 = vmatpush.msra.mxu0 0.0
      %1008 = vmatpush.msra.mxu0 0.0
      %1009 = vmatpush.msra.mxu0 %v907
      %1010 = vmatpush.msra.mxu0 %v844
      %1011 = vmatpush.msra.mxu0 %v781
      %1012 = vmatpush.msra.mxu0 %v718
      %1013 = vmatpush.msra.mxu0 %v655
      %1014 = vmatpush.msra.mxu0 %v626
      %1015 = vmatpush.msra.mxu0 %v563
      %1016 = vmatpush.msra.mxu0 %v500
      %1017 = vmatpush.msra.mxu0 %v437
      %1018 = vmatmul.f32.gmra.mxu0 %v920
      %v1019 = vpop.f32.mrf.mxu0
      %v1020 = vadd.f32 %v916, %v1019
      %1021 = vdwg.mxu0
      %1022 = vmatpush.msra.mxu0 0.0
      %1023 = vmatpush.msra.mxu0 0.0
      %1024 = vmatpush.msra.mxu0 0.0
      %1025 = vmatpush.msra.mxu0 0.0
      %1026 = vmatpush.msra.mxu0 0.0
      %1027 = vmatpush.msra.mxu0 0.0
      %1028 = vmatpush.msra.mxu0 0.0
      %1029 = vmatpush.msra.mxu0 %v908
      %1030 = vmatpush.msra.mxu0 %v845
      %1031 = vmatpush.msra.mxu0 %v782
      %1032 = vmatpush.msra.mxu0 %v719
      %1033 = vmatpush.msra.mxu0 %v656
      %1034 = vmatpush.msra.mxu0 %v627
      %1035 = vmatpush.msra.mxu0 %v564
      %1036 = vmatpush.msra.mxu0 %v501
      %1037 = vmatpush.msra.mxu0 %v438
      %1038 = vmatmul.f32.gmra.mxu0 %v920
      %v1039 = vpop.f32.mrf.mxu0
      %v1040 = vadd.f32 %v916, %v1039
      %1041 = vdwg.mxu0
      %1042 = vmatpush.msra.mxu0 0.0
      %1043 = vmatpush.msra.mxu0 0.0
      %1044 = vmatpush.msra.mxu0 0.0
      %1045 = vmatpush.msra.mxu0 0.0
      %1046 = vmatpush.msra.mxu0 0.0
      %1047 = vmatpush.msra.mxu0 0.0
      %1048 = vmatpush.msra.mxu0 0.0
      %1049 = vmatpush.msra.mxu0 %v909
      %1050 = vmatpush.msra.mxu0 %v846
      %1051 = vmatpush.msra.mxu0 %v783
      %1052 = vmatpush.msra.mxu0 %v720
      %1053 = vmatpush.msra.mxu0 %v657
      %1054 = vmatpush.msra.mxu0 %v628
      %1055 = vmatpush.msra.mxu0 %v565
      %1056 = vmatpush.msra.mxu0 %v502
      %1057 = vmatpush.msra.mxu0 %v439
      %1058 = vmatmul.f32.gmra.mxu0 %v920
      %v1059 = vpop.f32.mrf.mxu0
      %v1060 = vadd.f32 %v916, %v1059
      %1061 = vdwg.mxu0
      %1062 = vmatpush.msra.mxu0 0.0
      %1063 = vmatpush.msra.mxu0 0.0
      %1064 = vmatpush.msra.mxu0 0.0
      %1065 = vmatpush.msra.mxu0 0.0
      %1066 = vmatpush.msra.mxu0 0.0
      %1067 = vmatpush.msra.mxu0 0.0
      %1068 = vmatpush.msra.mxu0 0.0
      %1069 = vmatpush.msra.mxu0 %v910
      %1070 = vmatpush.msra.mxu0 %v847
      %1071 = vmatpush.msra.mxu0 %v784
      %1072 = vmatpush.msra.mxu0 %v721
      %1073 = vmatpush.msra.mxu0 %v658
      %1074 = vmatpush.msra.mxu0 %v629
      %1075 = vmatpush.msra.mxu0 %v566
      %1076 = vmatpush.msra.mxu0 %v503
      %1077 = vmatpush.msra.mxu0 %v440
      %1078 = vmatmul.f32.gmra.mxu0 %v920
      %v1079 = vpop.f32.mrf.mxu0
      %v1080 = vadd.f32 %v916, %v1079
      %1081 = vdwg.mxu0
      %v1082 = vadd.f32 %v940, %v960
      %v1083 = vadd.f32 %v1082, %v980
      %v1084 = vadd.f32 %v1083, %v1000
      %v1085 = vadd.f32 %v1084, %v1020
      %v1086 = vadd.f32 %v1085, %v1040
      %v1087 = vadd.f32 %v1086, %v1060
      %v1088 = vadd.f32 %v1087, %v1080
      %1089 = vadd.xlane.f32.xlu0 %v1088
      %v1090 = vpop.xlane.xlu0 %1089
      %v1091 = vrcp.pop 1024.0
      %v1092 = vmul.f32 1024.0, %v1091
      %v1093 = vsub.f32 1.0, %v1092
      %v1094 = vmul.f32 %v1091, %v1093
      %v1095 = vadd.f32 %v1091, %v1094
      %vm1096 = vweird.f32 %v1091
      %v1097 = vsel %vm1096, %v1091, %v1095
      %v1098 = vmul.f32 %v1090, %v1097
      %v1099 = vsub.f32 %v940, %v1098
      %v1100 = vsub.f32 %v960, %v1098
      %v1101 = vsub.f32 %v980, %v1098
      %v1102 = vsub.f32 %v1000, %v1098
      %v1103 = vsub.f32 %v1020, %v1098
      %v1104 = vsub.f32 %v1040, %v1098
      %v1105 = vsub.f32 %v1060, %v1098
      %v1106 = vsub.f32 %v1080, %v1098
      %v1107 = vmul.f32 %v1099, %v1099
      %v1108 = vmul.f32 %v1100, %v1100
      %v1109 = vmul.f32 %v1101, %v1101
      %v1110 = vmul.f32 %v1102, %v1102
      %v1111 = vmul.f32 %v1103, %v1103
      %v1112 = vmul.f32 %v1104, %v1104
      %v1113 = vmul.f32 %v1105, %v1105
      %v1114 = vmul.f32 %v1106, %v1106
      %v1115 = vadd.f32 %v1107, %v1108
      %v1116 = vadd.f32 %v1115, %v1109
      %v1117 = vadd.f32 %v1116, %v1110
      %v1118 = vadd.f32 %v1117, %v1111
      %v1119 = vadd.f32 %v1118, %v1112
      %v1120 = vadd.f32 %v1119, %v1113
      %v1121 = vadd.f32 %v1120, %v1114
      %1122 = vadd.xlane.f32.xlu0 %v1121
      %v1123 = vpop.xlane.xlu0 %1122
      %v1124 = vmul.f32 %v1123, %v1097
      %1125 = vst.msk [vmem:[%s322] sm:$0xff] %vm584, %v1098
      %1126 = vst.msk [vmem:[%s326] sm:$0xff] %vm584, %v1124
      %1127 = vst [vmem:[%s318] sm:$0xff] %v940
      %1128 = vst [vmem:[%s318 + $0x8] sm:$0xff] %v960
      %1129 = vst [vmem:[%s318 + $0x10] sm:$0xff] %v980
      %1130 = vst [vmem:[%s318 + $0x18] sm:$0xff] %v1000
      %1131 = vst [vmem:[%s318 + $0x20] sm:$0xff] %v1020
      %1132 = vst [vmem:[%s318 + $0x28] sm:$0xff] %v1040
      %1133 = vst [vmem:[%s318 + $0x30] sm:$0xff] %v1060
      %1134 = vst [vmem:[%s318 + $0x38] sm:$0xff] %v1080
      %p1135 = scmp.lt.s32.totalorder %s20, 1
      %s1136 = scalar_select %p1135, %s20, 1
      %s1137 = smul.addr %s1136, 8
      %s1138 = smul.addr %s1137, 8
      %s1139 = scalar_lea.vmem %s6, %s1138
      %p1140 = scmp.lt.s32.totalorder %s20, 1
      %s1141 = scalar_select %p1140, %s20, 1
      %s1142 = smul.addr %s1141, 8
      %s1143 = scalar_lea.vmem %s7, %s1142
      %p1144 = scmp.lt.s32.totalorder %s20, 1
      %s1145 = scalar_select %p1144, %s20, 1
      %s1146 = smul.addr %s1145, 8
      %s1147 = scalar_lea.vmem %s8, %s1146
      // Predicated region
      $region45: #{disk_up_forward.5} parent=43 // pred_check
        %p1148 = pneg %p169
      $region46: #{disk_up_forward.5} parent=43 // pred_check_branch
        %1150 = sbr.rel (%p1148) target = $region48
      $region47: #{disk_up_forward.5} parent=43 // pred_region
        _
      $region48: #{disk_up_forward.5} parent=43 // pred_fallthru
        _
      // Predicated region
      $region49: #{disk_up_forward.5} parent=43 // pred_check
        %p1151 = pneg %p195
      $region50: #{disk_up_forward.5} parent=43 // pred_check_branch
        %1153 = sbr.rel (%p1151) target = $region52
      $region51: #{disk_up_forward.5} parent=43 // pred_region
        _
      $region52: #{disk_up_forward.5} parent=43 // pred_fallthru
        _
      // Predicated region
      $region53: #{disk_up_forward.5} parent=43 // pred_check
        %p1154 = pneg %p221
      $region54: #{disk_up_forward.5} parent=43 // pred_check_branch
        %1156 = sbr.rel (%p1154) target = $region56
      $region55: #{disk_up_forward.5} parent=43 // pred_region
        _
      $region56: #{disk_up_forward.5} parent=43 // pred_fallthru
        _
    $region44: #{disk_up_forward.5} parent=5 // pred_fallthru
      _
    %p1157 = scmp.le.s32.totalorder 2, %s15
    // Predicated region
    $region57: #{disk_up_forward.5} parent=5 // pred_check
      %p1158 = pneg %p1157
    $region58: #{disk_up_forward.5} parent=5 // pred_check_branch
      %1160 = sbr.rel (%p1158) target = $region60
    $region59: #{disk_up_forward.5} parent=5 // pred_region
      %s1161 = ssub.s32 %s15, 2
      // Predicated region
      $region61: #{disk_up_forward.5} parent=59 // pred_check
        %p1162 = pneg %p175
      $region62: #{disk_up_forward.5} parent=59 // pred_check_branch
        %1164 = sbr.rel (%p1162) target = $region64
      $region63: #{disk_up_forward.5} parent=59 // pred_region
        %p1165 = scmp.lt.s32.totalorder %s21, 1
        %s1166 = scalar_select %p1165, %s21, 1
        %s1167 = smul.addr %s1166, 8
        %s1168 = smul.addr %s1167, 8
        %s1169 = scalar_lea.vmem %s6, %s1168
      $region64: #{disk_up_forward.5} parent=59 // pred_fallthru
        _
      // Predicated region
      $region65: #{disk_up_forward.5} parent=59 // pred_check
        %p1170 = pneg %p201
      $region66: #{disk_up_forward.5} parent=59 // pred_check_branch
        %1172 = sbr.rel (%p1170) target = $region68
      $region67: #{disk_up_forward.5} parent=59 // pred_region
        %p1173 = scmp.lt.s32.totalorder %s21, 1
        %s1174 = scalar_select %p1173, %s21, 1
        %s1175 = smul.addr %s1174, 8
        %s1176 = scalar_lea.vmem %s7, %s1175
      $region68: #{disk_up_forward.5} parent=59 // pred_fallthru
        _
      // Predicated region
      $region69: #{disk_up_forward.5} parent=59 // pred_check
        %p1177 = pneg %p227
      $region70: #{disk_up_forward.5} parent=59 // pred_check_branch
        %1179 = sbr.rel (%p1177) target = $region72
      $region71: #{disk_up_forward.5} parent=59 // pred_region
        %p1180 = scmp.lt.s32.totalorder %s21, 1
        %s1181 = scalar_select %p1180, %s21, 1
        %s1182 = smul.addr %s1181, 8
        %s1183 = scalar_lea.vmem %s8, %s1182
      $region72: #{disk_up_forward.5} parent=59 // pred_fallthru
        _
    $region60: #{disk_up_forward.5} parent=5 // pred_fallthru
      _
  $region6: #{disk_up_forward.5} parent=0 // loop_footer
    %s19 = sadd.s32 1, %s15
  $region7: #{disk_up_forward.5} parent=0 // loop_footer_branch
    %14 = sbr.rel target = $region3
  $region8: #{disk_up_forward.5} parent=0 // loop_exit
    _

// kernel: disk_up_forward.6
$region0: #{disk_up_forward.6}
  #allocation0 [shape = 'u32[]', space=smem, size = 0x4, offset = 0x4, fixed_abs, tag = 'smem constant byte address 0x4 - core index']
  #allocation1 [shape = 'u32[72,128]{1,0:T(1,128)}', space=vmem, size = 0x9000, scoped, tag = 'internal scratch']
  %s0 = inlined_call_operand.vmem [shape: f32[2,8,1024], index: 0, kind: input, shape index: {}]
  %s1 = inlined_call_operand.vmem [shape: f32[8,1], index: 1, kind: input, shape index: {}]
  %s2 = inlined_call_operand.vmem [shape: f32[8,1], index: 2, kind: input, shape index: {}]
  %s3 = inlined_call_operand.vmem [shape: f32[9,1024], index: 3, kind: input, shape index: {}]
  %s4 = inlined_call_operand.vmem [shape: f32[4,72], index: 4, kind: input, shape index: {}]
  %s5 = inlined_call_operand.vmem [shape: f32[4,1], index: 5, kind: input, shape index: {}]
  %s6 = inlined_call_operand.vmem [shape: f32[2,4,1024], index: 6, kind: output, shape index: {0}]
  %s7 = inlined_call_operand.vmem [shape: f32[2,4,1], index: 7, kind: output, shape index: {1}]
  %s8 = inlined_call_operand.vmem [shape: f32[2,4,1], index: 8, kind: output, shape index: {2}]
  %9 = xla_tuple %s6, %s7, %s8
  %s10 = sld [smem:[#allocation0]]
  $region73: #{disk_up_forward.6} parent=0
    _
  %s12 = ssub.s32 1, %s10
  %s13 = scalar_select 0, %s12, %s10
  loop: start=0, step=1, limit=4
  $region2: #{disk_up_forward.6} parent=0 // loop_pre_header
    _
  $region3: #{disk_up_forward.6} parent=0 // loop_header
    %s15 = sphi 0, %s19
    %p16 = scmp.ge.s32.totalorder %s15, 4
    %s25 = sphi 0, %s27
    %s28 = sphi 0, %s25
    %s29 = sphi 0, %s28
    %s45 = sphi 0, %s29
    %s49 = sphi 0, %s49
    %s51 = sphi 0, %s49
    %s52 = sphi 0, %s51
    %s66 = sphi 0, %s52
    %s70 = sphi 0, %s70
    %s72 = sphi 0, %s70
    %s73 = sphi 0, %s72
    %s87 = sphi 0, %s73
    %s91 = sphi 0, %s91
    %s93 = sphi 0, %s91
    %s94 = sphi 0, %s93
    %s108 = sphi 0, %s94
    %s112 = sphi 0, %s112
    %s114 = sphi 0, %s112
    %s115 = sphi 0, %s114
    %s129 = sphi 0, %s115
    %s133 = sphi 0, %s133
    %s135 = sphi 0, %s133
    %s136 = sphi 0, %s135
    %s150 = sphi 0, %s136
    %s156 = sphi 0, %s158
    %s159 = sphi 0, %s156
    %s160 = sphi 0, %s159
    %s176 = sphi 0, %s160
    %s182 = sphi 0, %s184
    %s185 = sphi 0, %s182
    %s186 = sphi 0, %s185
    %s202 = sphi 0, %s186
    %s208 = sphi 0, %s210
    %s211 = sphi 0, %s208
    %s212 = sphi 0, %s211
    %s228 = sphi 0, %s212
  $region4: #{disk_up_forward.6} parent=0 // loop_header_branch
    %18 = sbr.rel (%p16) target = $region8
  $region5: #{disk_up_forward.6} parent=0 // loop_body
    %s20 = ssub.s32 %s15, 1
    %s21 = ssub.s32 %s15, 2
    %s22 = sadd.s32 %s15, 1
    %s23 = ssub.s32 %s15, %s22
    %p24 = scmp.eq.s32.totalorder %s23, 0
    %s26 = sadd.s32 %s25, 1
    %s27 = scalar_select %p24, %s25, %s26
    %p30 = pneg %p24
    %p31 = scmp.eq.s32.totalorder %s15, 1
    %p32 = por %p30, %p31
    %p33 = scmp.ne.s32.totalorder %s25, %s28
    %p34 = scmp.eq.s32.totalorder %s15, 0
    %p35 = por %p33, %p34
    %p36 = scmp.ne.s32.totalorder %s25, %s28
    %p37 = scmp.eq.s32.totalorder %s20, 1
    %p38 = por %p36, %p37
    %p39 = scmp.ne.s32.totalorder %s28, %s29
    %p40 = scmp.eq.s32.totalorder %s20, 0
    %p41 = por %p39, %p40
    %p42 = scmp.ne.s32.totalorder %s28, %s29
    %p43 = scmp.eq.s32.totalorder %s21, 1
    %p44 = por %p42, %p43
    %p46 = scmp.ne.s32.totalorder %s29, %s45
    %p47 = scmp.eq.s32.totalorder %s21, 0
    %p48 = por %p46, %p47
    %s50 = sadd.s32 %s49, 1
    %p53 = scmp.eq.s32.totalorder %s15, 1
    %p54 = scmp.ne.s32.totalorder %s49, %s51
    %p55 = scmp.eq.s32.totalorder %s15, 0
    %p56 = por %p54, %p55
    %p57 = scmp.ne.s32.totalorder %s49, %s51
    %p58 = scmp.eq.s32.totalorder %s20, 1
    %p59 = por %p57, %p58
    %p60 = scmp.ne.s32.totalorder %s51, %s52
    %p61 = scmp.eq.s32.totalorder %s20, 0
    %p62 = por %p60, %p61
    %p63 = scmp.ne.s32.totalorder %s51, %s52
    %p64 = scmp.eq.s32.totalorder %s21, 1
    %p65 = por %p63, %p64
    %p67 = scmp.ne.s32.totalorder %s52, %s66
    %p68 = scmp.eq.s32.totalorder %s21, 0
    %p69 = por %p67, %p68
    %s71 = sadd.s32 %s70, 1
    %p74 = scmp.eq.s32.totalorder %s15, 1
    %p75 = scmp.ne.s32.totalorder %s70, %s72
    %p76 = scmp.eq.s32.totalorder %s15, 0
    %p77 = por %p75, %p76
    %p78 = scmp.ne.s32.totalorder %s70, %s72
    %p79 = scmp.eq.s32.totalorder %s20, 1
    %p80 = por %p78, %p79
    %p81 = scmp.ne.s32.totalorder %s72, %s73
    %p82 = scmp.eq.s32.totalorder %s20, 0
    %p83 = por %p81, %p82
    %p84 = scmp.ne.s32.totalorder %s72, %s73
    %p85 = scmp.eq.s32.totalorder %s21, 1
    %p86 = por %p84, %p85
    %p88 = scmp.ne.s32.totalorder %s73, %s87
    %p89 = scmp.eq.s32.totalorder %s21, 0
    %p90 = por %p88, %p89
    %s92 = sadd.s32 %s91, 1
    %p95 = scmp.eq.s32.totalorder %s15, 1
    %p96 = scmp.ne.s32.totalorder %s91, %s93
    %p97 = scmp.eq.s32.totalorder %s15, 0
    %p98 = por %p96, %p97
    %p99 = scmp.ne.s32.totalorder %s91, %s93
    %p100 = scmp.eq.s32.totalorder %s20, 1
    %p101 = por %p99, %p100
    %p102 = scmp.ne.s32.totalorder %s93, %s94
    %p103 = scmp.eq.s32.totalorder %s20, 0
    %p104 = por %p102, %p103
    %p105 = scmp.ne.s32.totalorder %s93, %s94
    %p106 = scmp.eq.s32.totalorder %s21, 1
    %p107 = por %p105, %p106
    %p109 = scmp.ne.s32.totalorder %s94, %s108
    %p110 = scmp.eq.s32.totalorder %s21, 0
    %p111 = por %p109, %p110
    %s113 = sadd.s32 %s112, 1
    %p116 = scmp.eq.s32.totalorder %s15, 1
    %p117 = scmp.ne.s32.totalorder %s112, %s114
    %p118 = scmp.eq.s32.totalorder %s15, 0
    %p119 = por %p117, %p118
    %p120 = scmp.ne.s32.totalorder %s112, %s114
    %p121 = scmp.eq.s32.totalorder %s20, 1
    %p122 = por %p120, %p121
    %p123 = scmp.ne.s32.totalorder %s114, %s115
    %p124 = scmp.eq.s32.totalorder %s20, 0
    %p125 = por %p123, %p124
    %p126 = scmp.ne.s32.totalorder %s114, %s115
    %p127 = scmp.eq.s32.totalorder %s21, 1
    %p128 = por %p126, %p127
    %p130 = scmp.ne.s32.totalorder %s115, %s129
    %p131 = scmp.eq.s32.totalorder %s21, 0
    %p132 = por %p130, %p131
    %s134 = sadd.s32 %s133, 1
    %p137 = scmp.eq.s32.totalorder %s15, 1
    %p138 = scmp.ne.s32.totalorder %s133, %s135
    %p139 = scmp.eq.s32.totalorder %s15, 0
    %p140 = por %p138, %p139
    %p141 = scmp.ne.s32.totalorder %s133, %s135
    %p142 = scmp.eq.s32.totalorder %s20, 1
    %p143 = por %p141, %p142
    %p144 = scmp.ne.s32.totalorder %s135, %s136
    %p145 = scmp.eq.s32.totalorder %s20, 0
    %p146 = por %p144, %p145
    %p147 = scmp.ne.s32.totalorder %s135, %s136
    %p148 = scmp.eq.s32.totalorder %s21, 1
    %p149 = por %p147, %p148
    %p151 = scmp.ne.s32.totalorder %s136, %s150
    %p152 = scmp.eq.s32.totalorder %s21, 0
    %p153 = por %p151, %p152
    %s154 = ssub.s32 %s15, %s22
    %p155 = scmp.eq.s32.totalorder %s154, 0
    %s157 = sadd.s32 %s156, 1
    %s158 = scalar_select %p155, %s156, %s157
    %p161 = pneg %p155
    %p162 = scmp.eq.s32.totalorder %s15, 1
    %p163 = por %p161, %p162
    %p164 = scmp.ne.s32.totalorder %s156, %s159
    %p165 = scmp.eq.s32.totalorder %s15, 0
    %p166 = por %p164, %p165
    %p167 = scmp.ne.s32.totalorder %s156, %s159
    %p168 = scmp.eq.s32.totalorder %s20, 1
    %p169 = por %p167, %p168
    %p170 = scmp.ne.s32.totalorder %s159, %s160
    %p171 = scmp.eq.s32.totalorder %s20, 0
    %p172 = por %p170, %p171
    %p173 = scmp.ne.s32.totalorder %s159, %s160
    %p174 = scmp.eq.s32.totalorder %s21, 1
    %p175 = por %p173, %p174
    %p177 = scmp.ne.s32.totalorder %s160, %s176
    %p178 = scmp.eq.s32.totalorder %s21, 0
    %p179 = por %p177, %p178
    %s180 = ssub.s32 %s15, %s22
    %p181 = scmp.eq.s32.totalorder %s180, 0
    %s183 = sadd.s32 %s182, 1
    %s184 = scalar_select %p181, %s182, %s183
    %p187 = pneg %p181
    %p188 = scmp.eq.s32.totalorder %s15, 1
    %p189 = por %p187, %p188
    %p190 = scmp.ne.s32.totalorder %s182, %s185
    %p191 = scmp.eq.s32.totalorder %s15, 0
    %p192 = por %p190, %p191
    %p193 = scmp.ne.s32.totalorder %s182, %s185
    %p194 = scmp.eq.s32.totalorder %s20, 1
    %p195 = por %p193, %p194
    %p196 = scmp.ne.s32.totalorder %s185, %s186
    %p197 = scmp.eq.s32.totalorder %s20, 0
    %p198 = por %p196, %p197
    %p199 = scmp.ne.s32.totalorder %s185, %s186
    %p200 = scmp.eq.s32.totalorder %s21, 1
    %p201 = por %p199, %p200
    %p203 = scmp.ne.s32.totalorder %s186, %s202
    %p204 = scmp.eq.s32.totalorder %s21, 0
    %p205 = por %p203, %p204
    %s206 = ssub.s32 %s15, %s22
    %p207 = scmp.eq.s32.totalorder %s206, 0
    %s209 = sadd.s32 %s208, 1
    %s210 = scalar_select %p207, %s208, %s209
    %p213 = pneg %p207
    %p214 = scmp.eq.s32.totalorder %s15, 1
    %p215 = por %p213, %p214
    %p216 = scmp.ne.s32.totalorder %s208, %s211
    %p217 = scmp.eq.s32.totalorder %s15, 0
    %p218 = por %p216, %p217
    %p219 = scmp.ne.s32.totalorder %s208, %s211
    %p220 = scmp.eq.s32.totalorder %s20, 1
    %p221 = por %p219, %p220
    %p222 = scmp.ne.s32.totalorder %s211, %s212
    %p223 = scmp.eq.s32.totalorder %s20, 0
    %p224 = por %p222, %p223
    %p225 = scmp.ne.s32.totalorder %s211, %s212
    %p226 = scmp.eq.s32.totalorder %s21, 1
    %p227 = por %p225, %p226
    %p229 = scmp.ne.s32.totalorder %s212, %s228
    %p230 = scmp.eq.s32.totalorder %s21, 0
    %p231 = por %p229, %p230
    %p232 = scmp.le.s32.totalorder 1, %s15
    %p233 = scmp.lt.s32.totalorder %s15, 3
    %p234 = pnand %p232, %p233
    %p235 = pneg %p234
    // Predicated region
    $region9: #{disk_up_forward.6} parent=5 // pred_check
      _
    $region10: #{disk_up_forward.6} parent=5 // pred_check_branch
      %237 = sbr.rel (%p234) target = $region12
    $region11: #{disk_up_forward.6} parent=5 // pred_region
      %s238 = ssub.s32 %s15, 1
      // Predicated region
      $region13: #{disk_up_forward.6} parent=11 // pred_check
        %p239 = pneg %p62
      $region14: #{disk_up_forward.6} parent=11 // pred_check_branch
        %241 = sbr.rel (%p239) target = $region16
      $region15: #{disk_up_forward.6} parent=11 // pred_region
        _
      $region16: #{disk_up_forward.6} parent=11 // pred_fallthru
        _
      // Predicated region
      $region17: #{disk_up_forward.6} parent=11 // pred_check
        %p242 = pneg %p83
      $region18: #{disk_up_forward.6} parent=11 // pred_check_branch
        %244 = sbr.rel (%p242) target = $region20
      $region19: #{disk_up_forward.6} parent=11 // pred_region
        _
      $region20: #{disk_up_forward.6} parent=11 // pred_fallthru
        _
      // Predicated region
      $region21: #{disk_up_forward.6} parent=11 // pred_check
        %p245 = pneg %p104
      $region22: #{disk_up_forward.6} parent=11 // pred_check_branch
        %247 = sbr.rel (%p245) target = $region24
      $region23: #{disk_up_forward.6} parent=11 // pred_region
        _
      $region24: #{disk_up_forward.6} parent=11 // pred_fallthru
        _
      // Predicated region
      $region25: #{disk_up_forward.6} parent=11 // pred_check
        %p248 = pneg %p125
      $region26: #{disk_up_forward.6} parent=11 // pred_check_branch
        %250 = sbr.rel (%p248) target = $region28
      $region27: #{disk_up_forward.6} parent=11 // pred_region
        _
      $region28: #{disk_up_forward.6} parent=11 // pred_fallthru
        _
      // Predicated region
      $region29: #{disk_up_forward.6} parent=11 // pred_check
        %p251 = pneg %p146
      $region30: #{disk_up_forward.6} parent=11 // pred_check_branch
        %253 = sbr.rel (%p251) target = $region32
      $region31: #{disk_up_forward.6} parent=11 // pred_region
        _
      $region32: #{disk_up_forward.6} parent=11 // pred_fallthru
        _
    $region12: #{disk_up_forward.6} parent=5 // pred_fallthru
      _
    %p254 = scmp.lt.s32.totalorder %s15, 2
    // Predicated region
    $region33: #{disk_up_forward.6} parent=5 // pred_check
      %p255 = pneg %p254
    $region34: #{disk_up_forward.6} parent=5 // pred_check_branch
      %257 = sbr.rel (%p255) target = $region36
    $region35: #{disk_up_forward.6} parent=5 // pred_region
      // Predicated region
      $region37: #{disk_up_forward.6} parent=35 // pred_check
        %p258 = pneg %p35
      $region38: #{disk_up_forward.6} parent=35 // pred_check_branch
        %260 = sbr.rel (%p258) target = $region40
      $region39: #{disk_up_forward.6} parent=35 // pred_region
        %p261 = scmp.lt.s32.totalorder %s15, 1
        %s262 = scalar_select %p261, %s15, 1
        %s263 = smul.addr %s262, 8
        %s264 = smul.addr %s263, 8
        %s265 = scalar_lea.vmem %s0, %s264
      $region40: #{disk_up_forward.6} parent=35 // pred_fallthru
        _
    $region36: #{disk_up_forward.6} parent=5 // pred_fallthru
      _
    %p266 = scmp.le.s32.totalorder 1, %s15
    %p267 = scmp.lt.s32.totalorder %s15, 3
    %p268 = pnand %p266, %p267
    %p269 = pneg %p268
    // Predicated region
    $region41: #{disk_up_forward.6} parent=5 // pred_check
      _
    $region42: #{disk_up_forward.6} parent=5 // pred_check_branch
      %271 = sbr.rel (%p268) target = $region44
    $region43: #{disk_up_forward.6} parent=5 // pred_region
      %s272 = ssub.s32 %s15, 1
      %p273 = scmp.lt.s32.totalorder %s20, 1
      %s274 = scalar_select %p273, %s20, 1
      %s275 = smul.addr %s274, 8
      %s276 = smul.addr %s275, 8
      %s277 = scalar_lea.vmem %s0, %s276
      %p278 = pneg %p41
      %p279 = pneg %p38
      %p280 = pneg %p62
      %p281 = pneg %p59
      %p282 = pneg %p83
      %p283 = pneg %p80
      %p284 = pneg %p104
      %p285 = pneg %p101
      %p286 = pneg %p125
      %p287 = pneg %p122
      %p288 = pneg %p146
      %p289 = pneg %p143
      %p290 = pneg %p172
      %p291 = pneg %p169
      %p292 = scmp.lt.s32.totalorder %s20, 1
      %s293 = scalar_select %p292, %s20, 1
      %s294 = smul.addr %s293, 8
      %s295 = smul.addr %s294, 4
      %s296 = scalar_lea.vmem %s6, %s295
      %p297 = pneg %p198
      %p298 = pneg %p195
      %p299 = scmp.lt.s32.totalorder %s20, 1
      %s300 = scalar_select %p299, %s20, 1
      %s301 = smul.addr %s300, 4
      %s302 = scalar_lea.vmem %s7, %s301
      %p303 = pneg %p224
      %p304 = pneg %p221
      %p305 = scmp.lt.s32.totalorder %s20, 1
      %s306 = scalar_select %p305, %s20, 1
      %s307 = smul.addr %s306, 4
      %s308 = scalar_lea.vmem %s8, %s307
      %p309 = scmp.lt.s32.totalorder %s20, 1
      %s310 = scalar_select %p309, %s20, 1
      %s311 = smul.addr %s310, 8
      %s312 = smul.addr %s311, 8
      %s313 = scalar_lea.vmem %s0, %s312
      %p314 = scmp.lt.s32.totalorder %s20, 1
      %s315 = scalar_select %p314, %s20, 1
      %s316 = smul.addr %s315, 8
      %s317 = smul.addr %s316, 4
      %s318 = scalar_lea.vmem %s6, %s317
      %p319 = scmp.lt.s32.totalorder %s20, 1
      %s320 = scalar_select %p319, %s20, 1
      %s321 = smul.addr %s320, 4
      %s322 = scalar_lea.vmem %s7, %s321
      %p323 = scmp.lt.s32.totalorder %s20, 1
      %s324 = scalar_select %p323, %s20, 1
      %s325 = smul.addr %s324, 4
      %s326 = scalar_lea.vmem %s8, %s325
      %v327 = vld [vmem:[%s313] sm:$0xff]
      %v328 = vld [vmem:[%s313 + $0x8] sm:$0xff]
      %v329 = vld [vmem:[%s313 + $0x10] sm:$0xff]
      %v330 = vld [vmem:[%s313 + $0x18] sm:$0xff]
      %v331 = vld [vmem:[%s313 + $0x20] sm:$0xff]
      %v332 = vld [vmem:[%s313 + $0x28] sm:$0xff]
      %v333 = vld [vmem:[%s313 + $0x30] sm:$0xff]
      %v334 = vld [vmem:[%s313 + $0x38] sm:$0xff]
      %v335 = vld [vmem:[%s1] sm:$0xff]
      %337 = vset.pattern.permute.xlu0 0
      %338 = vperm.xlu0 %337, %v335
      %v339 = vpop.permute.xlu0 %338
      %v341 = vmul.f32 %v327, %v339
      %v342 = vmul.f32 %v328, %v339
      %v343 = vmul.f32 %v329, %v339
      %v344 = vmul.f32 %v330, %v339
      %v345 = vmul.f32 %v331, %v339
      %v346 = vmul.f32 %v332, %v339
      %v347 = vmul.f32 %v333, %v339
      %v348 = vmul.f32 %v334, %v339
      %v349 = vld [vmem:[%s2] sm:$0xff]
      %351 = vset.pattern.permute.xlu0 0
      %352 = vperm.xlu0 %351, %v349
      %v353 = vpop.permute.xlu0 %352
      %v355 = vadd.f32 %v341, %v353
      %v356 = vadd.f32 %v342, %v353
      %v357 = vadd.f32 %v343, %v353
      %v358 = vadd.f32 %v344, %v353
      %v359 = vadd.f32 %v345, %v353
      %v360 = vadd.f32 %v346, %v353
      %v361 = vadd.f32 %v347, %v353
      %v362 = vadd.f32 %v348, %v353
      %v363 = vmax.f32 %v355, 0.0
      %v364 = vmax.f32 %v356, 0.0
      %v365 = vmax.f32 %v357, 0.0
      %v366 = vmax.f32 %v358, 0.0
      %v367 = vmax.f32 %v359, 0.0
      %v368 = vmax.f32 %v360, 0.0
      %v369 = vmax.f32 %v361, 0.0
      %v370 = vmax.f32 %v362, 0.0
      %372 = vrot.lane.b32.xlu0 %v370, 33
      %v373 = vpop.permute.xlu0 %372
      %382 = vrot.lane.b32.xlu0 %v363, 33
      %v383 = vpop.permute.xlu0 %382
      %384 = vrot.lane.b32.xlu0 %v364, 33
      %v385 = vpop.permute.xlu0 %384
      %386 = vrot.lane.b32.xlu0 %v365, 33
      %v387 = vpop.permute.xlu0 %386
      %388 = vrot.lane.b32.xlu0 %v366, 33
      %v389 = vpop.permute.xlu0 %388
      %390 = vrot.lane.b32.xlu0 %v367, 33
      %v391 = vpop.permute.xlu0 %390
      %392 = vrot.lane.b32.xlu0 %v368, 33
      %v393 = vpop.permute.xlu0 %392
      %394 = vrot.lane.b32.xlu0 %v369, 33
      %v395 = vpop.permute.xlu0 %394
      %vm396 = vcmask 269312
      %v397 = vsel %vm396, %v383, %v385
      %v398 = vsel %vm396, %v385, %v387
      %v399 = vsel %vm396, %v387, %v389
      %v400 = vsel %vm396, %v389, %v391
      %v401 = vsel %vm396, %v391, %v393
      %v402 = vsel %vm396, %v393, %v395
      %v403 = vsel %vm396, %v395, %v373
      %v412 = vsel %vm396, %v373, %v383
      %v413 = vld [vmem:[%s3] ss:$8 sm:$0xf]
      %v414 = vld [vmem:[%s3] ss:$8 sm:$0xf0]
      %v415 = vor.u32 %v413, %v414
      %v417 = vperm.slane %v415, 0
      %v418 = vperm.slane %v415, 1
      %v419 = vperm.slane %v415, 2
      %v420 = vperm.slane %v415, 3
      %v421 = vperm.slane %v415, 4
      %v422 = vperm.slane %v415, 5
      %v423 = vperm.slane %v415, 6
      %v424 = vperm.slane %v415, 7
      %v433 = vmul.f32 %v412, %v417
      %v434 = vmul.f32 %v397, %v418
      %v435 = vmul.f32 %v398, %v419
      %v436 = vmul.f32 %v399, %v420
      %v437 = vmul.f32 %v400, %v421
      %v438 = vmul.f32 %v401, %v422
      %v439 = vmul.f32 %v402, %v423
      %v440 = vmul.f32 %v403, %v424
      %441 = vrot.lane.b32.xlu0 %v370, 32
      %v442 = vpop.permute.xlu0 %441
      %444 = vrot.lane.b32.xlu0 %v363, 32
      %v445 = vpop.permute.xlu0 %444
      %446 = vrot.lane.b32.xlu0 %v364, 32
      %v447 = vpop.permute.xlu0 %446
      %448 = vrot.lane.b32.xlu0 %v365, 32
      %v449 = vpop.permute.xlu0 %448
      %450 = vrot.lane.b32.xlu0 %v366, 32
      %v451 = vpop.permute.xlu0 %450
      %452 = vrot.lane.b32.xlu0 %v367, 32
      %v453 = vpop.permute.xlu0 %452
      %454 = vrot.lane.b32.xlu0 %v368, 32
      %v455 = vpop.permute.xlu0 %454
      %456 = vrot.lane.b32.xlu0 %v369, 32
      %v457 = vpop.permute.xlu0 %456
      %vm458 = vcmask 261120
      %v459 = vsel %vm458, %v445, %v447
      %v460 = vsel %vm458, %v447, %v449
      %v461 = vsel %vm458, %v449, %v451
      %v462 = vsel %vm458, %v451, %v453
      %v463 = vsel %vm458, %v453, %v455
      %v464 = vsel %vm458, %v455, %v457
      %v465 = vsel %vm458, %v457, %v442
      %v474 = vsel %vm458, %v442, %v445
      %s475 = scalar_lea.vmem %s3, 1
      %v476 = vld [vmem:[%s475] ss:$8 sm:$0xf]
      %v477 = vld [vmem:[%s475] ss:$8 sm:$0xf0]
      %v478 = vor.u32 %v476, %v477
      %v480 = vperm.slane %v478, 0
      %v481 = vperm.slane %v478, 1
      %v482 = vperm.slane %v478, 2
      %v483 = vperm.slane %v478, 3
      %v484 = vperm.slane %v478, 4
      %v485 = vperm.slane %v478, 5
      %v486 = vperm.slane %v478, 6
      %v487 = vperm.slane %v478, 7
      %v496 = vmul.f32 %v474, %v480
      %v497 = vmul.f32 %v459, %v481
      %v498 = vmul.f32 %v460, %v482
      %v499 = vmul.f32 %v461, %v483
      %v500 = vmul.f32 %v462, %v484
      %v501 = vmul.f32 %v463, %v485
      %v502 = vmul.f32 %v464, %v486
      %v503 = vmul.f32 %v465, %v487
      %504 = vrot.lane.b32.xlu0 %v370, 31
      %v505 = vpop.permute.xlu0 %504
      %507 = vrot.lane.b32.xlu0 %v363, 31
      %v508 = vpop.permute.xlu0 %507
      %509 = vrot.lane.b32.xlu0 %v364, 31
      %v510 = vpop.permute.xlu0 %509
      %511 = vrot.lane.b32.xlu0 %v365, 31
      %v512 = vpop.permute.xlu0 %511
      %513 = vrot.lane.b32.xlu0 %v366, 31
      %v514 = vpop.permute.xlu0 %513
      %515 = vrot.lane.b32.xlu0 %v367, 31
      %v516 = vpop.permute.xlu0 %515
      %517 = vrot.lane.b32.xlu0 %v368, 31
      %v518 = vpop.permute.xlu0 %517
      %519 = vrot.lane.b32.xlu0 %v369, 31
      %v520 = vpop.permute.xlu0 %519
      %vm521 = vcmask 252928
      %v522 = vsel %vm521, %v508, %v510
      %v523 = vsel %vm521, %v510, %v512
      %v524 = vsel %vm521, %v512, %v514
      %v525 = vsel %vm521, %v514, %v516
      %v526 = vsel %vm521, %v516, %v518
      %v527 = vsel %vm521, %v518, %v520
      %v528 = vsel %vm521, %v520, %v505
      %v537 = vsel %vm521, %v505, %v508
      %s538 = scalar_lea.vmem %s3, 2
      %v539 = vld [vmem:[%s538] ss:$8 sm:$0xf]
      %v540 = vld [vmem:[%s538] ss:$8 sm:$0xf0]
      %v541 = vor.u32 %v539, %v540
      %v543 = vperm.slane %v541, 0
      %v544 = vperm.slane %v541, 1
      %v545 = vperm.slane %v541, 2
      %v546 = vperm.slane %v541, 3
      %v547 = vperm.slane %v541, 4
      %v548 = vperm.slane %v541, 5
      %v549 = vperm.slane %v541, 6
      %v550 = vperm.slane %v541, 7
      %v559 = vmul.f32 %v537, %v543
      %v560 = vmul.f32 %v522, %v544
      %v561 = vmul.f32 %v523, %v545
      %v562 = vmul.f32 %v524, %v546
      %v563 = vmul.f32 %v525, %v547
      %v564 = vmul.f32 %v526, %v548
      %v565 = vmul.f32 %v527, %v549
      %v566 = vmul.f32 %v528, %v550
      %567 = vrot.lane.b32.xlu0 %v370, 1
      %v568 = vpop.permute.xlu0 %567
      %570 = vrot.lane.b32.xlu0 %v363, 1
      %v571 = vpop.permute.xlu0 %570
      %572 = vrot.lane.b32.xlu0 %v364, 1
      %v573 = vpop.permute.xlu0 %572
      %574 = vrot.lane.b32.xlu0 %v365, 1
      %v575 = vpop.permute.xlu0 %574
      %576 = vrot.lane.b32.xlu0 %v366, 1
      %v577 = vpop.permute.xlu0 %576
      %578 = vrot.lane.b32.xlu0 %v367, 1
      %v579 = vpop.permute.xlu0 %578
      %580 = vrot.lane.b32.xlu0 %v368, 1
      %v581 = vpop.permute.xlu0 %580
      %582 = vrot.lane.b32.xlu0 %v369, 1
      %v583 = vpop.permute.xlu0 %582
      %vm584 = vcmask 7168
      %v585 = vsel %vm584, %v571, %v573
      %v586 = vsel %vm584, %v573, %v575
      %v587 = vsel %vm584, %v575, %v577
      %v588 = vsel %vm584, %v577, %v579
      %v589 = vsel %vm584, %v579, %v581
      %v590 = vsel %vm584, %v581, %v583
      %v591 = vsel %vm584, %v583, %v568
      %v600 = vsel %vm584, %v568, %v571
      %s601 = scalar_lea.vmem %s3, 3
      %v602 = vld [vmem:[%s601] ss:$8 sm:$0xf]
      %v603 = vld [vmem:[%s601] ss:$8 sm:$0xf0]
      %v604 = vor.u32 %v602, %v603
      %v606 = vperm.slane %v604, 0
      %v607 = vperm.slane %v604, 1
      %v608 = vperm.slane %v604, 2
      %v609 = vperm.slane %v604, 3
      %v610 = vperm.slane %v604, 4
      %v611 = vperm.slane %v604, 5
      %v612 = vperm.slane %v604, 6
      %v613 = vperm.slane %v604, 7
      %v622 = vmul.f32 %v600, %v606
      %v623 = vmul.f32 %v585, %v607
      %v624 = vmul.f32 %v586, %v608
      %v625 = vmul.f32 %v587, %v609
      %v626 = vmul.f32 %v588, %v610
      %v627 = vmul.f32 %v589, %v611
      %v628 = vmul.f32 %v590, %v612
      %v629 = vmul.f32 %v591, %v613
      %s630 = scalar_lea.vmem %s3, 4
      %v631 = vld [vmem:[%s630] ss:$8 sm:$0xf]
      %v632 = vld [vmem:[%s630] ss:$8 sm:$0xf0]
      %v633 = vor.u32 %v631, %v632
      %v635 = vperm.slane %v633, 0
      %v636 = vperm.slane %v633, 1
      %v637 = vperm.slane %v633, 2
      %v638 = vperm.slane %v633, 3
      %v639 = vperm.slane %v633, 4
      %v640 = vperm.slane %v633, 5
      %v641 = vperm.slane %v633, 6
      %v642 = vperm.slane %v633, 7
      %v651 = vmul.f32 %v363, %v635
      %v652 = vmul.f32 %v364, %v636
      %v653 = vmul.f32 %v365, %v637
      %v654 = vmul.f32 %v366, %v638
      %v655 = vmul.f32 %v367, %v639
      %v656 = vmul.f32 %v368, %v640
      %v657 = vmul.f32 %v369, %v641
      %v658 = vmul.f32 %v370, %v642
      %659 = vrot.lane.b32.xlu0 %v363, 127
      %v660 = vpop.permute.xlu0 %659
      %661 = vrot.lane.b32.xlu0 %v364, 127
      %v662 = vpop.permute.xlu0 %661
      %663 = vrot.lane.b32.xlu0 %v365, 127
      %v664 = vpop.permute.xlu0 %663
      %665 = vrot.lane.b32.xlu0 %v366, 127
      %v666 = vpop.permute.xlu0 %665
      %667 = vrot.lane.b32.xlu0 %v367, 127
      %v668 = vpop.permute.xlu0 %667
      %669 = vrot.lane.b32.xlu0 %v368, 127
      %v670 = vpop.permute.xlu0 %669
      %671 = vrot.lane.b32.xlu0 %v369, 127
      %v672 = vpop.permute.xlu0 %671
      %673 = vrot.lane.b32.xlu0 %v370, 127
      %v674 = vpop.permute.xlu0 %673
      %vm675 = vcmask 1039360
      %v676 = vsel %vm675, %v660, %v662
      %v677 = vsel %vm675, %v662, %v664
      %v678 = vsel %vm675, %v664, %v666
      %v679 = vsel %vm675, %v666, %v668
      %v680 = vsel %vm675, %v668, %v670
      %v681 = vsel %vm675, %v670, %v672
      %v682 = vsel %vm675, %v672, %v674
      %v692 = vsel %vm675, %v674, %v660
      %s693 = scalar_lea.vmem %s3, 5
      %v694 = vld [vmem:[%s693] ss:$8 sm:$0xf]
      %v695 = vld [vmem:[%s693] ss:$8 sm:$0xf0]
      %v696 = vor.u32 %v694, %v695
      %v698 = vperm.slane %v696, 0
      %v699 = vperm.slane %v696, 1
      %v700 = vperm.slane %v696, 2
      %v701 = vperm.slane %v696, 3
      %v702 = vperm.slane %v696, 4
      %v703 = vperm.slane %v696, 5
      %v704 = vperm.slane %v696, 6
      %v705 = vperm.slane %v696, 7
      %v714 = vmul.f32 %v676, %v698
      %v715 = vmul.f32 %v677, %v699
      %v716 = vmul.f32 %v678, %v700
      %v717 = vmul.f32 %v679, %v701
      %v718 = vmul.f32 %v680, %v702
      %v719 = vmul.f32 %v681, %v703
      %v720 = vmul.f32 %v682, %v704
      %v721 = vmul.f32 %v692, %v705
      %722 = vrot.lane.b32.xlu0 %v363, 97
      %v723 = vpop.permute.xlu0 %722
      %724 = vrot.lane.b32.xlu0 %v364, 97
      %v725 = vpop.permute.xlu0 %724
      %726 = vrot.lane.b32.xlu0 %v365, 97
      %v727 = vpop.permute.xlu0 %726
      %728 = vrot.lane.b32.xlu0 %v366, 97
      %v729 = vpop.permute.xlu0 %728
      %730 = vrot.lane.b32.xlu0 %v367, 97
      %v731 = vpop.permute.xlu0 %730
      %732 = vrot.lane.b32.xlu0 %v368, 97
      %v733 = vpop.permute.xlu0 %732
      %734 = vrot.lane.b32.xlu0 %v369, 97
      %v735 = vpop.permute.xlu0 %734
      %736 = vrot.lane.b32.xlu0 %v370, 97
      %v737 = vpop.permute.xlu0 %736
      %vm738 = vcmask 793600
      %v739 = vsel %vm738, %v723, %v725
      %v740 = vsel %vm738, %v725, %v727
      %v741 = vsel %vm738, %v727, %v729
      %v742 = vsel %vm738, %v729, %v731
      %v743 = vsel %vm738, %v731, %v733
      %v744 = vsel %vm738, %v733, %v735
      %v745 = vsel %vm738, %v735, %v737
      %v755 = vsel %vm738, %v737, %v723
      %s756 = scalar_lea.vmem %s3, 6
      %v757 = vld [vmem:[%s756] ss:$8 sm:$0xf]
      %v758 = vld [vmem:[%s756] ss:$8 sm:$0xf0]
      %v759 = vor.u32 %v757, %v758
      %v761 = vperm.slane %v759, 0
      %v762 = vperm.slane %v759, 1
      %v763 = vperm.slane %v759, 2
      %v764 = vperm.slane %v759, 3
      %v765 = vperm.slane %v759, 4
      %v766 = vperm.slane %v759, 5
      %v767 = vperm.slane %v759, 6
      %v768 = vperm.slane %v759, 7
      %v777 = vmul.f32 %v739, %v761
      %v778 = vmul.f32 %v740, %v762
      %v779 = vmul.f32 %v741, %v763
      %v780 = vmul.f32 %v742, %v764
      %v781 = vmul.f32 %v743, %v765
      %v782 = vmul.f32 %v744, %v766
      %v783 = vmul.f32 %v745, %v767
      %v784 = vmul.f32 %v755, %v768
      %785 = vrot.lane.b32.xlu0 %v363, 96
      %v786 = vpop.permute.xlu0 %785
      %787 = vrot.lane.b32.xlu0 %v364, 96
      %v788 = vpop.permute.xlu0 %787
      %789 = vrot.lane.b32.xlu0 %v365, 96
      %v790 = vpop.permute.xlu0 %789
      %791 = vrot.lane.b32.xlu0 %v366, 96
      %v792 = vpop.permute.xlu0 %791
      %793 = vrot.lane.b32.xlu0 %v367, 96
      %v794 = vpop.permute.xlu0 %793
      %795 = vrot.lane.b32.xlu0 %v368, 96
      %v796 = vpop.permute.xlu0 %795
      %797 = vrot.lane.b32.xlu0 %v369, 96
      %v798 = vpop.permute.xlu0 %797
      %799 = vrot.lane.b32.xlu0 %v370, 96
      %v800 = vpop.permute.xlu0 %799
      %vm801 = vcmask 785408
      %v802 = vsel %vm801, %v786, %v788
      %v803 = vsel %vm801, %v788, %v790
      %v804 = vsel %vm801, %v790, %v792
      %v805 = vsel %vm801, %v792, %v794
      %v806 = vsel %vm801, %v794, %v796
      %v807 = vsel %vm801, %v796, %v798
      %v808 = vsel %vm801, %v798, %v800
      %v818 = vsel %vm801, %v800, %v786
      %s819 = scalar_lea.vmem %s3, 7
      %v820 = vld [vmem:[%s819] ss:$8 sm:$0xf]
      %v821 = vld [vmem:[%s819] ss:$8 sm:$0xf0]
      %v822 = vor.u32 %v820, %v821
      %v824 = vperm.slane %v822, 0
      %v825 = vperm.slane %v822, 1
      %v826 = vperm.slane %v822, 2
      %v827 = vperm.slane %v822, 3
      %v828 = vperm.slane %v822, 4
      %v829 = vperm.slane %v822, 5
      %v830 = vperm.slane %v822, 6
      %v831 = vperm.slane %v822, 7
      %v840 = vmul.f32 %v802, %v824
      %v841 = vmul.f32 %v803, %v825
      %v842 = vmul.f32 %v804, %v826
      %v843 = vmul.f32 %v805, %v827
      %v844 = vmul.f32 %v806, %v828
      %v845 = vmul.f32 %v807, %v829
      %v846 = vmul.f32 %v808, %v830
      %v847 = vmul.f32 %v818, %v831
      %848 = vrot.lane.b32.xlu0 %v363, 95
      %v849 = vpop.permute.xlu0 %848
      %850 = vrot.lane.b32.xlu0 %v364, 95
      %v851 = vpop.permute.xlu0 %850
      %852 = vrot.lane.b32.xlu0 %v365, 95
      %v853 = vpop.permute.xlu0 %852
      %854 = vrot.lane.b32.xlu0 %v366, 95
      %v855 = vpop.permute.xlu0 %854
      %856 = vrot.lane.b32.xlu0 %v367, 95
      %v857 = vpop.permute.xlu0 %856
      %858 = vrot.lane.b32.xlu0 %v368, 95
      %v859 = vpop.permute.xlu0 %858
      %860 = vrot.lane.b32.xlu0 %v369, 95
      %v861 = vpop.permute.xlu0 %860
      %862 = vrot.lane.b32.xlu0 %v370, 95
      %v863 = vpop.permute.xlu0 %862
      %vm864 = vcmask 777216
      %v865 = vsel %vm864, %v849, %v851
      %v866 = vsel %vm864, %v851, %v853
      %v867 = vsel %vm864, %v853, %v855
      %v868 = vsel %vm864, %v855, %v857
      %v869 = vsel %vm864, %v857, %v859
      %v870 = vsel %vm864, %v859, %v861
      %v871 = vsel %vm864, %v861, %v863
      %v881 = vsel %vm864, %v863, %v849
      %s882 = scalar_lea.vmem %s3, 64
      %v883 = vld [vmem:[%s882] ss:$8 sm:$0xf]
      %v884 = vld [vmem:[%s882] ss:$8 sm:$0xf0]
      %v885 = vor.u32 %v883, %v884
      %v887 = vperm.slane %v885, 0
      %v888 = vperm.slane %v885, 1
      %v889 = vperm.slane %v885, 2
      %v890 = vperm.slane %v885, 3
      %v891 = vperm.slane %v885, 4
      %v892 = vperm.slane %v885, 5
      %v893 = vperm.slane %v885, 6
      %v894 = vperm.slane %v885, 7
      %v903 = vmul.f32 %v865, %v887
      %v904 = vmul.f32 %v866, %v888
      %v905 = vmul.f32 %v867, %v889
      %v906 = vmul.f32 %v868, %v890
      %v907 = vmul.f32 %v869, %v891
      %v908 = vmul.f32 %v870, %v892
      %v909 = vmul.f32 %v871, %v893
      %v910 = vmul.f32 %v881, %v894
      %v911 = vld [vmem:[%s4] sm:$0xf]
      %v912 = vld [vmem:[%s5] sm:$0xf]
      %914 = vset.pattern.permute.xlu0 0
      %915 = vperm.xlu0 %914, %v912
      %v916 = vpop.permute.xlu0 %915
      %vm918 = vcmask 588800
      %v920 = vsel %vm918, %v911, 0
      %922 = vmatpush.msra.mxu0 0.0
      %923 = vmatpush.msra.mxu0 0.0
      %924 = vmatpush.msra.mxu0 0.0
      %925 = vmatpush.msra.mxu0 0.0
      %926 = vmatpush.msra.mxu0 0.0
      %927 = vmatpush.msra.mxu0 0.0
      %928 = vmatpush.msra.mxu0 0.0
      %929 = vmatpush.msra.mxu0 %v903
      %930 = vmatpush.msra.mxu0 %v840
      %931 = vmatpush.msra.mxu0 %v777
      %932 = vmatpush.msra.mxu0 %v714
      %933 = vmatpush.msra.mxu0 %v651
      %934 = vmatpush.msra.mxu0 %v622
      %935 = vmatpush.msra.mxu0 %v559
      %936 = vmatpush.msra.mxu0 %v496
      %937 = vmatpush.msra.mxu0 %v433
      %938 = vmatmul.f32.gmra.mxu0 %v920
      %v939 = vpop.f32.mrf.mxu0
      %v940 = vadd.f32 %v916, %v939
      %941 = vdwg.mxu0
      %942 = vmatpush.msra.mxu0 0.0
      %943 = vmatpush.msra.mxu0 0.0
      %944 = vmatpush.msra.mxu0 0.0
      %945 = vmatpush.msra.mxu0 0.0
      %946 = vmatpush.msra.mxu0 0.0
      %947 = vmatpush.msra.mxu0 0.0
      %948 = vmatpush.msra.mxu0 0.0
      %949 = vmatpush.msra.mxu0 %v904
      %950 = vmatpush.msra.mxu0 %v841
      %951 = vmatpush.msra.mxu0 %v778
      %952 = vmatpush.msra.mxu0 %v715
      %953 = vmatpush.msra.mxu0 %v652
      %954 = vmatpush.msra.mxu0 %v623
      %955 = vmatpush.msra.mxu0 %v560
      %956 = vmatpush.msra.mxu0 %v497
      %957 = vmatpush.msra.mxu0 %v434
      %958 = vmatmul.f32.gmra.mxu0 %v920
      %v959 = vpop.f32.mrf.mxu0
      %v960 = vadd.f32 %v916, %v959
      %961 = vdwg.mxu0
      %962 = vmatpush.msra.mxu0 0.0
      %963 = vmatpush.msra.mxu0 0.0
      %964 = vmatpush.msra.mxu0 0.0
      %965 = vmatpush.msra.mxu0 0.0
      %966 = vmatpush.msra.mxu0 0.0
      %967 = vmatpush.msra.mxu0 0.0
      %968 = vmatpush.msra.mxu0 0.0
      %969 = vmatpush.msra.mxu0 %v905
      %970 = vmatpush.msra.mxu0 %v842
      %971 = vmatpush.msra.mxu0 %v779
      %972 = vmatpush.msra.mxu0 %v716
      %973 = vmatpush.msra.mxu0 %v653
      %974 = vmatpush.msra.mxu0 %v624
      %975 = vmatpush.msra.mxu0 %v561
      %976 = vmatpush.msra.mxu0 %v498
      %977 = vmatpush.msra.mxu0 %v435
      %978 = vmatmul.f32.gmra.mxu0 %v920
      %v979 = vpop.f32.mrf.mxu0
      %v980 = vadd.f32 %v916, %v979
      %981 = vdwg.mxu0
      %982 = vmatpush.msra.mxu0 0.0
      %983 = vmatpush.msra.mxu0 0.0
      %984 = vmatpush.msra.mxu0 0.0
      %985 = vmatpush.msra.mxu0 0.0
      %986 = vmatpush.msra.mxu0 0.0
      %987 = vmatpush.msra.mxu0 0.0
      %988 = vmatpush.msra.mxu0 0.0
      %989 = vmatpush.msra.mxu0 %v906
      %990 = vmatpush.msra.mxu0 %v843
      %991 = vmatpush.msra.mxu0 %v780
      %992 = vmatpush.msra.mxu0 %v717
      %993 = vmatpush.msra.mxu0 %v654
      %994 = vmatpush.msra.mxu0 %v625
      %995 = vmatpush.msra.mxu0 %v562
      %996 = vmatpush.msra.mxu0 %v499
      %997 = vmatpush.msra.mxu0 %v436
      %998 = vmatmul.f32.gmra.mxu0 %v920
      %v999 = vpop.f32.mrf.mxu0
      %v1000 = vadd.f32 %v916, %v999
      %1001 = vdwg.mxu0
      %1002 = vmatpush.msra.mxu0 0.0
      %1003 = vmatpush.msra.mxu0 0.0
      %1004 = vmatpush.msra.mxu0 0.0
      %1005 = vmatpush.msra.mxu0 0.0
      %1006 = vmatpush.msra.mxu0 0.0
      %1007 = vmatpush.msra.mxu0 0.0
      %1008 = vmatpush.msra.mxu0 0.0
      %1009 = vmatpush.msra.mxu0 %v907
      %1010 = vmatpush.msra.mxu0 %v844
      %1011 = vmatpush.msra.mxu0 %v781
      %1012 = vmatpush.msra.mxu0 %v718
      %1013 = vmatpush.msra.mxu0 %v655
      %1014 = vmatpush.msra.mxu0 %v626
      %1015 = vmatpush.msra.mxu0 %v563
      %1016 = vmatpush.msra.mxu0 %v500
      %1017 = vmatpush.msra.mxu0 %v437
      %1018 = vmatmul.f32.gmra.mxu0 %v920
      %v1019 = vpop.f32.mrf.mxu0
      %v1020 = vadd.f32 %v916, %v1019
      %1021 = vdwg.mxu0
      %1022 = vmatpush.msra.mxu0 0.0
      %1023 = vmatpush.msra.mxu0 0.0
      %1024 = vmatpush.msra.mxu0 0.0
      %1025 = vmatpush.msra.mxu0 0.0
      %1026 = vmatpush.msra.mxu0 0.0
      %1027 = vmatpush.msra.mxu0 0.0
      %1028 = vmatpush.msra.mxu0 0.0
      %1029 = vmatpush.msra.mxu0 %v908
      %1030 = vmatpush.msra.mxu0 %v845
      %1031 = vmatpush.msra.mxu0 %v782
      %1032 = vmatpush.msra.mxu0 %v719
      %1033 = vmatpush.msra.mxu0 %v656
      %1034 = vmatpush.msra.mxu0 %v627
      %1035 = vmatpush.msra.mxu0 %v564
      %1036 = vmatpush.msra.mxu0 %v501
      %1037 = vmatpush.msra.mxu0 %v438
      %1038 = vmatmul.f32.gmra.mxu0 %v920
      %v1039 = vpop.f32.mrf.mxu0
      %v1040 = vadd.f32 %v916, %v1039
      %1041 = vdwg.mxu0
      %1042 = vmatpush.msra.mxu0 0.0
      %1043 = vmatpush.msra.mxu0 0.0
      %1044 = vmatpush.msra.mxu0 0.0
      %1045 = vmatpush.msra.mxu0 0.0
      %1046 = vmatpush.msra.mxu0 0.0
      %1047 = vmatpush.msra.mxu0 0.0
      %1048 = vmatpush.msra.mxu0 0.0
      %1049 = vmatpush.msra.mxu0 %v909
      %1050 = vmatpush.msra.mxu0 %v846
      %1051 = vmatpush.msra.mxu0 %v783
      %1052 = vmatpush.msra.mxu0 %v720
      %1053 = vmatpush.msra.mxu0 %v657
      %1054 = vmatpush.msra.mxu0 %v628
      %1055 = vmatpush.msra.mxu0 %v565
      %1056 = vmatpush.msra.mxu0 %v502
      %1057 = vmatpush.msra.mxu0 %v439
      %1058 = vmatmul.f32.gmra.mxu0 %v920
      %v1059 = vpop.f32.mrf.mxu0
      %v1060 = vadd.f32 %v916, %v1059
      %1061 = vdwg.mxu0
      %1062 = vmatpush.msra.mxu0 0.0
      %1063 = vmatpush.msra.mxu0 0.0
      %1064 = vmatpush.msra.mxu0 0.0
      %1065 = vmatpush.msra.mxu0 0.0
      %1066 = vmatpush.msra.mxu0 0.0
      %1067 = vmatpush.msra.mxu0 0.0
      %1068 = vmatpush.msra.mxu0 0.0
      %1069 = vmatpush.msra.mxu0 %v910
      %1070 = vmatpush.msra.mxu0 %v847
      %1071 = vmatpush.msra.mxu0 %v784
      %1072 = vmatpush.msra.mxu0 %v721
      %1073 = vmatpush.msra.mxu0 %v658
      %1074 = vmatpush.msra.mxu0 %v629
      %1075 = vmatpush.msra.mxu0 %v566
      %1076 = vmatpush.msra.mxu0 %v503
      %1077 = vmatpush.msra.mxu0 %v440
      %1078 = vmatmul.f32.gmra.mxu0 %v920
      %v1079 = vpop.f32.mrf.mxu0
      %v1080 = vadd.f32 %v916, %v1079
      %1081 = vdwg.mxu0
      %vm1082 = vcmask 1043456
      %v1083 = vsel %vm1082, %v940, 0.0
      %v1084 = vsel %vm1082, %v960, 0.0
      %v1085 = vadd.f32 %v1083, %v1084
      %v1086 = vsel %vm1082, %v980, 0.0
      %v1087 = vadd.f32 %v1085, %v1086
      %v1088 = vsel %vm1082, %v1000, 0.0
      %v1089 = vadd.f32 %v1087, %v1088
      %v1090 = vsel %vm1082, %v1020, 0.0
      %v1091 = vadd.f32 %v1089, %v1090
      %v1092 = vsel %vm1082, %v1040, 0.0
      %v1093 = vadd.f32 %v1091, %v1092
      %v1094 = vsel %vm1082, %v1060, 0.0
      %v1095 = vadd.f32 %v1093, %v1094
      %v1096 = vsel %vm1082, %v1080, 0.0
      %v1097 = vadd.f32 %v1095, %v1096
      %1098 = vadd.xlane.f32.xlu0 %v1097
      %v1099 = vpop.xlane.xlu0 %1098
      %v1100 = vrcp.pop 1024.0
      %v1101 = vmul.f32 1024.0, %v1100
      %v1102 = vsub.f32 1.0, %v1101
      %v1103 = vmul.f32 %v1100, %v1102
      %v1104 = vadd.f32 %v1100, %v1103
      %vm1105 = vweird.f32 %v1100
      %v1106 = vsel %vm1105, %v1100, %v1104
      %v1107 = vmul.f32 %v1099, %v1106
      %v1108 = vsub.f32 %v940, %v1107
      %v1109 = vsub.f32 %v960, %v1107
      %v1110 = vsub.f32 %v980, %v1107
      %v1111 = vsub.f32 %v1000, %v1107
      %v1112 = vsub.f32 %v1020, %v1107
      %v1113 = vsub.f32 %v1040, %v1107
      %v1114 = vsub.f32 %v1060, %v1107
      %v1115 = vsub.f32 %v1080, %v1107
      %v1116 = vmul.f32 %v1108, %v1108
      %v1117 = vmul.f32 %v1109, %v1109
      %v1118 = vmul.f32 %v1110, %v1110
      %v1119 = vmul.f32 %v1111, %v1111
      %v1120 = vmul.f32 %v1112, %v1112
      %v1121 = vmul.f32 %v1113, %v1113
      %v1122 = vmul.f32 %v1114, %v1114
      %v1123 = vmul.f32 %v1115, %v1115
      %v1124 = vsel %vm1082, %v1116, 0.0
      %v1125 = vsel %vm1082, %v1117, 0.0
      %v1126 = vadd.f32 %v1124, %v1125
      %v1127 = vsel %vm1082, %v1118, 0.0
      %v1128 = vadd.f32 %v1126, %v1127
      %v1129 = vsel %vm1082, %v1119, 0.0
      %v1130 = vadd.f32 %v1128, %v1129
      %v1131 = vsel %vm1082, %v1120, 0.0
      %v1132 = vadd.f32 %v1130, %v1131
      %v1133 = vsel %vm1082, %v1121, 0.0
      %v1134 = vadd.f32 %v1132, %v1133
      %v1135 = vsel %vm1082, %v1122, 0.0
      %v1136 = vadd.f32 %v1134, %v1135
      %v1137 = vsel %vm1082, %v1123, 0.0
      %v1138 = vadd.f32 %v1136, %v1137
      %1139 = vadd.xlane.f32.xlu0 %v1138
      %v1140 = vpop.xlane.xlu0 %1139
      %v1141 = vmul.f32 %v1140, %v1106
      %vm1142 = vcmask 3072
      %1143 = vst.msk [vmem:[%s322] sm:$0xf] %vm1142, %v1107
      %1144 = vst.msk [vmem:[%s326] sm:$0xf] %vm1142, %v1141
      %v1153 = vrot.slane %v960, 4
      %v1154 = vrot.slane %v1000, 4
      %v1155 = vrot.slane %v1040, 4
      %v1156 = vrot.slane %v1080, 4
      %v1157 = vsel %vm1082, %v940, %v1153
      %v1158 = vsel %vm1082, %v980, %v1154
      %v1159 = vsel %vm1082, %v1020, %v1155
      %v1160 = vsel %vm1082, %v1060, %v1156
      %1165 = vst [vmem:[%s318] sm:$0xff] %v1157
      %1166 = vst [vmem:[%s318 + $0x8] sm:$0xff] %v1158
      %1167 = vst [vmem:[%s318 + $0x10] sm:$0xff] %v1159
      %1168 = vst [vmem:[%s318 + $0x18] sm:$0xff] %v1160
      %p1169 = scmp.lt.s32.totalorder %s20, 1
      %s1170 = scalar_select %p1169, %s20, 1
      %s1171 = smul.addr %s1170, 8
      %s1172 = smul.addr %s1171, 4
      %s1173 = scalar_lea.vmem %s6, %s1172
      %p1174 = scmp.lt.s32.totalorder %s20, 1
      %s1175 = scalar_select %p1174, %s20, 1
      %s1176 = smul.addr %s1175, 4
      %s1177 = scalar_lea.vmem %s7, %s1176
      %p1178 = scmp.lt.s32.totalorder %s20, 1
      %s1179 = scalar_select %p1178, %s20, 1
      %s1180 = smul.addr %s1179, 4
      %s1181 = scalar_lea.vmem %s8, %s1180
      // Predicated region
      $region45: #{disk_up_forward.6} parent=43 // pred_check
        %p1182 = pneg %p169
      $region46: #{disk_up_forward.6} parent=43 // pred_check_branch
        %1184 = sbr.rel (%p1182) target = $region48
      $region47: #{disk_up_forward.6} parent=43 // pred_region
        _
      $region48: #{disk_up_forward.6} parent=43 // pred_fallthru
        _
      // Predicated region
      $region49: #{disk_up_forward.6} parent=43 // pred_check
        %p1185 = pneg %p195
      $region50: #{disk_up_forward.6} parent=43 // pred_check_branch
        %1187 = sbr.rel (%p1185) target = $region52
      $region51: #{disk_up_forward.6} parent=43 // pred_region
        _
      $region52: #{disk_up_forward.6} parent=43 // pred_fallthru
        _
      // Predicated region
      $region53: #{disk_up_forward.6} parent=43 // pred_check
        %p1188 = pneg %p221
      $region54: #{disk_up_forward.6} parent=43 // pred_check_branch
        %1190 = sbr.rel (%p1188) target = $region56
      $region55: #{disk_up_forward.6} parent=43 // pred_region
        _
      $region56: #{disk_up_forward.6} parent=43 // pred_fallthru
        _
    $region44: #{disk_up_forward.6} parent=5 // pred_fallthru
      _
    %p1191 = scmp.le.s32.totalorder 2, %s15
    // Predicated region
    $region57: #{disk_up_forward.6} parent=5 // pred_check
      %p1192 = pneg %p1191
    $region58: #{disk_up_forward.6} parent=5 // pred_check_branch
      %1194 = sbr.rel (%p1192) target = $region60
    $region59: #{disk_up_forward.6} parent=5 // pred_region
      %s1195 = ssub.s32 %s15, 2
      // Predicated region
      $region61: #{disk_up_forward.6} parent=59 // pred_check
        %p1196 = pneg %p175
      $region62: #{disk_up_forward.6} parent=59 // pred_check_branch
        %1198 = sbr.rel (%p1196) target = $region64
      $region63: #{disk_up_forward.6} parent=59 // pred_region
        %p1199 = scmp.lt.s32.totalorder %s21, 1
        %s1200 = scalar_select %p1199, %s21, 1
        %s1201 = smul.addr %s1200, 8
        %s1202 = smul.addr %s1201, 4
        %s1203 = scalar_lea.vmem %s6, %s1202
      $region64: #{disk_up_forward.6} parent=59 // pred_fallthru
        _
      // Predicated region
      $region65: #{disk_up_forward.6} parent=59 // pred_check
        %p1204 = pneg %p201
      $region66: #{disk_up_forward.6} parent=59 // pred_check_branch
        %1206 = sbr.rel (%p1204) target = $region68
      $region67: #{disk_up_forward.6} parent=59 // pred_region
        %p1207 = scmp.lt.s32.totalorder %s21, 1
        %s1208 = scalar_select %p1207, %s21, 1
        %s1209 = smul.addr %s1208, 4
        %s1210 = scalar_lea.vmem %s7, %s1209
      $region68: #{disk_up_forward.6} parent=59 // pred_fallthru
        _
      // Predicated region
      $region69: #{disk_up_forward.6} parent=59 // pred_check
        %p1211 = pneg %p227
      $region70: #{disk_up_forward.6} parent=59 // pred_check_branch
        %1213 = sbr.rel (%p1211) target = $region72
      $region71: #{disk_up_forward.6} parent=59 // pred_region
        %p1214 = scmp.lt.s32.totalorder %s21, 1
        %s1215 = scalar_select %p1214, %s21, 1
        %s1216 = smul.addr %s1215, 4
        %s1217 = scalar_lea.vmem %s8, %s1216
      $region72: #{disk_up_forward.6} parent=59 // pred_fallthru
        _
    $region60: #{disk_up_forward.6} parent=5 // pred_fallthru
      _
  $region6: #{disk_up_forward.6} parent=0 // loop_footer
    %s19 = sadd.s32 1, %s15
  $region7: #{disk_up_forward.6} parent=0 // loop_footer_branch
    %14 = sbr.rel target = $region3
  $region8: #{disk_up_forward.6} parent=0 // loop_exit
    _

// kernel: disk_up_forward.7
$region0: #{disk_up_forward.7}
  #allocation0 [shape = 'u32[]', space=smem, size = 0x4, offset = 0x4, fixed_abs, tag = 'smem constant byte address 0x4 - core index']
  #allocation1 [shape = 'u32[72,128]{1,0:T(1,128)}', space=vmem, size = 0x9000, scoped, tag = 'internal scratch']
  %s0 = inlined_call_operand.vmem [shape: f32[2,4,1024], index: 0, kind: input, shape index: {}]
  %s1 = inlined_call_operand.vmem [shape: f32[4,1], index: 1, kind: input, shape index: {}]
  %s2 = inlined_call_operand.vmem [shape: f32[4,1], index: 2, kind: input, shape index: {}]
  %s3 = inlined_call_operand.vmem [shape: f32[2,4,1024], index: 3, kind: output, shape index: {}]
  %s4 = sld [smem:[#allocation0]]
  $region45: #{disk_up_forward.7} parent=0
    _
  %s6 = ssub.s32 1, %s4
  %s7 = scalar_select 0, %s6, %s4
  loop: start=0, step=1, limit=4
  $region2: #{disk_up_forward.7} parent=0 // loop_pre_header
    _
  $region3: #{disk_up_forward.7} parent=0 // loop_header
    %s9 = sphi 0, %s13
    %p10 = scmp.ge.s32.totalorder %s9, 4
    %s19 = sphi 0, %s21
    %s22 = sphi 0, %s19
    %s23 = sphi 0, %s22
    %s39 = sphi 0, %s23
    %s43 = sphi 0, %s43
    %s45 = sphi 0, %s43
    %s46 = sphi 0, %s45
    %s60 = sphi 0, %s46
    %s64 = sphi 0, %s64
    %s66 = sphi 0, %s64
    %s67 = sphi 0, %s66
    %s81 = sphi 0, %s67
    %s87 = sphi 0, %s89
    %s90 = sphi 0, %s87
    %s91 = sphi 0, %s90
    %s107 = sphi 0, %s91
  $region4: #{disk_up_forward.7} parent=0 // loop_header_branch
    %12 = sbr.rel (%p10) target = $region8
  $region5: #{disk_up_forward.7} parent=0 // loop_body
    %s14 = ssub.s32 %s9, 1
    %s15 = ssub.s32 %s9, 2
    %s16 = sadd.s32 %s9, 1
    %s17 = ssub.s32 %s9, %s16
    %p18 = scmp.eq.s32.totalorder %s17, 0
    %s20 = sadd.s32 %s19, 1
    %s21 = scalar_select %p18, %s19, %s20
    %p24 = pneg %p18
    %p25 = scmp.eq.s32.totalorder %s9, 1
    %p26 = por %p24, %p25
    %p27 = scmp.ne.s32.totalorder %s19, %s22
    %p28 = scmp.eq.s32.totalorder %s9, 0
    %p29 = por %p27, %p28
    %p30 = scmp.ne.s32.totalorder %s19, %s22
    %p31 = scmp.eq.s32.totalorder %s14, 1
    %p32 = por %p30, %p31
    %p33 = scmp.ne.s32.totalorder %s22, %s23
    %p34 = scmp.eq.s32.totalorder %s14, 0
    %p35 = por %p33, %p34
    %p36 = scmp.ne.s32.totalorder %s22, %s23
    %p37 = scmp.eq.s32.totalorder %s15, 1
    %p38 = por %p36, %p37
    %p40 = scmp.ne.s32.totalorder %s23, %s39
    %p41 = scmp.eq.s32.totalorder %s15, 0
    %p42 = por %p40, %p41
    %s44 = sadd.s32 %s43, 1
    %p47 = scmp.eq.s32.totalorder %s9, 1
    %p48 = scmp.ne.s32.totalorder %s43, %s45
    %p49 = scmp.eq.s32.totalorder %s9, 0
    %p50 = por %p48, %p49
    %p51 = scmp.ne.s32.totalorder %s43, %s45
    %p52 = scmp.eq.s32.totalorder %s14, 1
    %p53 = por %p51, %p52
    %p54 = scmp.ne.s32.totalorder %s45, %s46
    %p55 = scmp.eq.s32.totalorder %s14, 0
    %p56 = por %p54, %p55
    %p57 = scmp.ne.s32.totalorder %s45, %s46
    %p58 = scmp.eq.s32.totalorder %s15, 1
    %p59 = por %p57, %p58
    %p61 = scmp.ne.s32.totalorder %s46, %s60
    %p62 = scmp.eq.s32.totalorder %s15, 0
    %p63 = por %p61, %p62
    %s65 = sadd.s32 %s64, 1
    %p68 = scmp.eq.s32.totalorder %s9, 1
    %p69 = scmp.ne.s32.totalorder %s64, %s66
    %p70 = scmp.eq.s32.totalorder %s9, 0
    %p71 = por %p69, %p70
    %p72 = scmp.ne.s32.totalorder %s64, %s66
    %p73 = scmp.eq.s32.totalorder %s14, 1
    %p74 = por %p72, %p73
    %p75 = scmp.ne.s32.totalorder %s66, %s67
    %p76 = scmp.eq.s32.totalorder %s14, 0
    %p77 = por %p75, %p76
    %p78 = scmp.ne.s32.totalorder %s66, %s67
    %p79 = scmp.eq.s32.totalorder %s15, 1
    %p80 = por %p78, %p79
    %p82 = scmp.ne.s32.totalorder %s67, %s81
    %p83 = scmp.eq.s32.totalorder %s15, 0
    %p84 = por %p82, %p83
    %s85 = ssub.s32 %s9, %s16
    %p86 = scmp.eq.s32.totalorder %s85, 0
    %s88 = sadd.s32 %s87, 1
    %s89 = scalar_select %p86, %s87, %s88
    %p92 = pneg %p86
    %p93 = scmp.eq.s32.totalorder %s9, 1
    %p94 = por %p92, %p93
    %p95 = scmp.ne.s32.totalorder %s87, %s90
    %p96 = scmp.eq.s32.totalorder %s9, 0
    %p97 = por %p95, %p96
    %p98 = scmp.ne.s32.totalorder %s87, %s90
    %p99 = scmp.eq.s32.totalorder %s14, 1
    %p100 = por %p98, %p99
    %p101 = scmp.ne.s32.totalorder %s90, %s91
    %p102 = scmp.eq.s32.totalorder %s14, 0
    %p103 = por %p101, %p102
    %p104 = scmp.ne.s32.totalorder %s90, %s91
    %p105 = scmp.eq.s32.totalorder %s15, 1
    %p106 = por %p104, %p105
    %p108 = scmp.ne.s32.totalorder %s91, %s107
    %p109 = scmp.eq.s32.totalorder %s15, 0
    %p110 = por %p108, %p109
    %p111 = scmp.le.s32.totalorder 1, %s9
    %p112 = scmp.lt.s32.totalorder %s9, 3
    %p113 = pnand %p111, %p112
    %p114 = pneg %p113
    // Predicated region
    $region9: #{disk_up_forward.7} parent=5 // pred_check
      _
    $region10: #{disk_up_forward.7} parent=5 // pred_check_branch
      %116 = sbr.rel (%p113) target = $region12
    $region11: #{disk_up_forward.7} parent=5 // pred_region
      %s117 = ssub.s32 %s9, 1
      // Predicated region
      $region13: #{disk_up_forward.7} parent=11 // pred_check
        %p118 = pneg %p56
      $region14: #{disk_up_forward.7} parent=11 // pred_check_branch
        %120 = sbr.rel (%p118) target = $region16
      $region15: #{disk_up_forward.7} parent=11 // pred_region
        _
      $region16: #{disk_up_forward.7} parent=11 // pred_fallthru
        _
      // Predicated region
      $region17: #{disk_up_forward.7} parent=11 // pred_check
        %p121 = pneg %p77
      $region18: #{disk_up_forward.7} parent=11 // pred_check_branch
        %123 = sbr.rel (%p121) target = $region20
      $region19: #{disk_up_forward.7} parent=11 // pred_region
        _
      $region20: #{disk_up_forward.7} parent=11 // pred_fallthru
        _
    $region12: #{disk_up_forward.7} parent=5 // pred_fallthru
      _
    %p124 = scmp.lt.s32.totalorder %s9, 2
    // Predicated region
    $region21: #{disk_up_forward.7} parent=5 // pred_check
      %p125 = pneg %p124
    $region22: #{disk_up_forward.7} parent=5 // pred_check_branch
      %127 = sbr.rel (%p125) target = $region24
    $region23: #{disk_up_forward.7} parent=5 // pred_region
      // Predicated region
      $region25: #{disk_up_forward.7} parent=23 // pred_check
        %p128 = pneg %p29
      $region26: #{disk_up_forward.7} parent=23 // pred_check_branch
        %130 = sbr.rel (%p128) target = $region28
      $region27: #{disk_up_forward.7} parent=23 // pred_region
        %p131 = scmp.lt.s32.totalorder %s9, 1
        %s132 = scalar_select %p131, %s9, 1
        %s133 = smul.addr %s132, 8
        %s134 = smul.addr %s133, 4
        %s135 = scalar_lea.vmem %s0, %s134
      $region28: #{disk_up_forward.7} parent=23 // pred_fallthru
        _
    $region24: #{disk_up_forward.7} parent=5 // pred_fallthru
      _
    %p136 = scmp.le.s32.totalorder 1, %s9
    %p137 = scmp.lt.s32.totalorder %s9, 3
    %p138 = pnand %p136, %p137
    %p139 = pneg %p138
    // Predicated region
    $region29: #{disk_up_forward.7} parent=5 // pred_check
      _
    $region30: #{disk_up_forward.7} parent=5 // pred_check_branch
      %141 = sbr.rel (%p138) target = $region32
    $region31: #{disk_up_forward.7} parent=5 // pred_region
      %s142 = ssub.s32 %s9, 1
      %p143 = scmp.lt.s32.totalorder %s14, 1
      %s144 = scalar_select %p143, %s14, 1
      %s145 = smul.addr %s144, 8
      %s146 = smul.addr %s145, 4
      %s147 = scalar_lea.vmem %s0, %s146
      %p148 = pneg %p35
      %p149 = pneg %p32
      %p150 = pneg %p56
      %p151 = pneg %p53
      %p152 = pneg %p77
      %p153 = pneg %p74
      %p154 = pneg %p103
      %p155 = pneg %p100
      %p156 = scmp.lt.s32.totalorder %s14, 1
      %s157 = scalar_select %p156, %s14, 1
      %s158 = smul.addr %s157, 8
      %s159 = smul.addr %s158, 4
      %s160 = scalar_lea.vmem %s3, %s159
      %p161 = scmp.lt.s32.totalorder %s14, 1
      %s162 = scalar_select %p161, %s14, 1
      %s163 = smul.addr %s162, 8
      %s164 = smul.addr %s163, 4
      %s165 = scalar_lea.vmem %s0, %s164
      %p166 = scmp.lt.s32.totalorder %s14, 1
      %s167 = scalar_select %p166, %s14, 1
      %s168 = smul.addr %s167, 8
      %s169 = smul.addr %s168, 4
      %s170 = scalar_lea.vmem %s3, %s169
      %v171 = vld [vmem:[%s165] sm:$0xff]
      %v172 = vld [vmem:[%s165 + $0x8] sm:$0xff]
      %v173 = vld [vmem:[%s165 + $0x10] sm:$0xff]
      %v174 = vld [vmem:[%s165 + $0x18] sm:$0xff]
      %v175 = vld [vmem:[%s1] sm:$0xf]
      %177 = vset.pattern.permute.xlu0 0
      %178 = vperm.xlu0 %177, %v175
      %v179 = vpop.permute.xlu0 %178
      %v181 = vunpack.c.l.s4 839922192
      %v182 = vunpack.c.0.s8 %v181
      %v183 = vperm.slane %v179, %v182
      %v185 = vmul.f32 %v171, %v183
      %v186 = vmul.f32 %v172, %v183
      %v187 = vmul.f32 %v173, %v183
      %v188 = vmul.f32 %v174, %v183
      %v189 = vld [vmem:[%s2] sm:$0xf]
      %191 = vset.pattern.permute.xlu0 0
      %192 = vperm.xlu0 %191, %v189
      %v193 = vpop.permute.xlu0 %192
      %v195 = vunpack.c.l.s4 839922192
      %v196 = vunpack.c.0.s8 %v195
      %v197 = vperm.slane %v193, %v196
      %v199 = vadd.f32 %v185, %v197
      %v200 = vadd.f32 %v186, %v197
      %v201 = vadd.f32 %v187, %v197
      %v202 = vadd.f32 %v188, %v197
      %v203 = vmax.f32 %v199, 0.0
      %v204 = vmax.f32 %v200, 0.0
      %v205 = vmax.f32 %v201, 0.0
      %v206 = vmax.f32 %v202, 0.0
      %207 = vst [vmem:[%s170] sm:$0xff] %v203
      %208 = vst [vmem:[%s170 + $0x8] sm:$0xff] %v204
      %209 = vst [vmem:[%s170 + $0x10] sm:$0xff] %v205
      %210 = vst [vmem:[%s170 + $0x18] sm:$0xff] %v206
      %p211 = scmp.lt.s32.totalorder %s14, 1
      %s212 = scalar_select %p211, %s14, 1
      %s213 = smul.addr %s212, 8
      %s214 = smul.addr %s213, 4
      %s215 = scalar_lea.vmem %s3, %s214
      // Predicated region
      $region33: #{disk_up_forward.7} parent=31 // pred_check
        %p216 = pneg %p100
      $region34: #{disk_up_forward.7} parent=31 // pred_check_branch
        %218 = sbr.rel (%p216) target = $region36
      $region35: #{disk_up_forward.7} parent=31 // pred_region
        _
      $region36: #{disk_up_forward.7} parent=31 // pred_fallthru
        _
    $region32: #{disk_up_forward.7} parent=5 // pred_fallthru
      _
    %p219 = scmp.le.s32.totalorder 2, %s9
    // Predicated region
    $region37: #{disk_up_forward.7} parent=5 // pred_check
      %p220 = pneg %p219
    $region38: #{disk_up_forward.7} parent=5 // pred_check_branch
      %222 = sbr.rel (%p220) target = $region40
    $region39: #{disk_up_forward.7} parent=5 // pred_region
      %s223 = ssub.s32 %s9, 2
      // Predicated region
      $region41: #{disk_up_forward.7} parent=39 // pred_check
        %p224 = pneg %p106
      $region42: #{disk_up_forward.7} parent=39 // pred_check_branch
        %226 = sbr.rel (%p224) target = $region44
      $region43: #{disk_up_forward.7} parent=39 // pred_region
        %p227 = scmp.lt.s32.totalorder %s15, 1
        %s228 = scalar_select %p227, %s15, 1
        %s229 = smul.addr %s228, 8
        %s230 = smul.addr %s229, 4
        %s231 = scalar_lea.vmem %s3, %s230
      $region44: #{disk_up_forward.7} parent=39 // pred_fallthru
        _
    $region40: #{disk_up_forward.7} parent=5 // pred_fallthru
      _
  $region6: #{disk_up_forward.7} parent=0 // loop_footer
    %s13 = sadd.s32 1, %s9
  $region7: #{disk_up_forward.7} parent=0 // loop_footer_branch
    %8 = sbr.rel target = $region3
  $region8: #{disk_up_forward.7} parent=0 // loop_exit
    _

</llo_original>
